<compile_context>
chip_gen: v7x
topology: tpu7x:2x2x1
jax: 0.10.0
libtpu: 0.0.40
codegen_flags: <defaults>
</compile_context>

<pallas_src>
import numpy as np

import jax
import jax.numpy as jnp
from jax.experimental import pallas as pl
from jax.experimental.pallas import tpu as pltpu


COMPUTE_DTYPE = jnp.bfloat16   # MXU inputs / activations
LANES = 512                    # conv matmul output lanes: [even cols | odd cols]
HALF = 256                     # one parity half (pooled activation lane width)


def _round_up(v, m):
    return (v + m - 1) // m * m


# ---------------------------------------------------------------------------
# Fully fused forward kernel (one batch tile per grid step)
# ---------------------------------------------------------------------------
def _net_kernel(x_ref, wb1_ref, sh1_ref, wb2_ref, sh2_ref, wb3_ref, sh3_ref,
                fc1w_ref, fc1b_ref, fc2w_ref, fc2b_ref, o_ref):
    bt = x_ref.shape[1]
    f32 = jnp.float32

    def conv_block(xp, wb_ref, sh_ref, h_out, h_keep):
        # xp      : (h_out + 2, bt, K) bf16, zero rows at 0 and h_out+1 (H padding).
        #           Lane layout: col * Cin + ci  (W padding folded into the band).
        # wb_ref  : (3, K, 512) banded conv weight, BN scale folded in.
        #           Output lane = parity*256 + (col//2)*Cout + co.
        # sh_ref  : (1, 512) folded BN shift per output lane (0 on pad lanes).
        # returns : (h_keep//2, bt, 256) bf16 pooled activation, lane = col*Cout+co.
        k = xp.shape[-1]
        m = h_out * bt
        # 3 accumulating width-band matmuls (one per kernel row) — the kh shift is
        # a free leading-dim slice in the H-major layout.
        acc = jnp.dot(xp[0:h_out].reshape(m, k), wb_ref[0],
                      preferred_element_type=f32)
        for kh in (1, 2):
            acc = acc + jnp.dot(xp[kh:kh + h_out].reshape(m, k), wb_ref[kh],
                                preferred_element_type=f32)
        y = jnp.maximum(acc + sh_ref[...], 0.0)                 # BN shift + ReLU (f32)
        y = y.reshape(h_out, bt, LANES)[:h_keep]                # drop odd trailing row
        y = y.reshape(h_keep // 2, 2, bt, LANES)
        y = jnp.maximum(y[:, 0], y[:, 1])                       # 2x2 pool: row pairs
        y = jnp.maximum(y[..., :HALF], y[..., HALF:])           # 2x2 pool: column pairs
        return y.astype(COMPUTE_DTYPE)

    def pad_rows(y):
        z = jnp.zeros((1,) + y.shape[1:], y.dtype)
        return jnp.concatenate([z, y, z], axis=0)               # conv H zero padding

    p1 = conv_block(x_ref[...], wb1_ref, sh1_ref, 28, 28)       # (14, bt, 256)
    p2 = conv_block(pad_rows(p1), wb2_ref, sh2_ref, 14, 14)     # ( 7, bt, 256)
    p3 = conv_block(pad_rows(p2), wb3_ref, sh3_ref, 7, 6)       # ( 3, bt, 256)

    # fc1 (dropout = identity in eval).  PyTorch's NCHW flatten order is folded
    # into fc1w, so fc1 is 3 accumulating (bt,256)x(256,256) matmuls over p3 rows.
    hid = fc1b_ref[...]
    for h in range(3):
        hid = hid + jnp.dot(p3[h], fc1w_ref[h], preferred_element_type=f32)
    # NOTE: the reference Net has no activation between fc1 and fc2.
    logits = jnp.dot(hid.astype(COMPUTE_DTYPE), fc2w_ref[...],
                     preferred_element_type=f32) + fc2b_ref[...]
    o_ref[...] = logits                                          # lane-dense (bt, 128)


# ---------------------------------------------------------------------------
# Forward pass wrapper (single pallas_call)
# ---------------------------------------------------------------------------
def net_forward(prepared, x_nchw):
    n = x_nchw.shape[0]
    if n <= 8:
        bt = 8                                     # tiny demo batch
    else:
        bt = min(64, _round_up(n, 32) // 2)        # multiple of 16; grid >= 2 once n > bt
    npad = _round_up(n, bt)

    # H-major layout: (H+2, N, W).  Conv H padding is explicit zero rows; conv W
    # padding is implicit in the band weights (out-of-range columns have no entry).
    x = jnp.transpose(x_nchw[:, 0, :, :], (1, 0, 2)).astype(COMPUTE_DTYPE)  # (28, n, 28)
    x = jnp.pad(x, ((1, 1), (0, npad - n), (0, 0)))                          # (30, npad, 28)

    # Derived VMEM budget: resident weights (+ buffering) plus per-tile activations
    # (dominated by the (28*bt, 512) f32 conv1 accumulator and its temporaries).
    vmem_limit = (8 + (bt * 3) // 8) * 1024 * 1024

    out = pl.pallas_call(
        _net_kernel,
        out_shape=jax.ShapeDtypeStruct((npad, 128), jnp.float32),
        grid_spec=pltpu.PrefetchScalarGridSpec(
            num_scalar_prefetch=0,
            grid=(npad // bt,),
            in_specs=[
                pl.BlockSpec((30, bt, 28), lambda i: (0, i, 0)),        # images
                pl.BlockSpec((3, 28, LANES), lambda i: (0, 0, 0)),      # conv1 band
                pl.BlockSpec((1, LANES), lambda i: (0, 0)),             # conv1 shift
                pl.BlockSpec((3, HALF, LANES), lambda i: (0, 0, 0)),    # conv2 band
                pl.BlockSpec((1, LANES), lambda i: (0, 0)),             # conv2 shift
                pl.BlockSpec((3, HALF, LANES), lambda i: (0, 0, 0)),    # conv3 band
                pl.BlockSpec((1, LANES), lambda i: (0, 0)),             # conv3 shift
                pl.BlockSpec((3, HALF, HALF), lambda i: (0, 0, 0)),     # fc1 weight
                pl.BlockSpec((1, HALF), lambda i: (0, 0)),              # fc1 bias
                pl.BlockSpec((HALF, 128), lambda i: (0, 0)),            # fc2 weight (padded)
                pl.BlockSpec((1, 128), lambda i: (0, 0)),               # fc2 bias (padded)
            ],
            out_specs=pl.BlockSpec((bt, 128), lambda i: (i, 0)),
        ),
        compiler_params=pltpu.CompilerParams(
            dimension_semantics=("parallel",),
            vmem_limit_bytes=vmem_limit,
        ),
    )(x, prepared["wb1"], prepared["sh1"], prepared["wb2"], prepared["sh2"],
      prepared["wb3"], prepared["sh3"], prepared["fc1w"], prepared["fc1b"],
      prepared["fc2w"], prepared["fc2b"])
    return out[:n, :10]


# ---------------------------------------------------------------------------
# Parameters: PyTorch-like init and one-time host-side folding / band build.
# ---------------------------------------------------------------------------
def init_params(key):
    ks = jax.random.split(key, 10)

    def conv_block(kw, kb, cin, cout):
        return {
            "w": 0.1 * jax.random.normal(kw, (cout, cin, 3, 3), jnp.float32),
            "gamma": 1.0 + 0.1 * jax.random.normal(kb, (cout,), jnp.float32),
            "beta": 0.05 * jax.random.normal(jax.random.fold_in(kb, 1), (cout,), jnp.float32),
            "mean": 0.1 * jax.random.normal(jax.random.fold_in(kb, 2), (cout,), jnp.float32),
            "var": jnp.abs(1.0 + 0.1 * jax.random.normal(jax.random.fold_in(kb, 3),
                                                         (cout,), jnp.float32)),
        }

    p = {}
    p["conv1"] = conv_block(ks[0], ks[1], 1, 16)
    p["conv2"] = conv_block(ks[2], ks[3], 16, 32)
    p["conv3"] = conv_block(ks[4], ks[5], 32, 64)
    p["fc1_w"] = 0.05 * jax.random.normal(ks[6], (256, 64 * 3 * 3), jnp.float32)
    p["fc1_b"] = 0.01 * jax.random.normal(ks[7], (256,), jnp.float32)
    p["fc2_w"] = 0.05 * jax.random.normal(ks[8], (10, 256), jnp.float32)
    p["fc2_b"] = 0.01 * jax.random.normal(ks[9], (10,), jnp.float32)
    return p


def _conv_band_and_shift(conv, w_in, w_keep, k_rows, eps=1e-5):
    """Banded (conv-as-width-matmul) weight with BN scale folded in, plus the
    per-output-lane BN shift.  The reference Conv2d has bias=False, so only the
    BN shift enters the epilogue.

    Input lane  l = col*Cin + ci      (col = 0..w_in-1; pad lanes -> zero rows)
    Output lane = parity*256 + (out_col//2)*Cout + co, out_col = 0..w_keep-1.
    """
    w = np.asarray(conv["w"], np.float32)                       # (Cout, Cin, 3, 3)
    cout, cin = w.shape[0], w.shape[1]
    scale = np.asarray(conv["gamma"], np.float32) / np.sqrt(
        np.asarray(conv["var"], np.float32) + eps)
    shift = np.asarray(conv["beta"], np.float32) - np.asarray(conv["mean"], np.float32) * scale
    wsc = w * scale[:, None, None, None]                        # fold BN scale
    band = np.zeros((3, k_rows, LANES), np.float32)
    sh = np.zeros((1, LANES), np.float32)
    for j in range(w_keep):                                      # conv output column
        u, qo = j % 2, j // 2
        col0 = u * 256 + qo * cout
        sh[0, col0:col0 + cout] = shift
        for kh in range(3):
            for kw in range(3):
                q = j + kw - 1                                   # input column (padding=1)
                if 0 <= q < w_in:
                    band[kh, q * cin:(q + 1) * cin, col0:col0 + cout] = wsc[:, :, kh, kw].T
    return band, sh


def prepare_params(p):
    """One-time layout work (host-side numpy) so the kernel has zero glue."""
    out = {}
    b1, s1 = _conv_band_and_shift(p["conv1"], w_in=28, w_keep=28, k_rows=28)
    b2, s2 = _conv_band_and_shift(p["conv2"], w_in=14, w_keep=14, k_rows=HALF)
    b3, s3 = _conv_band_and_shift(p["conv3"], w_in=7, w_keep=6, k_rows=HALF)
    out["wb1"], out["sh1"] = jnp.asarray(b1, COMPUTE_DTYPE), jnp.asarray(s1)
    out["wb2"], out["sh2"] = jnp.asarray(b2, COMPUTE_DTYPE), jnp.asarray(s2)
    out["wb3"], out["sh3"] = jnp.asarray(b3, COMPUTE_DTYPE), jnp.asarray(s3)

    # fc1: PyTorch flattens NCHW (c, h, w); remap to our (h, lane=w*64+c) layout
    # so fc1 becomes 3 matmuls over the conv3 pooled rows (pad lanes -> zero rows).
    fc1 = np.asarray(p["fc1_w"], np.float32)                    # (256, 576)
    w1h = np.zeros((3, HALF, HALF), np.float32)
    for h in range(3):
        for w_ in range(3):
            cols = np.arange(64) * 9 + h * 3 + w_
            w1h[h, w_ * 64:(w_ + 1) * 64, :] = fc1[:, cols].T
    out["fc1w"] = jnp.asarray(w1h, COMPUTE_DTYPE)
    out["fc1b"] = jnp.asarray(np.asarray(p["fc1_b"], np.float32).reshape(1, HALF))

    fc2 = np.zeros((HALF, 128), np.float32)                     # pad 10 -> 128 lanes
    fc2[:, :10] = np.asarray(p["fc2_w"], np.float32).T
    out["fc2w"] = jnp.asarray(fc2, COMPUTE_DTYPE)
    fc2b = np.zeros((1, 128), np.float32)
    fc2b[0, :10] = np.asarray(p["fc2_b"], np.float32)
    out["fc2b"] = jnp.asarray(fc2b)
    return out


if __name__ == "__main__":
    key = jax.random.PRNGKey(0)
    k_param, k_input = jax.random.split(key)
    params = init_params(k_param)
    prepared = prepare_params(params)                  # one-time folding / band build

    # MNIST-shaped input: batch=2, 1 channel, 28x28 (NCHW, like PyTorch).
    x = jax.random.normal(k_input, (2, 1, 28, 28), jnp.float32)

    out = jax.jit(net_forward)(prepared, x)
    out = jax.block_until_ready(out)
    assert out.shape == (2, 10), out.shape
    assert bool(jnp.all(jnp.isfinite(out))), "non-finite output"
    print("KERNEL_OK")
</pallas_src>

<mosaic_0001>
module attributes {stable_mosaic.version = 11 : i64} {
  func.func @_net_kernel(%arg0: i32, %arg1: memref<30x8x28xbf16, #tpu.memory_space<vmem>>, %arg2: memref<3x28x512xbf16, #tpu.memory_space<vmem>>, %arg3: memref<1x512xf32, #tpu.memory_space<vmem>>, %arg4: memref<3x256x512xbf16, #tpu.memory_space<vmem>>, %arg5: memref<1x512xf32, #tpu.memory_space<vmem>>, %arg6: memref<3x256x512xbf16, #tpu.memory_space<vmem>>, %arg7: memref<1x512xf32, #tpu.memory_space<vmem>>, %arg8: memref<3x256x256xbf16, #tpu.memory_space<vmem>>, %arg9: memref<1x256xf32, #tpu.memory_space<vmem>>, %arg10: memref<256x128xbf16, #tpu.memory_space<vmem>>, %arg11: memref<1x128xf32, #tpu.memory_space<vmem>>, %arg12: memref<8x128xf32, #tpu.memory_space<vmem>>) attributes {dimension_semantics = [#tpu.dimension_semantics<parallel>], iteration_bounds = array<i64: 1>, scalar_prefetch = 0 : i64, scratch_operands = 0 : i64, tpu.core_type = #tpu.core_type<tc>, window_params = [{transform_indices = @transform_0, window_bounds = array<i64: 30, 8, 28>}, {pipeline_mode = #tpu.pipeline_mode<synchronous>, transform_indices = @transform_1, window_bounds = array<i64: 3, 28, 512>}, {pipeline_mode = #tpu.pipeline_mode<synchronous>, transform_indices = @transform_2, window_bounds = array<i64: 1, 512>}, {pipeline_mode = #tpu.pipeline_mode<synchronous>, transform_indices = @transform_3, window_bounds = array<i64: 3, 256, 512>}, {pipeline_mode = #tpu.pipeline_mode<synchronous>, transform_indices = @transform_4, window_bounds = array<i64: 1, 512>}, {pipeline_mode = #tpu.pipeline_mode<synchronous>, transform_indices = @transform_5, window_bounds = array<i64: 3, 256, 512>}, {pipeline_mode = #tpu.pipeline_mode<synchronous>, transform_indices = @transform_6, window_bounds = array<i64: 1, 512>}, {pipeline_mode = #tpu.pipeline_mode<synchronous>, transform_indices = @transform_7, window_bounds = array<i64: 3, 256, 256>}, {pipeline_mode = #tpu.pipeline_mode<synchronous>, transform_indices = @transform_8, window_bounds = array<i64: 1, 256>}, {pipeline_mode = #tpu.pipeline_mode<synchronous>, transform_indices = @transform_9, window_bounds = array<i64: 256, 128>}, {pipeline_mode = #tpu.pipeline_mode<synchronous>, transform_indices = @transform_10, window_bounds = array<i64: 1, 128>}, {transform_indices = @transform_11, window_bounds = array<i64: 8, 128>}]} {
    %c0 = arith.constant 0 : index
    %c0_0 = arith.constant 0 : index
    %c0_1 = arith.constant 0 : index
    %0 = vector.load %arg1[%c0, %c0_0, %c0_1] : memref<30x8x28xbf16, #tpu.memory_space<vmem>>, vector<30x8x28xbf16>
    %1 = vector.extract_strided_slice %0 {offsets = [0, 0, 0], sizes = [28, 8, 28], strides = [1, 1, 1]} : vector<30x8x28xbf16> to vector<28x8x28xbf16>
    %2 = vector.shape_cast %1 : vector<28x8x28xbf16> to vector<224x28xbf16>
    %c0_2 = arith.constant 0 : index
    %c0_3 = arith.constant 0 : index
    %c0_4 = arith.constant 0 : index
    %3 = vector.load %arg2[%c0_2, %c0_3, %c0_4] : memref<3x28x512xbf16, #tpu.memory_space<vmem>>, vector<1x28x512xbf16>
    %4 = vector.shape_cast %3 : vector<1x28x512xbf16> to vector<28x512xbf16>
    %cst = arith.constant dense<0.000000e+00> : vector<224x512xf32>
    %5 = tpu.matmul %2, %4, %cst {dimension_numbers = #tpu.dot_dimension_numbers<[1], [0], [0], [1], [0, 0, 1, 1], [], []>} : vector<224x28xbf16>, vector<28x512xbf16>, vector<224x512xf32> -> vector<224x512xf32>
    %6 = vector.extract_strided_slice %0 {offsets = [1, 0, 0], sizes = [28, 8, 28], strides = [1, 1, 1]} : vector<30x8x28xbf16> to vector<28x8x28xbf16>
    %7 = vector.shape_cast %6 : vector<28x8x28xbf16> to vector<224x28xbf16>
    %c1 = arith.constant 1 : index
    %c0_5 = arith.constant 0 : index
    %c0_6 = arith.constant 0 : index
    %8 = vector.load %arg2[%c1, %c0_5, %c0_6] : memref<3x28x512xbf16, #tpu.memory_space<vmem>>, vector<1x28x512xbf16>
    %9 = vector.shape_cast %8 : vector<1x28x512xbf16> to vector<28x512xbf16>
    %cst_7 = arith.constant dense<0.000000e+00> : vector<224x512xf32>
    %10 = tpu.matmul %7, %9, %cst_7 {dimension_numbers = #tpu.dot_dimension_numbers<[1], [0], [0], [1], [0, 0, 1, 1], [], []>} : vector<224x28xbf16>, vector<28x512xbf16>, vector<224x512xf32> -> vector<224x512xf32>
    %11 = arith.addf %5, %10 : vector<224x512xf32>
    %12 = vector.extract_strided_slice %0 {offsets = [2, 0, 0], sizes = [28, 8, 28], strides = [1, 1, 1]} : vector<30x8x28xbf16> to vector<28x8x28xbf16>
    %13 = vector.shape_cast %12 : vector<28x8x28xbf16> to vector<224x28xbf16>
    %c2 = arith.constant 2 : index
    %c0_8 = arith.constant 0 : index
    %c0_9 = arith.constant 0 : index
    %14 = vector.load %arg2[%c2, %c0_8, %c0_9] : memref<3x28x512xbf16, #tpu.memory_space<vmem>>, vector<1x28x512xbf16>
    %15 = vector.shape_cast %14 : vector<1x28x512xbf16> to vector<28x512xbf16>
    %cst_10 = arith.constant dense<0.000000e+00> : vector<224x512xf32>
    %16 = tpu.matmul %13, %15, %cst_10 {dimension_numbers = #tpu.dot_dimension_numbers<[1], [0], [0], [1], [0, 0, 1, 1], [], []>} : vector<224x28xbf16>, vector<28x512xbf16>, vector<224x512xf32> -> vector<224x512xf32>
    %17 = arith.addf %11, %16 : vector<224x512xf32>
    %c0_11 = arith.constant 0 : index
    %c0_12 = arith.constant 0 : index
    %18 = vector.load %arg3[%c0_11, %c0_12] : memref<1x512xf32, #tpu.memory_space<vmem>>, vector<1x512xf32>
    %19 = vector.broadcast %18 : vector<1x512xf32> to vector<224x512xf32>
    %20 = arith.addf %17, %19 : vector<224x512xf32>
    %cst_13 = arith.constant 0.000000e+00 : f32
    %21 = vector.broadcast %cst_13 : f32 to vector<224x512xf32>
    %22 = arith.maximumf %20, %21 : vector<224x512xf32>
    %23 = vector.shape_cast %22 : vector<224x512xf32> to vector<28x8x512xf32>
    %24 = vector.shape_cast %23 : vector<28x8x512xf32> to vector<14x2x8x512xf32>
    %25 = vector.extract_strided_slice %24 {offsets = [0, 0, 0, 0], sizes = [14, 1, 8, 512], strides = [1, 1, 1, 1]} : vector<14x2x8x512xf32> to vector<14x1x8x512xf32>
    %26 = vector.shape_cast %25 : vector<14x1x8x512xf32> to vector<14x8x512xf32>
    %27 = vector.extract_strided_slice %24 {offsets = [0, 1, 0, 0], sizes = [14, 1, 8, 512], strides = [1, 1, 1, 1]} : vector<14x2x8x512xf32> to vector<14x1x8x512xf32>
    %28 = vector.shape_cast %27 : vector<14x1x8x512xf32> to vector<14x8x512xf32>
    %29 = arith.maximumf %26, %28 : vector<14x8x512xf32>
    %30 = vector.extract_strided_slice %29 {offsets = [0, 0, 0], sizes = [14, 8, 256], strides = [1, 1, 1]} : vector<14x8x512xf32> to vector<14x8x256xf32>
    %31 = vector.extract_strided_slice %29 {offsets = [0, 0, 256], sizes = [14, 8, 256], strides = [1, 1, 1]} : vector<14x8x512xf32> to vector<14x8x256xf32>
    %32 = arith.maximumf %30, %31 : vector<14x8x256xf32>
    %33 = arith.truncf %32 : vector<14x8x256xf32> to vector<14x8x256xbf16>
    %cst_14 = arith.constant 0.000000e+00 : bf16
    %34 = vector.broadcast %cst_14 : bf16 to vector<1x8x256xbf16>
    %35 = tpu.concatenate %34, %33, %34 in 0 : vector<1x8x256xbf16>, vector<14x8x256xbf16>, vector<1x8x256xbf16> -> vector<16x8x256xbf16>
    %36 = vector.extract_strided_slice %35 {offsets = [0, 0, 0], sizes = [14, 8, 256], strides = [1, 1, 1]} : vector<16x8x256xbf16> to vector<14x8x256xbf16>
    %37 = vector.shape_cast %36 : vector<14x8x256xbf16> to vector<112x256xbf16>
    %c0_15 = arith.constant 0 : index
    %c0_16 = arith.constant 0 : index
    %c0_17 = arith.constant 0 : index
    %38 = vector.load %arg4[%c0_15, %c0_16, %c0_17] : memref<3x256x512xbf16, #tpu.memory_space<vmem>>, vector<1x256x512xbf16>
    %39 = vector.shape_cast %38 : vector<1x256x512xbf16> to vector<256x512xbf16>
    %cst_18 = arith.constant dense<0.000000e+00> : vector<112x512xf32>
    %40 = tpu.matmul %37, %39, %cst_18 {dimension_numbers = #tpu.dot_dimension_numbers<[1], [0], [0], [1], [0, 0, 1, 1], [], []>} : vector<112x256xbf16>, vector<256x512xbf16>, vector<112x512xf32> -> vector<112x512xf32>
    %41 = vector.extract_strided_slice %35 {offsets = [1, 0, 0], sizes = [14, 8, 256], strides = [1, 1, 1]} : vector<16x8x256xbf16> to vector<14x8x256xbf16>
    %42 = vector.shape_cast %41 : vector<14x8x256xbf16> to vector<112x256xbf16>
    %c1_19 = arith.constant 1 : index
    %c0_20 = arith.constant 0 : index
    %c0_21 = arith.constant 0 : index
    %43 = vector.load %arg4[%c1_19, %c0_20, %c0_21] : memref<3x256x512xbf16, #tpu.memory_space<vmem>>, vector<1x256x512xbf16>
    %44 = vector.shape_cast %43 : vector<1x256x512xbf16> to vector<256x512xbf16>
    %cst_22 = arith.constant dense<0.000000e+00> : vector<112x512xf32>
    %45 = tpu.matmul %42, %44, %cst_22 {dimension_numbers = #tpu.dot_dimension_numbers<[1], [0], [0], [1], [0, 0, 1, 1], [], []>} : vector<112x256xbf16>, vector<256x512xbf16>, vector<112x512xf32> -> vector<112x512xf32>
    %46 = arith.addf %40, %45 : vector<112x512xf32>
    %47 = vector.extract_strided_slice %35 {offsets = [2, 0, 0], sizes = [14, 8, 256], strides = [1, 1, 1]} : vector<16x8x256xbf16> to vector<14x8x256xbf16>
    %48 = vector.shape_cast %47 : vector<14x8x256xbf16> to vector<112x256xbf16>
    %c2_23 = arith.constant 2 : index
    %c0_24 = arith.constant 0 : index
    %c0_25 = arith.constant 0 : index
    %49 = vector.load %arg4[%c2_23, %c0_24, %c0_25] : memref<3x256x512xbf16, #tpu.memory_space<vmem>>, vector<1x256x512xbf16>
    %50 = vector.shape_cast %49 : vector<1x256x512xbf16> to vector<256x512xbf16>
    %cst_26 = arith.constant dense<0.000000e+00> : vector<112x512xf32>
    %51 = tpu.matmul %48, %50, %cst_26 {dimension_numbers = #tpu.dot_dimension_numbers<[1], [0], [0], [1], [0, 0, 1, 1], [], []>} : vector<112x256xbf16>, vector<256x512xbf16>, vector<112x512xf32> -> vector<112x512xf32>
    %52 = arith.addf %46, %51 : vector<112x512xf32>
    %c0_27 = arith.constant 0 : index
    %c0_28 = arith.constant 0 : index
    %53 = vector.load %arg5[%c0_27, %c0_28] : memref<1x512xf32, #tpu.memory_space<vmem>>, vector<1x512xf32>
    %54 = vector.broadcast %53 : vector<1x512xf32> to vector<112x512xf32>
    %55 = arith.addf %52, %54 : vector<112x512xf32>
    %cst_29 = arith.constant 0.000000e+00 : f32
    %56 = vector.broadcast %cst_29 : f32 to vector<112x512xf32>
    %57 = arith.maximumf %55, %56 : vector<112x512xf32>
    %58 = vector.shape_cast %57 : vector<112x512xf32> to vector<14x8x512xf32>
    %59 = vector.shape_cast %58 : vector<14x8x512xf32> to vector<7x2x8x512xf32>
    %60 = vector.extract_strided_slice %59 {offsets = [0, 0, 0, 0], sizes = [7, 1, 8, 512], strides = [1, 1, 1, 1]} : vector<7x2x8x512xf32> to vector<7x1x8x512xf32>
    %61 = vector.shape_cast %60 : vector<7x1x8x512xf32> to vector<7x8x512xf32>
    %62 = vector.extract_strided_slice %59 {offsets = [0, 1, 0, 0], sizes = [7, 1, 8, 512], strides = [1, 1, 1, 1]} : vector<7x2x8x512xf32> to vector<7x1x8x512xf32>
    %63 = vector.shape_cast %62 : vector<7x1x8x512xf32> to vector<7x8x512xf32>
    %64 = arith.maximumf %61, %63 : vector<7x8x512xf32>
    %65 = vector.extract_strided_slice %64 {offsets = [0, 0, 0], sizes = [7, 8, 256], strides = [1, 1, 1]} : vector<7x8x512xf32> to vector<7x8x256xf32>
    %66 = vector.extract_strided_slice %64 {offsets = [0, 0, 256], sizes = [7, 8, 256], strides = [1, 1, 1]} : vector<7x8x512xf32> to vector<7x8x256xf32>
    %67 = arith.maximumf %65, %66 : vector<7x8x256xf32>
    %68 = arith.truncf %67 : vector<7x8x256xf32> to vector<7x8x256xbf16>
    %cst_30 = arith.constant 0.000000e+00 : bf16
    %69 = vector.broadcast %cst_30 : bf16 to vector<1x8x256xbf16>
    %70 = tpu.concatenate %69, %68, %69 in 0 : vector<1x8x256xbf16>, vector<7x8x256xbf16>, vector<1x8x256xbf16> -> vector<9x8x256xbf16>
    %71 = vector.extract_strided_slice %70 {offsets = [0, 0, 0], sizes = [7, 8, 256], strides = [1, 1, 1]} : vector<9x8x256xbf16> to vector<7x8x256xbf16>
    %72 = vector.shape_cast %71 : vector<7x8x256xbf16> to vector<56x256xbf16>
    %c0_31 = arith.constant 0 : index
    %c0_32 = arith.constant 0 : index
    %c0_33 = arith.constant 0 : index
    %73 = vector.load %arg6[%c0_31, %c0_32, %c0_33] : memref<3x256x512xbf16, #tpu.memory_space<vmem>>, vector<1x256x512xbf16>
    %74 = vector.shape_cast %73 : vector<1x256x512xbf16> to vector<256x512xbf16>
    %cst_34 = arith.constant dense<0.000000e+00> : vector<56x512xf32>
    %75 = tpu.matmul %72, %74, %cst_34 {dimension_numbers = #tpu.dot_dimension_numbers<[1], [0], [0], [1], [0, 0, 1, 1], [], []>} : vector<56x256xbf16>, vector<256x512xbf16>, vector<56x512xf32> -> vector<56x512xf32>
    %76 = vector.extract_strided_slice %70 {offsets = [1, 0, 0], sizes = [7, 8, 256], strides = [1, 1, 1]} : vector<9x8x256xbf16> to vector<7x8x256xbf16>
    %77 = vector.shape_cast %76 : vector<7x8x256xbf16> to vector<56x256xbf16>
    %c1_35 = arith.constant 1 : index
    %c0_36 = arith.constant 0 : index
    %c0_37 = arith.constant 0 : index
    %78 = vector.load %arg6[%c1_35, %c0_36, %c0_37] : memref<3x256x512xbf16, #tpu.memory_space<vmem>>, vector<1x256x512xbf16>
    %79 = vector.shape_cast %78 : vector<1x256x512xbf16> to vector<256x512xbf16>
    %cst_38 = arith.constant dense<0.000000e+00> : vector<56x512xf32>
    %80 = tpu.matmul %77, %79, %cst_38 {dimension_numbers = #tpu.dot_dimension_numbers<[1], [0], [0], [1], [0, 0, 1, 1], [], []>} : vector<56x256xbf16>, vector<256x512xbf16>, vector<56x512xf32> -> vector<56x512xf32>
    %81 = arith.addf %75, %80 : vector<56x512xf32>
    %82 = vector.extract_strided_slice %70 {offsets = [2, 0, 0], sizes = [7, 8, 256], strides = [1, 1, 1]} : vector<9x8x256xbf16> to vector<7x8x256xbf16>
    %83 = vector.shape_cast %82 : vector<7x8x256xbf16> to vector<56x256xbf16>
    %c2_39 = arith.constant 2 : index
    %c0_40 = arith.constant 0 : index
    %c0_41 = arith.constant 0 : index
    %84 = vector.load %arg6[%c2_39, %c0_40, %c0_41] : memref<3x256x512xbf16, #tpu.memory_space<vmem>>, vector<1x256x512xbf16>
    %85 = vector.shape_cast %84 : vector<1x256x512xbf16> to vector<256x512xbf16>
    %cst_42 = arith.constant dense<0.000000e+00> : vector<56x512xf32>
    %86 = tpu.matmul %83, %85, %cst_42 {dimension_numbers = #tpu.dot_dimension_numbers<[1], [0], [0], [1], [0, 0, 1, 1], [], []>} : vector<56x256xbf16>, vector<256x512xbf16>, vector<56x512xf32> -> vector<56x512xf32>
    %87 = arith.addf %81, %86 : vector<56x512xf32>
    %c0_43 = arith.constant 0 : index
    %c0_44 = arith.constant 0 : index
    %88 = vector.load %arg7[%c0_43, %c0_44] : memref<1x512xf32, #tpu.memory_space<vmem>>, vector<1x512xf32>
    %89 = vector.broadcast %88 : vector<1x512xf32> to vector<56x512xf32>
    %90 = arith.addf %87, %89 : vector<56x512xf32>
    %cst_45 = arith.constant 0.000000e+00 : f32
    %91 = vector.broadcast %cst_45 : f32 to vector<56x512xf32>
    %92 = arith.maximumf %90, %91 : vector<56x512xf32>
    %93 = vector.shape_cast %92 : vector<56x512xf32> to vector<7x8x512xf32>
    %94 = vector.extract_strided_slice %93 {offsets = [0, 0, 0], sizes = [6, 8, 512], strides = [1, 1, 1]} : vector<7x8x512xf32> to vector<6x8x512xf32>
    %95 = vector.shape_cast %94 : vector<6x8x512xf32> to vector<3x2x8x512xf32>
    %96 = vector.extract_strided_slice %95 {offsets = [0, 0, 0, 0], sizes = [3, 1, 8, 512], strides = [1, 1, 1, 1]} : vector<3x2x8x512xf32> to vector<3x1x8x512xf32>
    %97 = vector.shape_cast %96 : vector<3x1x8x512xf32> to vector<3x8x512xf32>
    %98 = vector.extract_strided_slice %95 {offsets = [0, 1, 0, 0], sizes = [3, 1, 8, 512], strides = [1, 1, 1, 1]} : vector<3x2x8x512xf32> to vector<3x1x8x512xf32>
    %99 = vector.shape_cast %98 : vector<3x1x8x512xf32> to vector<3x8x512xf32>
    %100 = arith.maximumf %97, %99 : vector<3x8x512xf32>
    %101 = vector.extract_strided_slice %100 {offsets = [0, 0, 0], sizes = [3, 8, 256], strides = [1, 1, 1]} : vector<3x8x512xf32> to vector<3x8x256xf32>
    %102 = vector.extract_strided_slice %100 {offsets = [0, 0, 256], sizes = [3, 8, 256], strides = [1, 1, 1]} : vector<3x8x512xf32> to vector<3x8x256xf32>
    %103 = arith.maximumf %101, %102 : vector<3x8x256xf32>
    %104 = arith.truncf %103 : vector<3x8x256xf32> to vector<3x8x256xbf16>
    %c0_46 = arith.constant 0 : index
    %c0_47 = arith.constant 0 : index
    %105 = vector.load %arg9[%c0_46, %c0_47] : memref<1x256xf32, #tpu.memory_space<vmem>>, vector<1x256xf32>
    %106 = vector.extract_strided_slice %104 {offsets = [0, 0, 0], sizes = [1, 8, 256], strides = [1, 1, 1]} : vector<3x8x256xbf16> to vector<1x8x256xbf16>
    %107 = vector.shape_cast %106 : vector<1x8x256xbf16> to vector<8x256xbf16>
    %c0_48 = arith.constant 0 : index
    %c0_49 = arith.constant 0 : index
    %c0_50 = arith.constant 0 : index
    %108 = vector.load %arg8[%c0_48, %c0_49, %c0_50] : memref<3x256x256xbf16, #tpu.memory_space<vmem>>, vector<1x256x256xbf16>
    %109 = vector.shape_cast %108 : vector<1x256x256xbf16> to vector<256x256xbf16>
    %cst_51 = arith.constant dense<0.000000e+00> : vector<8x256xf32>
    %110 = tpu.matmul %107, %109, %cst_51 {dimension_numbers = #tpu.dot_dimension_numbers<[1], [0], [0], [1], [0, 0, 1, 1], [], []>} : vector<8x256xbf16>, vector<256x256xbf16>, vector<8x256xf32> -> vector<8x256xf32>
    %111 = vector.broadcast %105 : vector<1x256xf32> to vector<8x256xf32>
    %112 = arith.addf %111, %110 : vector<8x256xf32>
    %113 = vector.extract_strided_slice %104 {offsets = [1, 0, 0], sizes = [1, 8, 256], strides = [1, 1, 1]} : vector<3x8x256xbf16> to vector<1x8x256xbf16>
    %114 = vector.shape_cast %113 : vector<1x8x256xbf16> to vector<8x256xbf16>
    %c1_52 = arith.constant 1 : index
    %c0_53 = arith.constant 0 : index
    %c0_54 = arith.constant 0 : index
    %115 = vector.load %arg8[%c1_52, %c0_53, %c0_54] : memref<3x256x256xbf16, #tpu.memory_space<vmem>>, vector<1x256x256xbf16>
    %116 = vector.shape_cast %115 : vector<1x256x256xbf16> to vector<256x256xbf16>
    %cst_55 = arith.constant dense<0.000000e+00> : vector<8x256xf32>
    %117 = tpu.matmul %114, %116, %cst_55 {dimension_numbers = #tpu.dot_dimension_numbers<[1], [0], [0], [1], [0, 0, 1, 1], [], []>} : vector<8x256xbf16>, vector<256x256xbf16>, vector<8x256xf32> -> vector<8x256xf32>
    %118 = arith.addf %112, %117 : vector<8x256xf32>
    %119 = vector.extract_strided_slice %104 {offsets = [2, 0, 0], sizes = [1, 8, 256], strides = [1, 1, 1]} : vector<3x8x256xbf16> to vector<1x8x256xbf16>
    %120 = vector.shape_cast %119 : vector<1x8x256xbf16> to vector<8x256xbf16>
    %c2_56 = arith.constant 2 : index
    %c0_57 = arith.constant 0 : index
    %c0_58 = arith.constant 0 : index
    %121 = vector.load %arg8[%c2_56, %c0_57, %c0_58] : memref<3x256x256xbf16, #tpu.memory_space<vmem>>, vector<1x256x256xbf16>
    %122 = vector.shape_cast %121 : vector<1x256x256xbf16> to vector<256x256xbf16>
    %cst_59 = arith.constant dense<0.000000e+00> : vector<8x256xf32>
    %123 = tpu.matmul %120, %122, %cst_59 {dimension_numbers = #tpu.dot_dimension_numbers<[1], [0], [0], [1], [0, 0, 1, 1], [], []>} : vector<8x256xbf16>, vector<256x256xbf16>, vector<8x256xf32> -> vector<8x256xf32>
    %124 = arith.addf %118, %123 : vector<8x256xf32>
    %125 = arith.truncf %124 : vector<8x256xf32> to vector<8x256xbf16>
    %c0_60 = arith.constant 0 : index
    %c0_61 = arith.constant 0 : index
    %126 = vector.load %arg10[%c0_60, %c0_61] : memref<256x128xbf16, #tpu.memory_space<vmem>>, vector<256x128xbf16>
    %cst_62 = arith.constant dense<0.000000e+00> : vector<8x128xf32>
    %127 = tpu.matmul %125, %126, %cst_62 {dimension_numbers = #tpu.dot_dimension_numbers<[1], [0], [0], [1], [0, 0, 1, 1], [], []>} : vector<8x256xbf16>, vector<256x128xbf16>, vector<8x128xf32> -> vector<8x128xf32>
    %c0_63 = arith.constant 0 : index
    %c0_64 = arith.constant 0 : index
    %128 = vector.load %arg11[%c0_63, %c0_64] : memref<1x128xf32, #tpu.memory_space<vmem>>, vector<1x128xf32>
    %129 = vector.broadcast %128 : vector<1x128xf32> to vector<8x128xf32>
    %130 = arith.addf %127, %129 : vector<8x128xf32>
    %c0_65 = arith.constant 0 : index
    %c0_66 = arith.constant 0 : index
    %131 = vector.load %arg12[%c0_65, %c0_66] : memref<8x128xf32, #tpu.memory_space<vmem>>, vector<8x128xf32>
    tpu.vector_store %arg12[%c0_65, %c0_66], %130 {strides = array<i32>} : memref<8x128xf32, #tpu.memory_space<vmem>>, vector<8x128xf32>,
    return
  }
  func.func @transform_0(%arg0: i32) -> (i32, i32, i32) {
    %c0_i32 = arith.constant 0 : i32
    %c0_i32_0 = arith.constant 0 : i32
    %c0_i32_1 = arith.constant 0 : i32
    return %c0_i32, %arg0, %c0_i32_0 : i32, i32, i32
  }
  func.func @transform_1(%arg0: i32) -> (i32, i32, i32) {
    %c0_i32 = arith.constant 0 : i32
    %c0_i32_0 = arith.constant 0 : i32
    %c0_i32_1 = arith.constant 0 : i32
    %c0_i32_2 = arith.constant 0 : i32
    return %c0_i32, %c0_i32_0, %c0_i32_1 : i32, i32, i32
  }
  func.func @transform_2(%arg0: i32) -> (i32, i32) {
    %c0_i32 = arith.constant 0 : i32
    %c0_i32_0 = arith.constant 0 : i32
    %c0_i32_1 = arith.constant 0 : i32
    return %c0_i32, %c0_i32_0 : i32, i32
  }
  func.func @transform_3(%arg0: i32) -> (i32, i32, i32) {
    %c0_i32 = arith.constant 0 : i32
    %c0_i32_0 = arith.constant 0 : i32
    %c0_i32_1 = arith.constant 0 : i32
    %c0_i32_2 = arith.constant 0 : i32
    return %c0_i32, %c0_i32_0, %c0_i32_1 : i32, i32, i32
  }
  func.func @transform_4(%arg0: i32) -> (i32, i32) {
    %c0_i32 = arith.constant 0 : i32
    %c0_i32_0 = arith.constant 0 : i32
    %c0_i32_1 = arith.constant 0 : i32
    return %c0_i32, %c0_i32_0 : i32, i32
  }
  func.func @transform_5(%arg0: i32) -> (i32, i32, i32) {
    %c0_i32 = arith.constant 0 : i32
    %c0_i32_0 = arith.constant 0 : i32
    %c0_i32_1 = arith.constant 0 : i32
    %c0_i32_2 = arith.constant 0 : i32
    return %c0_i32, %c0_i32_0, %c0_i32_1 : i32, i32, i32
  }
  func.func @transform_6(%arg0: i32) -> (i32, i32) {
    %c0_i32 = arith.constant 0 : i32
    %c0_i32_0 = arith.constant 0 : i32
    %c0_i32_1 = arith.constant 0 : i32
    return %c0_i32, %c0_i32_0 : i32, i32
  }
  func.func @transform_7(%arg0: i32) -> (i32, i32, i32) {
    %c0_i32 = arith.constant 0 : i32
    %c0_i32_0 = arith.constant 0 : i32
    %c0_i32_1 = arith.constant 0 : i32
    %c0_i32_2 = arith.constant 0 : i32
    return %c0_i32, %c0_i32_0, %c0_i32_1 : i32, i32, i32
  }
  func.func @transform_8(%arg0: i32) -> (i32, i32) {
    %c0_i32 = arith.constant 0 : i32
    %c0_i32_0 = arith.constant 0 : i32
    %c0_i32_1 = arith.constant 0 : i32
    return %c0_i32, %c0_i32_0 : i32, i32
  }
  func.func @transform_9(%arg0: i32) -> (i32, i32) {
    %c0_i32 = arith.constant 0 : i32
    %c0_i32_0 = arith.constant 0 : i32
    %c0_i32_1 = arith.constant 0 : i32
    return %c0_i32, %c0_i32_0 : i32, i32
  }
  func.func @transform_10(%arg0: i32) -> (i32, i32) {
    %c0_i32 = arith.constant 0 : i32
    %c0_i32_0 = arith.constant 0 : i32
    %c0_i32_1 = arith.constant 0 : i32
    return %c0_i32, %c0_i32_0 : i32, i32
  }
  func.func @transform_11(%arg0: i32) -> (i32, i32) {
    %c0_i32 = arith.constant 0 : i32
    %c0_i32_0 = arith.constant 0 : i32
    return %arg0, %c0_i32 : i32, i32
  }
}

</mosaic_0001>

<llo_original>
// kernel: net_forward.1
$region0: #{net_forward.1}
  #allocation0 [shape = 'u32[]', space=smem, size = 0x4, offset = 0x4, fixed_abs, tag = 'smem constant byte address 0x4 - core index']
  #allocation1 [shape = 'u32[144,128]{1,0:T(1,128)}', space=vmem, size = 0x12000, scoped, tag = 'internal scratch']
  %s0 = inlined_call_operand.vmem [shape: bf16[30,8,28], index: 0, kind: input, shape index: {}]
  %s1 = inlined_call_operand.vmem [shape: bf16[3,28,512], index: 1, kind: input, shape index: {}]
  %s2 = inlined_call_operand.vmem [shape: f32[1,512], index: 2, kind: input, shape index: {}]
  %s3 = inlined_call_operand.hbm [shape: bf16[3,256,512], index: 3, kind: input, shape index: {}]
  %s4 = inlined_call_operand.vmem [shape: f32[1,512], index: 4, kind: input, shape index: {}]
  %s5 = inlined_call_operand.hbm [shape: bf16[3,256,512], index: 5, kind: input, shape index: {}]
  %s6 = inlined_call_operand.vmem [shape: f32[1,512], index: 6, kind: input, shape index: {}]
  %s7 = inlined_call_operand.hbm [shape: bf16[3,256,256], index: 7, kind: input, shape index: {}]
  %s8 = inlined_call_operand.vmem [shape: f32[1,256], index: 8, kind: input, shape index: {}]
  %s9 = inlined_call_operand.hbm [shape: bf16[256,128], index: 9, kind: input, shape index: {}]
  %s10 = inlined_call_operand.vmem [shape: f32[1,128], index: 10, kind: input, shape index: {}]
  %s11 = inlined_call_operand.vmem [shape: f32[8,128], index: 11, kind: output, shape index: {}]
  %s12 = sld [smem:[#allocation0]]
  $region70: #{net_forward.1} parent=0
    _
  %s14 = ssub.s32 1, %s12
  %s15 = scalar_select 0, %s14, %s12
  $region1: #{net_forward.1} parent=0
    #allocation2 [shape = 'u8[786432]{0}', space=vmem, size = 0xc0000, scoped, tag = 'input window, operand 3, single buffered']
    #allocation3 [shape = 's32[1]{0}', space=sflag, size = 0x4, scoped, tag = 'scoped memory for net_forward.1']
    #allocation4 [shape = 'u8[786432]{0}', space=vmem, size = 0xc0000, scoped, tag = 'input window, operand 5, single buffered']
    #allocation5 [shape = 's32[1]{0}', space=sflag, size = 0x4, scoped, tag = 'scoped memory for net_forward.1']
    #allocation6 [shape = 'u8[393216]{0}', space=vmem, size = 0x60000, scoped, tag = 'input window, operand 7, single buffered']
    #allocation7 [shape = 'u8[65536]{0}', space=vmem, size = 0x10000, scoped, tag = 'input window, operand 9, single buffered']
    #allocation8 [shape = 's32[1]{0}', space=sflag, size = 0x4, scoped, tag = 'scoped memory for net_forward.1']
    %16 = vsyncpa [#allocation3], 0
    %17 = vsyncpa [#allocation5], 0
    %18 = vsyncpa [#allocation8], 0
    // Predicated region
    $region2: #{net_forward.1} parent=1 // pred_check
      _
    $region3: #{net_forward.1} parent=1 // pred_check_branch
      %20 = sbr.rel (0) target = $region5
    $region4: #{net_forward.1} parent=1 // pred_region
      _
    $region5: #{net_forward.1} parent=1 // pred_fallthru
      _
    // Predicated region
    $region6: #{net_forward.1} parent=1 // pred_check
      _
    $region7: #{net_forward.1} parent=1 // pred_check_branch
      %22 = sbr.rel (0) target = $region9
    $region8: #{net_forward.1} parent=1 // pred_region
      _
    $region9: #{net_forward.1} parent=1 // pred_fallthru
      _
    // Predicated region
    $region10: #{net_forward.1} parent=1 // pred_check
      _
    $region11: #{net_forward.1} parent=1 // pred_check_branch
      %24 = sbr.rel (0) target = $region13
    $region12: #{net_forward.1} parent=1 // pred_region
      _
    $region13: #{net_forward.1} parent=1 // pred_fallthru
      _
    // Predicated region
    $region14: #{net_forward.1} parent=1 // pred_check
      _
    $region15: #{net_forward.1} parent=1 // pred_check_branch
      %26 = sbr.rel (0) target = $region17
    $region16: #{net_forward.1} parent=1 // pred_region
      %s28 = ssub.s32 24576, 24576
      %29 = vsyncadd [#allocation3], %s28
      %s30 = sshll.u32 [#allocation2], 4
      %s31 = int_to_ptr.vmem [resolvable:$true] %s30
      %36 = dma.hbm_to_vmem [thread:$0]  %s3, 24576, %s31, [#allocation3], 256, 256, 16
    $region17: #{net_forward.1} parent=1 // pred_fallthru
      _
    // Predicated region
    $region18: #{net_forward.1} parent=1 // pred_check
      _
    $region19: #{net_forward.1} parent=1 // pred_check_branch
      %38 = sbr.rel (0) target = $region21
    $region20: #{net_forward.1} parent=1 // pred_region
      _
    $region21: #{net_forward.1} parent=1 // pred_fallthru
      _
    // Predicated region
    $region22: #{net_forward.1} parent=1 // pred_check
      _
    $region23: #{net_forward.1} parent=1 // pred_check_branch
      %40 = sbr.rel (0) target = $region25
    $region24: #{net_forward.1} parent=1 // pred_region
      %s42 = ssub.s32 24576, 24576
      %43 = vsyncadd [#allocation5], %s42
      %s44 = sshll.u32 [#allocation4], 4
      %s45 = int_to_ptr.vmem [resolvable:$true] %s44
      %50 = dma.hbm_to_vmem [thread:$0]  %s5, 24576, %s45, [#allocation5], 256, 256, 16
    $region25: #{net_forward.1} parent=1 // pred_fallthru
      _
    // Predicated region
    $region26: #{net_forward.1} parent=1 // pred_check
      _
    $region27: #{net_forward.1} parent=1 // pred_check_branch
      %52 = sbr.rel (0) target = $region29
    $region28: #{net_forward.1} parent=1 // pred_region
      _
    $region29: #{net_forward.1} parent=1 // pred_fallthru
      _
    // Predicated region
    $region30: #{net_forward.1} parent=1 // pred_check
      _
    $region31: #{net_forward.1} parent=1 // pred_check_branch
      %54 = sbr.rel (0) target = $region33
    $region32: #{net_forward.1} parent=1 // pred_region
      %s56 = ssub.s32 12288, 12288
      %57 = vsyncadd [#allocation5], %s56
      %s58 = sshll.u32 [#allocation6], 4
      %s59 = int_to_ptr.vmem [resolvable:$true] %s58
      %64 = dma.hbm_to_vmem [thread:$0]  %s7, 12288, %s59, [#allocation5], 128, 128, 8
    $region33: #{net_forward.1} parent=1 // pred_fallthru
      _
    // Predicated region
    $region34: #{net_forward.1} parent=1 // pred_check
      _
    $region35: #{net_forward.1} parent=1 // pred_check_branch
      %66 = sbr.rel (0) target = $region37
    $region36: #{net_forward.1} parent=1 // pred_region
      _
    $region37: #{net_forward.1} parent=1 // pred_fallthru
      _
    // Predicated region
    $region38: #{net_forward.1} parent=1 // pred_check
      _
    $region39: #{net_forward.1} parent=1 // pred_check_branch
      %68 = sbr.rel (0) target = $region41
    $region40: #{net_forward.1} parent=1 // pred_region
      %s70 = ssub.s32 2048, 2048
      %71 = vsyncadd [#allocation8], %s70
      %s72 = sshll.u32 [#allocation7], 4
      %s73 = int_to_ptr.vmem [resolvable:$true] %s72
      %78 = dma.hbm_to_vmem [thread:$0]  %s9, 2048, %s73, [#allocation8], 64, 64, 4
    $region41: #{net_forward.1} parent=1 // pred_fallthru
      _
    // Predicated region
    $region42: #{net_forward.1} parent=1 // pred_check
      _
    $region43: #{net_forward.1} parent=1 // pred_check_branch
      %80 = sbr.rel (0) target = $region45
    $region44: #{net_forward.1} parent=1 // pred_region
      _
    $region45: #{net_forward.1} parent=1 // pred_fallthru
      _
    // Predicated region
    $region46: #{net_forward.1} parent=1 // pred_check
      _
    $region47: #{net_forward.1} parent=1 // pred_check_branch
      %82 = sbr.rel (0) target = $region49
    $region48: #{net_forward.1} parent=1 // pred_region
      %83 = dma.done [#allocation3], 24576
    $region49: #{net_forward.1} parent=1 // pred_fallthru
      _
    // Predicated region
    $region50: #{net_forward.1} parent=1 // pred_check
      _
    $region51: #{net_forward.1} parent=1 // pred_check_branch
      %85 = sbr.rel (0) target = $region53
    $region52: #{net_forward.1} parent=1 // pred_region
      %86 = dma.done [#allocation5], 24576
    $region53: #{net_forward.1} parent=1 // pred_fallthru
      _
    // Predicated region
    $region54: #{net_forward.1} parent=1 // pred_check
      _
    $region55: #{net_forward.1} parent=1 // pred_check_branch
      %88 = sbr.rel (0) target = $region57
    $region56: #{net_forward.1} parent=1 // pred_region
      %89 = dma.done [#allocation5], 12288
    $region57: #{net_forward.1} parent=1 // pred_fallthru
      _
    // Predicated region
    $region58: #{net_forward.1} parent=1 // pred_check
      _
    $region59: #{net_forward.1} parent=1 // pred_check_branch
      %91 = sbr.rel (0) target = $region61
    $region60: #{net_forward.1} parent=1 // pred_region
      %92 = dma.done [#allocation8], 2048
    $region61: #{net_forward.1} parent=1 // pred_fallthru
      _
    %v94 = vld [vmem:[%s0] sm:$0xf]
    %v95 = vld [vmem:[%s0 + $0x4] sm:$0xf]
    %v96 = vld [vmem:[%s0 + $0x8] sm:$0xf]
    %v97 = vld [vmem:[%s0 + $0xc] sm:$0xf]
    %v98 = vld [vmem:[%s0 + $0x10] sm:$0xf]
    %v99 = vld [vmem:[%s0 + $0x14] sm:$0xf]
    %v100 = vld [vmem:[%s0 + $0x18] sm:$0xf]
    %v101 = vld [vmem:[%s0 + $0x1c] sm:$0xf]
    %v102 = vld [vmem:[%s0 + $0x20] sm:$0xf]
    %v103 = vld [vmem:[%s0 + $0x24] sm:$0xf]
    %v104 = vld [vmem:[%s0 + $0x28] sm:$0xf]
    %v105 = vld [vmem:[%s0 + $0x2c] sm:$0xf]
    %v106 = vld [vmem:[%s0 + $0x30] sm:$0xf]
    %v107 = vld [vmem:[%s0 + $0x34] sm:$0xf]
    %v108 = vld [vmem:[%s0 + $0x38] sm:$0xf]
    %v109 = vld [vmem:[%s0 + $0x3c] sm:$0xf]
    %v110 = vld [vmem:[%s0 + $0x40] sm:$0xf]
    %v111 = vld [vmem:[%s0 + $0x44] sm:$0xf]
    %v112 = vld [vmem:[%s0 + $0x48] sm:$0xf]
    %v113 = vld [vmem:[%s0 + $0x4c] sm:$0xf]
    %v114 = vld [vmem:[%s0 + $0x50] sm:$0xf]
    %v115 = vld [vmem:[%s0 + $0x54] sm:$0xf]
    %v116 = vld [vmem:[%s0 + $0x58] sm:$0xf]
    %v117 = vld [vmem:[%s0 + $0x5c] sm:$0xf]
    %v118 = vld [vmem:[%s0 + $0x60] sm:$0xf]
    %v119 = vld [vmem:[%s0 + $0x64] sm:$0xf]
    %v120 = vld [vmem:[%s0 + $0x68] sm:$0xf]
    %v121 = vld [vmem:[%s0 + $0x6c] sm:$0xf]
    %v122 = vld [vmem:[%s0 + $0x70] sm:$0xf]
    %v123 = vld [vmem:[%s0 + $0x74] sm:$0xf]
    %v124 = vld [vmem:[%s1] sm:$0xff]
    %v125 = vld [vmem:[%s1 + $0x8] sm:$0xff]
    %v126 = vld [vmem:[%s1 + $0x10] sm:$0xff]
    %v127 = vld [vmem:[%s1 + $0x18] sm:$0xff]
    %v128 = vld [vmem:[%s1 + $0x20] sm:$0xff]
    %v129 = vld [vmem:[%s1 + $0x28] sm:$0xff]
    %v130 = vld [vmem:[%s1 + $0x30] sm:$0x33]
    %v131 = vld [vmem:[%s1 + $0x38] sm:$0x33]
    %s132 = scalar_lea.vmem %s1, 64
    %v133 = vld [vmem:[%s132] sm:$0xff]
    %v134 = vld [vmem:[%s132 + $0x8] sm:$0xff]
    %v135 = vld [vmem:[%s132 + $0x10] sm:$0xff]
    %v136 = vld [vmem:[%s132 + $0x18] sm:$0xff]
    %v137 = vld [vmem:[%s132 + $0x20] sm:$0xff]
    %v138 = vld [vmem:[%s132 + $0x28] sm:$0xff]
    %v139 = vld [vmem:[%s132 + $0x30] sm:$0x33]
    %v140 = vld [vmem:[%s132 + $0x38] sm:$0x33]
    %v169 = vunpack.c.l.b16 %v95
    %v170 = vunpack.c.l.b16 %v96
    %v171 = vunpack.c.l.b16 %v97
    %v172 = vunpack.c.l.b16 %v98
    %v173 = vunpack.c.l.b16 %v99
    %v174 = vunpack.c.l.b16 %v100
    %v175 = vunpack.c.l.b16 %v101
    %v176 = vunpack.c.l.b16 %v102
    %v177 = vunpack.c.l.b16 %v103
    %v178 = vunpack.c.l.b16 %v104
    %v179 = vunpack.c.l.b16 %v105
    %v180 = vunpack.c.l.b16 %v106
    %v181 = vunpack.c.l.b16 %v107
    %v182 = vunpack.c.l.b16 %v108
    %v183 = vunpack.c.l.b16 %v109
    %v184 = vunpack.c.l.b16 %v110
    %v185 = vunpack.c.l.b16 %v111
    %v186 = vunpack.c.l.b16 %v112
    %v187 = vunpack.c.l.b16 %v113
    %v188 = vunpack.c.l.b16 %v114
    %v189 = vunpack.c.l.b16 %v115
    %v190 = vunpack.c.l.b16 %v116
    %v191 = vunpack.c.l.b16 %v117
    %v192 = vunpack.c.l.b16 %v118
    %v193 = vunpack.c.l.b16 %v119
    %v194 = vunpack.c.l.b16 %v120
    %v195 = vunpack.c.l.b16 %v121
    %v196 = vunpack.c.l.b16 %v122
    %v197 = vpack.c.b16 %v170, %v169
    %v198 = vpack.c.b16 %v172, %v171
    %v199 = vpack.c.b16 %v174, %v173
    %v200 = vpack.c.b16 %v176, %v175
    %v201 = vpack.c.b16 %v178, %v177
    %v202 = vpack.c.b16 %v180, %v179
    %v203 = vpack.c.b16 %v182, %v181
    %v204 = vpack.c.b16 %v184, %v183
    %v205 = vpack.c.b16 %v186, %v185
    %v206 = vpack.c.b16 %v188, %v187
    %v207 = vpack.c.b16 %v190, %v189
    %v208 = vpack.c.b16 %v192, %v191
    %v209 = vpack.c.b16 %v194, %v193
    %v210 = vpack.c.b16 %v196, %v195
    %v219 = vunpack.c.l.b16 %v133
    %v220 = vunpack.c.h.b16 %v133
    %v221 = vunpack.c.l.b16 %v134
    %v222 = vunpack.c.h.b16 %v134
    %v223 = vunpack.c.l.b16 %v135
    %v224 = vunpack.c.h.b16 %v135
    %v225 = vunpack.c.l.b16 %v136
    %v226 = vunpack.c.h.b16 %v136
    %v227 = vunpack.c.l.b16 %v137
    %v228 = vunpack.c.h.b16 %v137
    %v229 = vunpack.c.l.b16 %v138
    %v230 = vunpack.c.h.b16 %v138
    %v231 = vunpack.c.l.b16 %v139
    %v232 = vunpack.c.h.b16 %v139
    %v233 = vunpack.c.l.b16 %v140
    %v234 = vunpack.c.h.b16 %v140
    %v235 = vpack.c.b16 %v223, %v219
    %v236 = vpack.c.b16 %v224, %v220
    %v237 = vpack.c.b16 %v225, %v221
    %v238 = vpack.c.b16 %v226, %v222
    %v239 = vpack.c.b16 %v231, %v227
    %v240 = vpack.c.b16 %v232, %v228
    %v241 = vpack.c.b16 %v233, %v229
    %v242 = vpack.c.b16 %v234, %v230
    %vm247 = vcmask 228352
    %v249 = vsel %vm247, %v197, 0
    %v252 = vsel %vm247, %v198, 0
    %v255 = vsel %vm247, %v199, 0
    %v258 = vsel %vm247, %v200, 0
    %v261 = vsel %vm247, %v201, 0
    %v264 = vsel %vm247, %v202, 0
    %v267 = vsel %vm247, %v203, 0
    %v270 = vsel %vm247, %v204, 0
    %v273 = vsel %vm247, %v205, 0
    %v276 = vsel %vm247, %v206, 0
    %v279 = vsel %vm247, %v207, 0
    %v282 = vsel %vm247, %v208, 0
    %v285 = vsel %vm247, %v209, 0
    %v288 = vsel %vm247, %v210, 0
    %vm290 = vcmask 1045504
    %v292 = vsel %vm290, %v239, 0
    %v295 = vsel %vm290, %v240, 0
    %v298 = vsel %vm290, %v241, 0
    %v301 = vsel %vm290, %v242, 0
    %303 = vmatprep.subr.bf16.mxu0 %v236
    %304 = vmatpush1.bf16.msra.mxu0 %v235
    %305 = vmatprep.subr.bf16.mxu0 %v295
    %306 = vmatpush1.bf16.msra.mxu0 %v292
    %307 = vmatprep.subr.bf16.mxu0 0
    %308 = vmatpush1.bf16.msra.mxu0 0
    %309 = vmatprep.subr.bf16.mxu0 0
    %310 = vmatpush1.bf16.msra.mxu0 0
    %311 = vmatprep.subr.bf16.mxu0 0
    %312 = vmatpush1.bf16.msra.mxu0 0
    %313 = vmatprep.subr.bf16.mxu0 0
    %314 = vmatpush1.bf16.msra.mxu0 0
    %315 = vmatprep.subr.bf16.mxu0 0
    %316 = vmatpush1.bf16.msra.mxu0 0
    %317 = vmatprep.subr.bf16.mxu0 0
    %318 = vmatpush1.bf16.msra.mxu0 0
    %319 = vmatprep.subr.bf16.mxu0 0
    %320 = vmatpush1.bf16.msra.mxu0 0
    %321 = vmatprep.subr.bf16.mxu0 0
    %322 = vmatpush1.bf16.msra.mxu0 0
    %323 = vmatprep.subr.bf16.mxu0 0
    %324 = vmatpush1.bf16.msra.mxu0 0
    %325 = vmatprep.subr.bf16.mxu0 0
    %326 = vmatpush1.bf16.msra.mxu0 0
    %327 = vmatprep.subr.bf16.mxu0 0
    %328 = vmatpush1.bf16.msra.mxu0 0
    %329 = vmatprep.subr.bf16.mxu0 0
    %330 = vmatpush1.bf16.msra.mxu0 0
    %331 = vmatprep.subr.bf16.mxu0 0
    %332 = vmatpush1.bf16.msra.mxu0 0
    %333 = vmatprep.subr.bf16.mxu0 0
    %334 = vmatpush1.bf16.msra.mxu0 0
    %335 = vmatprep.mubr.bf16.mxu0 0
    %336 = vmatmul.mubr.bf16.gmra.mrb[0].mxu0 %v249
    %v337 = vpop.f32.mrb[0].mxu0
    %v338 = vadd.f32 0.0, %v337
    %v339 = vpop.f32.mrb[0].mxu0
    %v340 = vadd.f32 0.0, %v339
    %v341 = vpop.f32.mrb[0].mxu0
    %v342 = vadd.f32 0.0, %v341
    %v343 = vpop.f32.mrb[0].mxu0
    %v344 = vadd.f32 0.0, %v343
    %345 = vmatprep.mubr.bf16.mxu0 0
    %346 = vmatmul.mubr.bf16.gmra.mrb[0].mxu0 %v252
    %v347 = vpop.f32.mrb[0].mxu0
    %v348 = vadd.f32 0.0, %v347
    %v349 = vpop.f32.mrb[0].mxu0
    %v350 = vadd.f32 0.0, %v349
    %v351 = vpop.f32.mrb[0].mxu0
    %v352 = vadd.f32 0.0, %v351
    %v353 = vpop.f32.mrb[0].mxu0
    %v354 = vadd.f32 0.0, %v353
    %355 = vmatprep.mubr.bf16.mxu0 0
    %356 = vmatmul.mubr.bf16.gmra.mrb[0].mxu0 %v255
    %v357 = vpop.f32.mrb[0].mxu0
    %v358 = vadd.f32 0.0, %v357
    %v359 = vpop.f32.mrb[0].mxu0
    %v360 = vadd.f32 0.0, %v359
    %v361 = vpop.f32.mrb[0].mxu0
    %v362 = vadd.f32 0.0, %v361
    %v363 = vpop.f32.mrb[0].mxu0
    %v364 = vadd.f32 0.0, %v363
    %365 = vmatprep.mubr.bf16.mxu0 0
    %366 = vmatmul.mubr.bf16.gmra.mrb[0].mxu0 %v258
    %v367 = vpop.f32.mrb[0].mxu0
    %v368 = vadd.f32 0.0, %v367
    %v369 = vpop.f32.mrb[0].mxu0
    %v370 = vadd.f32 0.0, %v369
    %v371 = vpop.f32.mrb[0].mxu0
    %v372 = vadd.f32 0.0, %v371
    %v373 = vpop.f32.mrb[0].mxu0
    %v374 = vadd.f32 0.0, %v373
    %375 = vmatprep.mubr.bf16.mxu0 0
    %376 = vmatmul.mubr.bf16.gmra.mrb[0].mxu0 %v261
    %v377 = vpop.f32.mrb[0].mxu0
    %v378 = vadd.f32 0.0, %v377
    %v379 = vpop.f32.mrb[0].mxu0
    %v380 = vadd.f32 0.0, %v379
    %v381 = vpop.f32.mrb[0].mxu0
    %v382 = vadd.f32 0.0, %v381
    %v383 = vpop.f32.mrb[0].mxu0
    %v384 = vadd.f32 0.0, %v383
    %385 = vmatprep.mubr.bf16.mxu0 0
    %386 = vmatmul.mubr.bf16.gmra.mrb[0].mxu0 %v264
    %v387 = vpop.f32.mrb[0].mxu0
    %v388 = vadd.f32 0.0, %v387
    %v389 = vpop.f32.mrb[0].mxu0
    %v390 = vadd.f32 0.0, %v389
    %v391 = vpop.f32.mrb[0].mxu0
    %v392 = vadd.f32 0.0, %v391
    %v393 = vpop.f32.mrb[0].mxu0
    %v394 = vadd.f32 0.0, %v393
    %395 = vmatprep.mubr.bf16.mxu0 0
    %396 = vmatmul.mubr.bf16.gmra.mrb[0].mxu0 %v267
    %v397 = vpop.f32.mrb[0].mxu0
    %v398 = vadd.f32 0.0, %v397
    %v399 = vpop.f32.mrb[0].mxu0
    %v400 = vadd.f32 0.0, %v399
    %v401 = vpop.f32.mrb[0].mxu0
    %v402 = vadd.f32 0.0, %v401
    %v403 = vpop.f32.mrb[0].mxu0
    %v404 = vadd.f32 0.0, %v403
    %405 = vmatprep.mubr.bf16.mxu0 0
    %406 = vmatmul.mubr.bf16.gmra.mrb[0].mxu0 %v270
    %v407 = vpop.f32.mrb[0].mxu0
    %v408 = vadd.f32 0.0, %v407
    %v409 = vpop.f32.mrb[0].mxu0
    %v410 = vadd.f32 0.0, %v409
    %v411 = vpop.f32.mrb[0].mxu0
    %v412 = vadd.f32 0.0, %v411
    %v413 = vpop.f32.mrb[0].mxu0
    %v414 = vadd.f32 0.0, %v413
    %415 = vmatprep.mubr.bf16.mxu0 0
    %416 = vmatmul.mubr.bf16.gmra.mrb[0].mxu0 %v273
    %v417 = vpop.f32.mrb[0].mxu0
    %v418 = vadd.f32 0.0, %v417
    %v419 = vpop.f32.mrb[0].mxu0
    %v420 = vadd.f32 0.0, %v419
    %v421 = vpop.f32.mrb[0].mxu0
    %v422 = vadd.f32 0.0, %v421
    %v423 = vpop.f32.mrb[0].mxu0
    %v424 = vadd.f32 0.0, %v423
    %425 = vmatprep.mubr.bf16.mxu0 0
    %426 = vmatmul.mubr.bf16.gmra.mrb[0].mxu0 %v276
    %v427 = vpop.f32.mrb[0].mxu0
    %v428 = vadd.f32 0.0, %v427
    %v429 = vpop.f32.mrb[0].mxu0
    %v430 = vadd.f32 0.0, %v429
    %v431 = vpop.f32.mrb[0].mxu0
    %v432 = vadd.f32 0.0, %v431
    %v433 = vpop.f32.mrb[0].mxu0
    %v434 = vadd.f32 0.0, %v433
    %435 = vmatprep.mubr.bf16.mxu0 0
    %436 = vmatmul.mubr.bf16.gmra.mrb[0].mxu0 %v279
    %v437 = vpop.f32.mrb[0].mxu0
    %v438 = vadd.f32 0.0, %v437
    %v439 = vpop.f32.mrb[0].mxu0
    %v440 = vadd.f32 0.0, %v439
    %v441 = vpop.f32.mrb[0].mxu0
    %v442 = vadd.f32 0.0, %v441
    %v443 = vpop.f32.mrb[0].mxu0
    %v444 = vadd.f32 0.0, %v443
    %445 = vmatprep.mubr.bf16.mxu0 0
    %446 = vmatmul.mubr.bf16.gmra.mrb[0].mxu0 %v282
    %v447 = vpop.f32.mrb[0].mxu0
    %v448 = vadd.f32 0.0, %v447
    %v449 = vpop.f32.mrb[0].mxu0
    %v450 = vadd.f32 0.0, %v449
    %v451 = vpop.f32.mrb[0].mxu0
    %v452 = vadd.f32 0.0, %v451
    %v453 = vpop.f32.mrb[0].mxu0
    %v454 = vadd.f32 0.0, %v453
    %455 = vmatprep.mubr.bf16.mxu0 0
    %456 = vmatmul.mubr.bf16.gmra.mrb[0].mxu0 %v285
    %v457 = vpop.f32.mrb[0].mxu0
    %v458 = vadd.f32 0.0, %v457
    %v459 = vpop.f32.mrb[0].mxu0
    %v460 = vadd.f32 0.0, %v459
    %v461 = vpop.f32.mrb[0].mxu0
    %v462 = vadd.f32 0.0, %v461
    %v463 = vpop.f32.mrb[0].mxu0
    %v464 = vadd.f32 0.0, %v463
    %465 = vmatprep.mubr.bf16.mxu0 0
    %466 = vmatmul.mubr.bf16.gmra.mrb[0].mxu0 %v288
    %v467 = vpop.f32.mrb[0].mxu0
    %v468 = vadd.f32 0.0, %v467
    %v469 = vpop.f32.mrb[0].mxu0
    %v470 = vadd.f32 0.0, %v469
    %v471 = vpop.f32.mrb[0].mxu0
    %v472 = vadd.f32 0.0, %v471
    %v473 = vpop.f32.mrb[0].mxu0
    %v474 = vadd.f32 0.0, %v473
    %475 = vdwg.mxu0
    %476 = vmatprep.subr.bf16.mxu0 %v238
    %477 = vmatpush1.bf16.msra.mxu0 %v237
    %478 = vmatprep.subr.bf16.mxu0 %v301
    %479 = vmatpush1.bf16.msra.mxu0 %v298
    %480 = vmatprep.subr.bf16.mxu0 0
    %481 = vmatpush1.bf16.msra.mxu0 0
    %482 = vmatprep.subr.bf16.mxu0 0
    %483 = vmatpush1.bf16.msra.mxu0 0
    %484 = vmatprep.subr.bf16.mxu0 0
    %485 = vmatpush1.bf16.msra.mxu0 0
    %486 = vmatprep.subr.bf16.mxu0 0
    %487 = vmatpush1.bf16.msra.mxu0 0
    %488 = vmatprep.subr.bf16.mxu0 0
    %489 = vmatpush1.bf16.msra.mxu0 0
    %490 = vmatprep.subr.bf16.mxu0 0
    %491 = vmatpush1.bf16.msra.mxu0 0
    %492 = vmatprep.subr.bf16.mxu0 0
    %493 = vmatpush1.bf16.msra.mxu0 0
    %494 = vmatprep.subr.bf16.mxu0 0
    %495 = vmatpush1.bf16.msra.mxu0 0
    %496 = vmatprep.subr.bf16.mxu0 0
    %497 = vmatpush1.bf16.msra.mxu0 0
    %498 = vmatprep.subr.bf16.mxu0 0
    %499 = vmatpush1.bf16.msra.mxu0 0
    %500 = vmatprep.subr.bf16.mxu0 0
    %501 = vmatpush1.bf16.msra.mxu0 0
    %502 = vmatprep.subr.bf16.mxu0 0
    %503 = vmatpush1.bf16.msra.mxu0 0
    %504 = vmatprep.subr.bf16.mxu0 0
    %505 = vmatpush1.bf16.msra.mxu0 0
    %506 = vmatprep.subr.bf16.mxu0 0
    %507 = vmatpush1.bf16.msra.mxu0 0
    %508 = vmatprep.mubr.bf16.mxu0 0
    %509 = vmatmul.mubr.bf16.gmra.mrb[0].mxu0 %v249
    %v510 = vpop.f32.mrb[0].mxu0
    %v511 = vadd.f32 0.0, %v510
    %v512 = vpop.f32.mrb[0].mxu0
    %v513 = vadd.f32 0.0, %v512
    %v514 = vpop.f32.mrb[0].mxu0
    %v515 = vadd.f32 0.0, %v514
    %v516 = vpop.f32.mrb[0].mxu0
    %v517 = vadd.f32 0.0, %v516
    %518 = vmatprep.mubr.bf16.mxu0 0
    %519 = vmatmul.mubr.bf16.gmra.mrb[0].mxu0 %v252
    %v520 = vpop.f32.mrb[0].mxu0
    %v521 = vadd.f32 0.0, %v520
    %v522 = vpop.f32.mrb[0].mxu0
    %v523 = vadd.f32 0.0, %v522
    %v524 = vpop.f32.mrb[0].mxu0
    %v525 = vadd.f32 0.0, %v524
    %v526 = vpop.f32.mrb[0].mxu0
    %v527 = vadd.f32 0.0, %v526
    %528 = vmatprep.mubr.bf16.mxu0 0
    %529 = vmatmul.mubr.bf16.gmra.mrb[0].mxu0 %v255
    %v530 = vpop.f32.mrb[0].mxu0
    %v531 = vadd.f32 0.0, %v530
    %v532 = vpop.f32.mrb[0].mxu0
    %v533 = vadd.f32 0.0, %v532
    %v534 = vpop.f32.mrb[0].mxu0
    %v535 = vadd.f32 0.0, %v534
    %v536 = vpop.f32.mrb[0].mxu0
    %v537 = vadd.f32 0.0, %v536
    %538 = vmatprep.mubr.bf16.mxu0 0
    %539 = vmatmul.mubr.bf16.gmra.mrb[0].mxu0 %v258
    %v540 = vpop.f32.mrb[0].mxu0
    %v541 = vadd.f32 0.0, %v540
    %v542 = vpop.f32.mrb[0].mxu0
    %v543 = vadd.f32 0.0, %v542
    %v544 = vpop.f32.mrb[0].mxu0
    %v545 = vadd.f32 0.0, %v544
    %v546 = vpop.f32.mrb[0].mxu0
    %v547 = vadd.f32 0.0, %v546
    %548 = vmatprep.mubr.bf16.mxu0 0
    %549 = vmatmul.mubr.bf16.gmra.mrb[0].mxu0 %v261
    %v550 = vpop.f32.mrb[0].mxu0
    %v551 = vadd.f32 0.0, %v550
    %v552 = vpop.f32.mrb[0].mxu0
    %v553 = vadd.f32 0.0, %v552
    %v554 = vpop.f32.mrb[0].mxu0
    %v555 = vadd.f32 0.0, %v554
    %v556 = vpop.f32.mrb[0].mxu0
    %v557 = vadd.f32 0.0, %v556
    %558 = vmatprep.mubr.bf16.mxu0 0
    %559 = vmatmul.mubr.bf16.gmra.mrb[0].mxu0 %v264
    %v560 = vpop.f32.mrb[0].mxu0
    %v561 = vadd.f32 0.0, %v560
    %v562 = vpop.f32.mrb[0].mxu0
    %v563 = vadd.f32 0.0, %v562
    %v564 = vpop.f32.mrb[0].mxu0
    %v565 = vadd.f32 0.0, %v564
    %v566 = vpop.f32.mrb[0].mxu0
    %v567 = vadd.f32 0.0, %v566
    %568 = vmatprep.mubr.bf16.mxu0 0
    %569 = vmatmul.mubr.bf16.gmra.mrb[0].mxu0 %v267
    %v570 = vpop.f32.mrb[0].mxu0
    %v571 = vadd.f32 0.0, %v570
    %v572 = vpop.f32.mrb[0].mxu0
    %v573 = vadd.f32 0.0, %v572
    %v574 = vpop.f32.mrb[0].mxu0
    %v575 = vadd.f32 0.0, %v574
    %v576 = vpop.f32.mrb[0].mxu0
    %v577 = vadd.f32 0.0, %v576
    %578 = vmatprep.mubr.bf16.mxu0 0
    %579 = vmatmul.mubr.bf16.gmra.mrb[0].mxu0 %v270
    %v580 = vpop.f32.mrb[0].mxu0
    %v581 = vadd.f32 0.0, %v580
    %v582 = vpop.f32.mrb[0].mxu0
    %v583 = vadd.f32 0.0, %v582
    %v584 = vpop.f32.mrb[0].mxu0
    %v585 = vadd.f32 0.0, %v584
    %v586 = vpop.f32.mrb[0].mxu0
    %v587 = vadd.f32 0.0, %v586
    %588 = vmatprep.mubr.bf16.mxu0 0
    %589 = vmatmul.mubr.bf16.gmra.mrb[0].mxu0 %v273
    %v590 = vpop.f32.mrb[0].mxu0
    %v591 = vadd.f32 0.0, %v590
    %v592 = vpop.f32.mrb[0].mxu0
    %v593 = vadd.f32 0.0, %v592
    %v594 = vpop.f32.mrb[0].mxu0
    %v595 = vadd.f32 0.0, %v594
    %v596 = vpop.f32.mrb[0].mxu0
    %v597 = vadd.f32 0.0, %v596
    %598 = vmatprep.mubr.bf16.mxu0 0
    %599 = vmatmul.mubr.bf16.gmra.mrb[0].mxu0 %v276
    %v600 = vpop.f32.mrb[0].mxu0
    %v601 = vadd.f32 0.0, %v600
    %v602 = vpop.f32.mrb[0].mxu0
    %v603 = vadd.f32 0.0, %v602
    %v604 = vpop.f32.mrb[0].mxu0
    %v605 = vadd.f32 0.0, %v604
    %v606 = vpop.f32.mrb[0].mxu0
    %v607 = vadd.f32 0.0, %v606
    %608 = vmatprep.mubr.bf16.mxu0 0
    %609 = vmatmul.mubr.bf16.gmra.mrb[0].mxu0 %v279
    %v610 = vpop.f32.mrb[0].mxu0
    %v611 = vadd.f32 0.0, %v610
    %v612 = vpop.f32.mrb[0].mxu0
    %v613 = vadd.f32 0.0, %v612
    %v614 = vpop.f32.mrb[0].mxu0
    %v615 = vadd.f32 0.0, %v614
    %v616 = vpop.f32.mrb[0].mxu0
    %v617 = vadd.f32 0.0, %v616
    %618 = vmatprep.mubr.bf16.mxu0 0
    %619 = vmatmul.mubr.bf16.gmra.mrb[0].mxu0 %v282
    %v620 = vpop.f32.mrb[0].mxu0
    %v621 = vadd.f32 0.0, %v620
    %v622 = vpop.f32.mrb[0].mxu0
    %v623 = vadd.f32 0.0, %v622
    %v624 = vpop.f32.mrb[0].mxu0
    %v625 = vadd.f32 0.0, %v624
    %v626 = vpop.f32.mrb[0].mxu0
    %v627 = vadd.f32 0.0, %v626
    %628 = vmatprep.mubr.bf16.mxu0 0
    %629 = vmatmul.mubr.bf16.gmra.mrb[0].mxu0 %v285
    %v630 = vpop.f32.mrb[0].mxu0
    %v631 = vadd.f32 0.0, %v630
    %v632 = vpop.f32.mrb[0].mxu0
    %v633 = vadd.f32 0.0, %v632
    %v634 = vpop.f32.mrb[0].mxu0
    %v635 = vadd.f32 0.0, %v634
    %v636 = vpop.f32.mrb[0].mxu0
    %v637 = vadd.f32 0.0, %v636
    %638 = vmatprep.mubr.bf16.mxu0 0
    %639 = vmatmul.mubr.bf16.gmra.mrb[0].mxu0 %v288
    %v640 = vpop.f32.mrb[0].mxu0
    %v641 = vadd.f32 0.0, %v640
    %v642 = vpop.f32.mrb[0].mxu0
    %v643 = vadd.f32 0.0, %v642
    %v644 = vpop.f32.mrb[0].mxu0
    %v645 = vadd.f32 0.0, %v644
    %v646 = vpop.f32.mrb[0].mxu0
    %v647 = vadd.f32 0.0, %v646
    %648 = vdwg.mxu0
    %v650 = vunpack.c.l.b16 %v94
    %v651 = vpack.c.b16 %v169, %v650
    %v652 = vpack.c.b16 %v171, %v170
    %v653 = vpack.c.b16 %v173, %v172
    %v654 = vpack.c.b16 %v175, %v174
    %v655 = vpack.c.b16 %v177, %v176
    %v656 = vpack.c.b16 %v179, %v178
    %v657 = vpack.c.b16 %v181, %v180
    %v658 = vpack.c.b16 %v183, %v182
    %v659 = vpack.c.b16 %v185, %v184
    %v660 = vpack.c.b16 %v187, %v186
    %v661 = vpack.c.b16 %v189, %v188
    %v662 = vpack.c.b16 %v191, %v190
    %v663 = vpack.c.b16 %v193, %v192
    %v664 = vpack.c.b16 %v195, %v194
    %v673 = vunpack.c.l.b16 %v124
    %v674 = vunpack.c.h.b16 %v124
    %v675 = vunpack.c.l.b16 %v125
    %v676 = vunpack.c.h.b16 %v125
    %v677 = vunpack.c.l.b16 %v126
    %v678 = vunpack.c.h.b16 %v126
    %v679 = vunpack.c.l.b16 %v127
    %v680 = vunpack.c.h.b16 %v127
    %v681 = vunpack.c.l.b16 %v128
    %v682 = vunpack.c.h.b16 %v128
    %v683 = vunpack.c.l.b16 %v129
    %v684 = vunpack.c.h.b16 %v129
    %v685 = vunpack.c.l.b16 %v130
    %v686 = vunpack.c.h.b16 %v130
    %v687 = vunpack.c.l.b16 %v131
    %v688 = vunpack.c.h.b16 %v131
    %v689 = vpack.c.b16 %v677, %v673
    %v690 = vpack.c.b16 %v678, %v674
    %v691 = vpack.c.b16 %v679, %v675
    %v692 = vpack.c.b16 %v680, %v676
    %v693 = vpack.c.b16 %v685, %v681
    %v694 = vpack.c.b16 %v686, %v682
    %v695 = vpack.c.b16 %v687, %v683
    %v696 = vpack.c.b16 %v688, %v684
    %v702 = vsel %vm247, %v651, 0
    %v705 = vsel %vm247, %v652, 0
    %v708 = vsel %vm247, %v653, 0
    %v711 = vsel %vm247, %v654, 0
    %v714 = vsel %vm247, %v655, 0
    %v717 = vsel %vm247, %v656, 0
    %v720 = vsel %vm247, %v657, 0
    %v723 = vsel %vm247, %v658, 0
    %v726 = vsel %vm247, %v659, 0
    %v729 = vsel %vm247, %v660, 0
    %v732 = vsel %vm247, %v661, 0
    %v735 = vsel %vm247, %v662, 0
    %v738 = vsel %vm247, %v663, 0
    %v741 = vsel %vm247, %v664, 0
    %v744 = vsel %vm290, %v693, 0
    %v747 = vsel %vm290, %v694, 0
    %v750 = vsel %vm290, %v695, 0
    %v753 = vsel %vm290, %v696, 0
    %755 = vmatprep.subr.bf16.mxu0 %v690
    %756 = vmatpush1.bf16.msra.mxu0 %v689
    %757 = vmatprep.subr.bf16.mxu0 %v747
    %758 = vmatpush1.bf16.msra.mxu0 %v744
    %759 = vmatprep.subr.bf16.mxu0 0
    %760 = vmatpush1.bf16.msra.mxu0 0
    %761 = vmatprep.subr.bf16.mxu0 0
    %762 = vmatpush1.bf16.msra.mxu0 0
    %763 = vmatprep.subr.bf16.mxu0 0
    %764 = vmatpush1.bf16.msra.mxu0 0
    %765 = vmatprep.subr.bf16.mxu0 0
    %766 = vmatpush1.bf16.msra.mxu0 0
    %767 = vmatprep.subr.bf16.mxu0 0
    %768 = vmatpush1.bf16.msra.mxu0 0
    %769 = vmatprep.subr.bf16.mxu0 0
    %770 = vmatpush1.bf16.msra.mxu0 0
    %771 = vmatprep.subr.bf16.mxu0 0
    %772 = vmatpush1.bf16.msra.mxu0 0
    %773 = vmatprep.subr.bf16.mxu0 0
    %774 = vmatpush1.bf16.msra.mxu0 0
    %775 = vmatprep.subr.bf16.mxu0 0
    %776 = vmatpush1.bf16.msra.mxu0 0
    %777 = vmatprep.subr.bf16.mxu0 0
    %778 = vmatpush1.bf16.msra.mxu0 0
    %779 = vmatprep.subr.bf16.mxu0 0
    %780 = vmatpush1.bf16.msra.mxu0 0
    %781 = vmatprep.subr.bf16.mxu0 0
    %782 = vmatpush1.bf16.msra.mxu0 0
    %783 = vmatprep.subr.bf16.mxu0 0
    %784 = vmatpush1.bf16.msra.mxu0 0
    %785 = vmatprep.subr.bf16.mxu0 0
    %786 = vmatpush1.bf16.msra.mxu0 0
    %787 = vmatprep.mubr.bf16.mxu0 0
    %788 = vmatmul.mubr.bf16.gmra.mrb[0].mxu0 %v702
    %v789 = vpop.f32.mrb[0].mxu0
    %v790 = vadd.f32 %v338, %v789
    %v791 = vpop.f32.mrb[0].mxu0
    %v792 = vadd.f32 %v340, %v791
    %v793 = vpop.f32.mrb[0].mxu0
    %v794 = vadd.f32 %v342, %v793
    %v795 = vpop.f32.mrb[0].mxu0
    %v796 = vadd.f32 %v344, %v795
    %797 = vmatprep.mubr.bf16.mxu0 0
    %798 = vmatmul.mubr.bf16.gmra.mrb[0].mxu0 %v705
    %v799 = vpop.f32.mrb[0].mxu0
    %v800 = vadd.f32 %v348, %v799
    %v801 = vpop.f32.mrb[0].mxu0
    %v802 = vadd.f32 %v350, %v801
    %v803 = vpop.f32.mrb[0].mxu0
    %v804 = vadd.f32 %v352, %v803
    %v805 = vpop.f32.mrb[0].mxu0
    %v806 = vadd.f32 %v354, %v805
    %807 = vmatprep.mubr.bf16.mxu0 0
    %808 = vmatmul.mubr.bf16.gmra.mrb[0].mxu0 %v708
    %v809 = vpop.f32.mrb[0].mxu0
    %v810 = vadd.f32 %v358, %v809
    %v811 = vpop.f32.mrb[0].mxu0
    %v812 = vadd.f32 %v360, %v811
    %v813 = vpop.f32.mrb[0].mxu0
    %v814 = vadd.f32 %v362, %v813
    %v815 = vpop.f32.mrb[0].mxu0
    %v816 = vadd.f32 %v364, %v815
    %817 = vmatprep.mubr.bf16.mxu0 0
    %818 = vmatmul.mubr.bf16.gmra.mrb[0].mxu0 %v711
    %v819 = vpop.f32.mrb[0].mxu0
    %v820 = vadd.f32 %v368, %v819
    %v821 = vpop.f32.mrb[0].mxu0
    %v822 = vadd.f32 %v370, %v821
    %v823 = vpop.f32.mrb[0].mxu0
    %v824 = vadd.f32 %v372, %v823
    %v825 = vpop.f32.mrb[0].mxu0
    %v826 = vadd.f32 %v374, %v825
    %827 = vmatprep.mubr.bf16.mxu0 0
    %828 = vmatmul.mubr.bf16.gmra.mrb[0].mxu0 %v714
    %v829 = vpop.f32.mrb[0].mxu0
    %v830 = vadd.f32 %v378, %v829
    %v831 = vpop.f32.mrb[0].mxu0
    %v832 = vadd.f32 %v380, %v831
    %v833 = vpop.f32.mrb[0].mxu0
    %v834 = vadd.f32 %v382, %v833
    %v835 = vpop.f32.mrb[0].mxu0
    %v836 = vadd.f32 %v384, %v835
    %837 = vmatprep.mubr.bf16.mxu0 0
    %838 = vmatmul.mubr.bf16.gmra.mrb[0].mxu0 %v717
    %v839 = vpop.f32.mrb[0].mxu0
    %v840 = vadd.f32 %v388, %v839
    %v841 = vpop.f32.mrb[0].mxu0
    %v842 = vadd.f32 %v390, %v841
    %v843 = vpop.f32.mrb[0].mxu0
    %v844 = vadd.f32 %v392, %v843
    %v845 = vpop.f32.mrb[0].mxu0
    %v846 = vadd.f32 %v394, %v845
    %847 = vmatprep.mubr.bf16.mxu0 0
    %848 = vmatmul.mubr.bf16.gmra.mrb[0].mxu0 %v720
    %v849 = vpop.f32.mrb[0].mxu0
    %v850 = vadd.f32 %v398, %v849
    %v851 = vpop.f32.mrb[0].mxu0
    %v852 = vadd.f32 %v400, %v851
    %v853 = vpop.f32.mrb[0].mxu0
    %v854 = vadd.f32 %v402, %v853
    %v855 = vpop.f32.mrb[0].mxu0
    %v856 = vadd.f32 %v404, %v855
    %857 = vmatprep.mubr.bf16.mxu0 0
    %858 = vmatmul.mubr.bf16.gmra.mrb[0].mxu0 %v723
    %v859 = vpop.f32.mrb[0].mxu0
    %v860 = vadd.f32 %v408, %v859
    %v861 = vpop.f32.mrb[0].mxu0
    %v862 = vadd.f32 %v410, %v861
    %v863 = vpop.f32.mrb[0].mxu0
    %v864 = vadd.f32 %v412, %v863
    %v865 = vpop.f32.mrb[0].mxu0
    %v866 = vadd.f32 %v414, %v865
    %867 = vmatprep.mubr.bf16.mxu0 0
    %868 = vmatmul.mubr.bf16.gmra.mrb[0].mxu0 %v726
    %v869 = vpop.f32.mrb[0].mxu0
    %v870 = vadd.f32 %v418, %v869
    %v871 = vpop.f32.mrb[0].mxu0
    %v872 = vadd.f32 %v420, %v871
    %v873 = vpop.f32.mrb[0].mxu0
    %v874 = vadd.f32 %v422, %v873
    %v875 = vpop.f32.mrb[0].mxu0
    %v876 = vadd.f32 %v424, %v875
    %877 = vmatprep.mubr.bf16.mxu0 0
    %878 = vmatmul.mubr.bf16.gmra.mrb[0].mxu0 %v729
    %v879 = vpop.f32.mrb[0].mxu0
    %v880 = vadd.f32 %v428, %v879
    %v881 = vpop.f32.mrb[0].mxu0
    %v882 = vadd.f32 %v430, %v881
    %v883 = vpop.f32.mrb[0].mxu0
    %v884 = vadd.f32 %v432, %v883
    %v885 = vpop.f32.mrb[0].mxu0
    %v886 = vadd.f32 %v434, %v885
    %887 = vmatprep.mubr.bf16.mxu0 0
    %888 = vmatmul.mubr.bf16.gmra.mrb[0].mxu0 %v732
    %v889 = vpop.f32.mrb[0].mxu0
    %v890 = vadd.f32 %v438, %v889
    %v891 = vpop.f32.mrb[0].mxu0
    %v892 = vadd.f32 %v440, %v891
    %v893 = vpop.f32.mrb[0].mxu0
    %v894 = vadd.f32 %v442, %v893
    %v895 = vpop.f32.mrb[0].mxu0
    %v896 = vadd.f32 %v444, %v895
    %897 = vmatprep.mubr.bf16.mxu0 0
    %898 = vmatmul.mubr.bf16.gmra.mrb[0].mxu0 %v735
    %v899 = vpop.f32.mrb[0].mxu0
    %v900 = vadd.f32 %v448, %v899
    %v901 = vpop.f32.mrb[0].mxu0
    %v902 = vadd.f32 %v450, %v901
    %v903 = vpop.f32.mrb[0].mxu0
    %v904 = vadd.f32 %v452, %v903
    %v905 = vpop.f32.mrb[0].mxu0
    %v906 = vadd.f32 %v454, %v905
    %907 = vmatprep.mubr.bf16.mxu0 0
    %908 = vmatmul.mubr.bf16.gmra.mrb[0].mxu0 %v738
    %v909 = vpop.f32.mrb[0].mxu0
    %v910 = vadd.f32 %v458, %v909
    %v911 = vpop.f32.mrb[0].mxu0
    %v912 = vadd.f32 %v460, %v911
    %v913 = vpop.f32.mrb[0].mxu0
    %v914 = vadd.f32 %v462, %v913
    %v915 = vpop.f32.mrb[0].mxu0
    %v916 = vadd.f32 %v464, %v915
    %917 = vmatprep.mubr.bf16.mxu0 0
    %918 = vmatmul.mubr.bf16.gmra.mrb[0].mxu0 %v741
    %v919 = vpop.f32.mrb[0].mxu0
    %v920 = vadd.f32 %v468, %v919
    %v921 = vpop.f32.mrb[0].mxu0
    %v922 = vadd.f32 %v470, %v921
    %v923 = vpop.f32.mrb[0].mxu0
    %v924 = vadd.f32 %v472, %v923
    %v925 = vpop.f32.mrb[0].mxu0
    %v926 = vadd.f32 %v474, %v925
    %927 = vdwg.mxu0
    %928 = vmatprep.subr.bf16.mxu0 %v692
    %929 = vmatpush1.bf16.msra.mxu0 %v691
    %930 = vmatprep.subr.bf16.mxu0 %v753
    %931 = vmatpush1.bf16.msra.mxu0 %v750
    %932 = vmatprep.subr.bf16.mxu0 0
    %933 = vmatpush1.bf16.msra.mxu0 0
    %934 = vmatprep.subr.bf16.mxu0 0
    %935 = vmatpush1.bf16.msra.mxu0 0
    %936 = vmatprep.subr.bf16.mxu0 0
    %937 = vmatpush1.bf16.msra.mxu0 0
    %938 = vmatprep.subr.bf16.mxu0 0
    %939 = vmatpush1.bf16.msra.mxu0 0
    %940 = vmatprep.subr.bf16.mxu0 0
    %941 = vmatpush1.bf16.msra.mxu0 0
    %942 = vmatprep.subr.bf16.mxu0 0
    %943 = vmatpush1.bf16.msra.mxu0 0
    %944 = vmatprep.subr.bf16.mxu0 0
    %945 = vmatpush1.bf16.msra.mxu0 0
    %946 = vmatprep.subr.bf16.mxu0 0
    %947 = vmatpush1.bf16.msra.mxu0 0
    %948 = vmatprep.subr.bf16.mxu0 0
    %949 = vmatpush1.bf16.msra.mxu0 0
    %950 = vmatprep.subr.bf16.mxu0 0
    %951 = vmatpush1.bf16.msra.mxu0 0
    %952 = vmatprep.subr.bf16.mxu0 0
    %953 = vmatpush1.bf16.msra.mxu0 0
    %954 = vmatprep.subr.bf16.mxu0 0
    %955 = vmatpush1.bf16.msra.mxu0 0
    %956 = vmatprep.subr.bf16.mxu0 0
    %957 = vmatpush1.bf16.msra.mxu0 0
    %958 = vmatprep.subr.bf16.mxu0 0
    %959 = vmatpush1.bf16.msra.mxu0 0
    %960 = vmatprep.mubr.bf16.mxu0 0
    %961 = vmatmul.mubr.bf16.gmra.mrb[0].mxu0 %v702
    %v962 = vpop.f32.mrb[0].mxu0
    %v963 = vadd.f32 %v511, %v962
    %v964 = vpop.f32.mrb[0].mxu0
    %v965 = vadd.f32 %v513, %v964
    %v966 = vpop.f32.mrb[0].mxu0
    %v967 = vadd.f32 %v515, %v966
    %v968 = vpop.f32.mrb[0].mxu0
    %v969 = vadd.f32 %v517, %v968
    %970 = vmatprep.mubr.bf16.mxu0 0
    %971 = vmatmul.mubr.bf16.gmra.mrb[0].mxu0 %v705
    %v972 = vpop.f32.mrb[0].mxu0
    %v973 = vadd.f32 %v521, %v972
    %v974 = vpop.f32.mrb[0].mxu0
    %v975 = vadd.f32 %v523, %v974
    %v976 = vpop.f32.mrb[0].mxu0
    %v977 = vadd.f32 %v525, %v976
    %v978 = vpop.f32.mrb[0].mxu0
    %v979 = vadd.f32 %v527, %v978
    %980 = vmatprep.mubr.bf16.mxu0 0
    %981 = vmatmul.mubr.bf16.gmra.mrb[0].mxu0 %v708
    %v982 = vpop.f32.mrb[0].mxu0
    %v983 = vadd.f32 %v531, %v982
    %v984 = vpop.f32.mrb[0].mxu0
    %v985 = vadd.f32 %v533, %v984
    %v986 = vpop.f32.mrb[0].mxu0
    %v987 = vadd.f32 %v535, %v986
    %v988 = vpop.f32.mrb[0].mxu0
    %v989 = vadd.f32 %v537, %v988
    %990 = vmatprep.mubr.bf16.mxu0 0
    %991 = vmatmul.mubr.bf16.gmra.mrb[0].mxu0 %v711
    %v992 = vpop.f32.mrb[0].mxu0
    %v993 = vadd.f32 %v541, %v992
    %v994 = vpop.f32.mrb[0].mxu0
    %v995 = vadd.f32 %v543, %v994
    %v996 = vpop.f32.mrb[0].mxu0
    %v997 = vadd.f32 %v545, %v996
    %v998 = vpop.f32.mrb[0].mxu0
    %v999 = vadd.f32 %v547, %v998
    %1000 = vmatprep.mubr.bf16.mxu0 0
    %1001 = vmatmul.mubr.bf16.gmra.mrb[0].mxu0 %v714
    %v1002 = vpop.f32.mrb[0].mxu0
    %v1003 = vadd.f32 %v551, %v1002
    %v1004 = vpop.f32.mrb[0].mxu0
    %v1005 = vadd.f32 %v553, %v1004
    %v1006 = vpop.f32.mrb[0].mxu0
    %v1007 = vadd.f32 %v555, %v1006
    %v1008 = vpop.f32.mrb[0].mxu0
    %v1009 = vadd.f32 %v557, %v1008
    %1010 = vmatprep.mubr.bf16.mxu0 0
    %1011 = vmatmul.mubr.bf16.gmra.mrb[0].mxu0 %v717
    %v1012 = vpop.f32.mrb[0].mxu0
    %v1013 = vadd.f32 %v561, %v1012
    %v1014 = vpop.f32.mrb[0].mxu0
    %v1015 = vadd.f32 %v563, %v1014
    %v1016 = vpop.f32.mrb[0].mxu0
    %v1017 = vadd.f32 %v565, %v1016
    %v1018 = vpop.f32.mrb[0].mxu0
    %v1019 = vadd.f32 %v567, %v1018
    %1020 = vmatprep.mubr.bf16.mxu0 0
    %1021 = vmatmul.mubr.bf16.gmra.mrb[0].mxu0 %v720
    %v1022 = vpop.f32.mrb[0].mxu0
    %v1023 = vadd.f32 %v571, %v1022
    %v1024 = vpop.f32.mrb[0].mxu0
    %v1025 = vadd.f32 %v573, %v1024
    %v1026 = vpop.f32.mrb[0].mxu0
    %v1027 = vadd.f32 %v575, %v1026
    %v1028 = vpop.f32.mrb[0].mxu0
    %v1029 = vadd.f32 %v577, %v1028
    %1030 = vmatprep.mubr.bf16.mxu0 0
    %1031 = vmatmul.mubr.bf16.gmra.mrb[0].mxu0 %v723
    %v1032 = vpop.f32.mrb[0].mxu0
    %v1033 = vadd.f32 %v581, %v1032
    %v1034 = vpop.f32.mrb[0].mxu0
    %v1035 = vadd.f32 %v583, %v1034
    %v1036 = vpop.f32.mrb[0].mxu0
    %v1037 = vadd.f32 %v585, %v1036
    %v1038 = vpop.f32.mrb[0].mxu0
    %v1039 = vadd.f32 %v587, %v1038
    %1040 = vmatprep.mubr.bf16.mxu0 0
    %1041 = vmatmul.mubr.bf16.gmra.mrb[0].mxu0 %v726
    %v1042 = vpop.f32.mrb[0].mxu0
    %v1043 = vadd.f32 %v591, %v1042
    %v1044 = vpop.f32.mrb[0].mxu0
    %v1045 = vadd.f32 %v593, %v1044
    %v1046 = vpop.f32.mrb[0].mxu0
    %v1047 = vadd.f32 %v595, %v1046
    %v1048 = vpop.f32.mrb[0].mxu0
    %v1049 = vadd.f32 %v597, %v1048
    %1050 = vmatprep.mubr.bf16.mxu0 0
    %1051 = vmatmul.mubr.bf16.gmra.mrb[0].mxu0 %v729
    %v1052 = vpop.f32.mrb[0].mxu0
    %v1053 = vadd.f32 %v601, %v1052
    %v1054 = vpop.f32.mrb[0].mxu0
    %v1055 = vadd.f32 %v603, %v1054
    %v1056 = vpop.f32.mrb[0].mxu0
    %v1057 = vadd.f32 %v605, %v1056
    %v1058 = vpop.f32.mrb[0].mxu0
    %v1059 = vadd.f32 %v607, %v1058
    %1060 = vmatprep.mubr.bf16.mxu0 0
    %1061 = vmatmul.mubr.bf16.gmra.mrb[0].mxu0 %v732
    %v1062 = vpop.f32.mrb[0].mxu0
    %v1063 = vadd.f32 %v611, %v1062
    %v1064 = vpop.f32.mrb[0].mxu0
    %v1065 = vadd.f32 %v613, %v1064
    %v1066 = vpop.f32.mrb[0].mxu0
    %v1067 = vadd.f32 %v615, %v1066
    %v1068 = vpop.f32.mrb[0].mxu0
    %v1069 = vadd.f32 %v617, %v1068
    %1070 = vmatprep.mubr.bf16.mxu0 0
    %1071 = vmatmul.mubr.bf16.gmra.mrb[0].mxu0 %v735
    %v1072 = vpop.f32.mrb[0].mxu0
    %v1073 = vadd.f32 %v621, %v1072
    %v1074 = vpop.f32.mrb[0].mxu0
    %v1075 = vadd.f32 %v623, %v1074
    %v1076 = vpop.f32.mrb[0].mxu0
    %v1077 = vadd.f32 %v625, %v1076
    %v1078 = vpop.f32.mrb[0].mxu0
    %v1079 = vadd.f32 %v627, %v1078
    %1080 = vmatprep.mubr.bf16.mxu0 0
    %1081 = vmatmul.mubr.bf16.gmra.mrb[0].mxu0 %v738
    %v1082 = vpop.f32.mrb[0].mxu0
    %v1083 = vadd.f32 %v631, %v1082
    %v1084 = vpop.f32.mrb[0].mxu0
    %v1085 = vadd.f32 %v633, %v1084
    %v1086 = vpop.f32.mrb[0].mxu0
    %v1087 = vadd.f32 %v635, %v1086
    %v1088 = vpop.f32.mrb[0].mxu0
    %v1089 = vadd.f32 %v637, %v1088
    %1090 = vmatprep.mubr.bf16.mxu0 0
    %1091 = vmatmul.mubr.bf16.gmra.mrb[0].mxu0 %v741
    %v1092 = vpop.f32.mrb[0].mxu0
    %v1093 = vadd.f32 %v641, %v1092
    %v1094 = vpop.f32.mrb[0].mxu0
    %v1095 = vadd.f32 %v643, %v1094
    %v1096 = vpop.f32.mrb[0].mxu0
    %v1097 = vadd.f32 %v645, %v1096
    %v1098 = vpop.f32.mrb[0].mxu0
    %v1099 = vadd.f32 %v647, %v1098
    %1100 = vdwg.mxu0
    %s1101 = scalar_lea.vmem %s1, 128
    %v1102 = vld [vmem:[%s1101] sm:$0xff]
    %v1103 = vld [vmem:[%s1101 + $0x8] sm:$0xff]
    %v1104 = vld [vmem:[%s1101 + $0x10] sm:$0xff]
    %v1105 = vld [vmem:[%s1101 + $0x18] sm:$0xff]
    %v1106 = vld [vmem:[%s1101 + $0x20] sm:$0xff]
    %v1107 = vld [vmem:[%s1101 + $0x28] sm:$0xff]
    %v1108 = vld [vmem:[%s1101 + $0x30] sm:$0x33]
    %v1109 = vld [vmem:[%s1101 + $0x38] sm:$0x33]
    %v1111 = vunpack.c.l.b16 %v123
    %v1112 = vpack.c.b16 %v1111, %v196
    %v1121 = vunpack.c.l.b16 %v1102
    %v1122 = vunpack.c.h.b16 %v1102
    %v1123 = vunpack.c.l.b16 %v1103
    %v1124 = vunpack.c.h.b16 %v1103
    %v1125 = vunpack.c.l.b16 %v1104
    %v1126 = vunpack.c.h.b16 %v1104
    %v1127 = vunpack.c.l.b16 %v1105
    %v1128 = vunpack.c.h.b16 %v1105
    %v1129 = vunpack.c.l.b16 %v1106
    %v1130 = vunpack.c.h.b16 %v1106
    %v1131 = vunpack.c.l.b16 %v1107
    %v1132 = vunpack.c.h.b16 %v1107
    %v1133 = vunpack.c.l.b16 %v1108
    %v1134 = vunpack.c.h.b16 %v1108
    %v1135 = vunpack.c.l.b16 %v1109
    %v1136 = vunpack.c.h.b16 %v1109
    %v1137 = vpack.c.b16 %v1125, %v1121
    %v1138 = vpack.c.b16 %v1126, %v1122
    %v1139 = vpack.c.b16 %v1127, %v1123
    %v1140 = vpack.c.b16 %v1128, %v1124
    %v1141 = vpack.c.b16 %v1133, %v1129
    %v1142 = vpack.c.b16 %v1134, %v1130
    %v1143 = vpack.c.b16 %v1135, %v1131
    %v1144 = vpack.c.b16 %v1136, %v1132
    %v1150 = vsel %vm247, %v1112, 0
    %v1153 = vsel %vm290, %v1141, 0
    %v1156 = vsel %vm290, %v1142, 0
    %v1159 = vsel %vm290, %v1143, 0
    %v1162 = vsel %vm290, %v1144, 0
    %1164 = vmatprep.subr.bf16.mxu0 %v1138
    %1165 = vmatpush1.bf16.msra.mxu0 %v1137
    %1166 = vmatprep.subr.bf16.mxu0 %v1156
    %1167 = vmatpush1.bf16.msra.mxu0 %v1153
    %1168 = vmatprep.subr.bf16.mxu0 0
    %1169 = vmatpush1.bf16.msra.mxu0 0
    %1170 = vmatprep.subr.bf16.mxu0 0
    %1171 = vmatpush1.bf16.msra.mxu0 0
    %1172 = vmatprep.subr.bf16.mxu0 0
    %1173 = vmatpush1.bf16.msra.mxu0 0
    %1174 = vmatprep.subr.bf16.mxu0 0
    %1175 = vmatpush1.bf16.msra.mxu0 0
    %1176 = vmatprep.subr.bf16.mxu0 0
    %1177 = vmatpush1.bf16.msra.mxu0 0
    %1178 = vmatprep.subr.bf16.mxu0 0
    %1179 = vmatpush1.bf16.msra.mxu0 0
    %1180 = vmatprep.subr.bf16.mxu0 0
    %1181 = vmatpush1.bf16.msra.mxu0 0
    %1182 = vmatprep.subr.bf16.mxu0 0
    %1183 = vmatpush1.bf16.msra.mxu0 0
    %1184 = vmatprep.subr.bf16.mxu0 0
    %1185 = vmatpush1.bf16.msra.mxu0 0
    %1186 = vmatprep.subr.bf16.mxu0 0
    %1187 = vmatpush1.bf16.msra.mxu0 0
    %1188 = vmatprep.subr.bf16.mxu0 0
    %1189 = vmatpush1.bf16.msra.mxu0 0
    %1190 = vmatprep.subr.bf16.mxu0 0
    %1191 = vmatpush1.bf16.msra.mxu0 0
    %1192 = vmatprep.subr.bf16.mxu0 0
    %1193 = vmatpush1.bf16.msra.mxu0 0
    %1194 = vmatprep.subr.bf16.mxu0 0
    %1195 = vmatpush1.bf16.msra.mxu0 0
    %1196 = vmatprep.mubr.bf16.mxu0 0
    %1197 = vmatmul.mubr.bf16.gmra.mrb[0].mxu0 %v705
    %v1198 = vpop.f32.mrb[0].mxu0
    %v1199 = vadd.f32 0.0, %v1198
    %v1200 = vpop.f32.mrb[0].mxu0
    %v1201 = vadd.f32 0.0, %v1200
    %v1202 = vpop.f32.mrb[0].mxu0
    %v1203 = vadd.f32 0.0, %v1202
    %v1204 = vpop.f32.mrb[0].mxu0
    %v1205 = vadd.f32 0.0, %v1204
    %1206 = vmatprep.mubr.bf16.mxu0 0
    %1207 = vmatmul.mubr.bf16.gmra.mrb[0].mxu0 %v708
    %v1208 = vpop.f32.mrb[0].mxu0
    %v1209 = vadd.f32 0.0, %v1208
    %v1210 = vpop.f32.mrb[0].mxu0
    %v1211 = vadd.f32 0.0, %v1210
    %v1212 = vpop.f32.mrb[0].mxu0
    %v1213 = vadd.f32 0.0, %v1212
    %v1214 = vpop.f32.mrb[0].mxu0
    %v1215 = vadd.f32 0.0, %v1214
    %1216 = vmatprep.mubr.bf16.mxu0 0
    %1217 = vmatmul.mubr.bf16.gmra.mrb[0].mxu0 %v711
    %v1218 = vpop.f32.mrb[0].mxu0
    %v1219 = vadd.f32 0.0, %v1218
    %v1220 = vpop.f32.mrb[0].mxu0
    %v1221 = vadd.f32 0.0, %v1220
    %v1222 = vpop.f32.mrb[0].mxu0
    %v1223 = vadd.f32 0.0, %v1222
    %v1224 = vpop.f32.mrb[0].mxu0
    %v1225 = vadd.f32 0.0, %v1224
    %1226 = vmatprep.mubr.bf16.mxu0 0
    %1227 = vmatmul.mubr.bf16.gmra.mrb[0].mxu0 %v714
    %v1228 = vpop.f32.mrb[0].mxu0
    %v1229 = vadd.f32 0.0, %v1228
    %v1230 = vpop.f32.mrb[0].mxu0
    %v1231 = vadd.f32 0.0, %v1230
    %v1232 = vpop.f32.mrb[0].mxu0
    %v1233 = vadd.f32 0.0, %v1232
    %v1234 = vpop.f32.mrb[0].mxu0
    %v1235 = vadd.f32 0.0, %v1234
    %1236 = vmatprep.mubr.bf16.mxu0 0
    %1237 = vmatmul.mubr.bf16.gmra.mrb[0].mxu0 %v717
    %v1238 = vpop.f32.mrb[0].mxu0
    %v1239 = vadd.f32 0.0, %v1238
    %v1240 = vpop.f32.mrb[0].mxu0
    %v1241 = vadd.f32 0.0, %v1240
    %v1242 = vpop.f32.mrb[0].mxu0
    %v1243 = vadd.f32 0.0, %v1242
    %v1244 = vpop.f32.mrb[0].mxu0
    %v1245 = vadd.f32 0.0, %v1244
    %1246 = vmatprep.mubr.bf16.mxu0 0
    %1247 = vmatmul.mubr.bf16.gmra.mrb[0].mxu0 %v720
    %v1248 = vpop.f32.mrb[0].mxu0
    %v1249 = vadd.f32 0.0, %v1248
    %v1250 = vpop.f32.mrb[0].mxu0
    %v1251 = vadd.f32 0.0, %v1250
    %v1252 = vpop.f32.mrb[0].mxu0
    %v1253 = vadd.f32 0.0, %v1252
    %v1254 = vpop.f32.mrb[0].mxu0
    %v1255 = vadd.f32 0.0, %v1254
    %1256 = vmatprep.mubr.bf16.mxu0 0
    %1257 = vmatmul.mubr.bf16.gmra.mrb[0].mxu0 %v723
    %v1258 = vpop.f32.mrb[0].mxu0
    %v1259 = vadd.f32 0.0, %v1258
    %v1260 = vpop.f32.mrb[0].mxu0
    %v1261 = vadd.f32 0.0, %v1260
    %v1262 = vpop.f32.mrb[0].mxu0
    %v1263 = vadd.f32 0.0, %v1262
    %v1264 = vpop.f32.mrb[0].mxu0
    %v1265 = vadd.f32 0.0, %v1264
    %1266 = vmatprep.mubr.bf16.mxu0 0
    %1267 = vmatmul.mubr.bf16.gmra.mrb[0].mxu0 %v726
    %v1268 = vpop.f32.mrb[0].mxu0
    %v1269 = vadd.f32 0.0, %v1268
    %v1270 = vpop.f32.mrb[0].mxu0
    %v1271 = vadd.f32 0.0, %v1270
    %v1272 = vpop.f32.mrb[0].mxu0
    %v1273 = vadd.f32 0.0, %v1272
    %v1274 = vpop.f32.mrb[0].mxu0
    %v1275 = vadd.f32 0.0, %v1274
    %1276 = vmatprep.mubr.bf16.mxu0 0
    %1277 = vmatmul.mubr.bf16.gmra.mrb[0].mxu0 %v729
    %v1278 = vpop.f32.mrb[0].mxu0
    %v1279 = vadd.f32 0.0, %v1278
    %v1280 = vpop.f32.mrb[0].mxu0
    %v1281 = vadd.f32 0.0, %v1280
    %v1282 = vpop.f32.mrb[0].mxu0
    %v1283 = vadd.f32 0.0, %v1282
    %v1284 = vpop.f32.mrb[0].mxu0
    %v1285 = vadd.f32 0.0, %v1284
    %1286 = vmatprep.mubr.bf16.mxu0 0
    %1287 = vmatmul.mubr.bf16.gmra.mrb[0].mxu0 %v732
    %v1288 = vpop.f32.mrb[0].mxu0
    %v1289 = vadd.f32 0.0, %v1288
    %v1290 = vpop.f32.mrb[0].mxu0
    %v1291 = vadd.f32 0.0, %v1290
    %v1292 = vpop.f32.mrb[0].mxu0
    %v1293 = vadd.f32 0.0, %v1292
    %v1294 = vpop.f32.mrb[0].mxu0
    %v1295 = vadd.f32 0.0, %v1294
    %1296 = vmatprep.mubr.bf16.mxu0 0
    %1297 = vmatmul.mubr.bf16.gmra.mrb[0].mxu0 %v735
    %v1298 = vpop.f32.mrb[0].mxu0
    %v1299 = vadd.f32 0.0, %v1298
    %v1300 = vpop.f32.mrb[0].mxu0
    %v1301 = vadd.f32 0.0, %v1300
    %v1302 = vpop.f32.mrb[0].mxu0
    %v1303 = vadd.f32 0.0, %v1302
    %v1304 = vpop.f32.mrb[0].mxu0
    %v1305 = vadd.f32 0.0, %v1304
    %1306 = vmatprep.mubr.bf16.mxu0 0
    %1307 = vmatmul.mubr.bf16.gmra.mrb[0].mxu0 %v738
    %v1308 = vpop.f32.mrb[0].mxu0
    %v1309 = vadd.f32 0.0, %v1308
    %v1310 = vpop.f32.mrb[0].mxu0
    %v1311 = vadd.f32 0.0, %v1310
    %v1312 = vpop.f32.mrb[0].mxu0
    %v1313 = vadd.f32 0.0, %v1312
    %v1314 = vpop.f32.mrb[0].mxu0
    %v1315 = vadd.f32 0.0, %v1314
    %1316 = vmatprep.mubr.bf16.mxu0 0
    %1317 = vmatmul.mubr.bf16.gmra.mrb[0].mxu0 %v741
    %v1318 = vpop.f32.mrb[0].mxu0
    %v1319 = vadd.f32 0.0, %v1318
    %v1320 = vpop.f32.mrb[0].mxu0
    %v1321 = vadd.f32 0.0, %v1320
    %v1322 = vpop.f32.mrb[0].mxu0
    %v1323 = vadd.f32 0.0, %v1322
    %v1324 = vpop.f32.mrb[0].mxu0
    %v1325 = vadd.f32 0.0, %v1324
    %1326 = vmatprep.mubr.bf16.mxu0 0
    %1327 = vmatmul.mubr.bf16.gmra.mrb[0].mxu0 %v1150
    %v1328 = vpop.f32.mrb[0].mxu0
    %v1329 = vadd.f32 0.0, %v1328
    %v1330 = vpop.f32.mrb[0].mxu0
    %v1331 = vadd.f32 0.0, %v1330
    %v1332 = vpop.f32.mrb[0].mxu0
    %v1333 = vadd.f32 0.0, %v1332
    %v1334 = vpop.f32.mrb[0].mxu0
    %v1335 = vadd.f32 0.0, %v1334
    %1336 = vdwg.mxu0
    %1337 = vmatprep.subr.bf16.mxu0 %v1140
    %1338 = vmatpush1.bf16.msra.mxu0 %v1139
    %1339 = vmatprep.subr.bf16.mxu0 %v1162
    %1340 = vmatpush1.bf16.msra.mxu0 %v1159
    %1341 = vmatprep.subr.bf16.mxu0 0
    %1342 = vmatpush1.bf16.msra.mxu0 0
    %1343 = vmatprep.subr.bf16.mxu0 0
    %1344 = vmatpush1.bf16.msra.mxu0 0
    %1345 = vmatprep.subr.bf16.mxu0 0
    %1346 = vmatpush1.bf16.msra.mxu0 0
    %1347 = vmatprep.subr.bf16.mxu0 0
    %1348 = vmatpush1.bf16.msra.mxu0 0
    %1349 = vmatprep.subr.bf16.mxu0 0
    %1350 = vmatpush1.bf16.msra.mxu0 0
    %1351 = vmatprep.subr.bf16.mxu0 0
    %1352 = vmatpush1.bf16.msra.mxu0 0
    %1353 = vmatprep.subr.bf16.mxu0 0
    %1354 = vmatpush1.bf16.msra.mxu0 0
    %1355 = vmatprep.subr.bf16.mxu0 0
    %1356 = vmatpush1.bf16.msra.mxu0 0
    %1357 = vmatprep.subr.bf16.mxu0 0
    %1358 = vmatpush1.bf16.msra.mxu0 0
    %1359 = vmatprep.subr.bf16.mxu0 0
    %1360 = vmatpush1.bf16.msra.mxu0 0
    %1361 = vmatprep.subr.bf16.mxu0 0
    %1362 = vmatpush1.bf16.msra.mxu0 0
    %1363 = vmatprep.subr.bf16.mxu0 0
    %1364 = vmatpush1.bf16.msra.mxu0 0
    %1365 = vmatprep.subr.bf16.mxu0 0
    %1366 = vmatpush1.bf16.msra.mxu0 0
    %1367 = vmatprep.subr.bf16.mxu0 0
    %1368 = vmatpush1.bf16.msra.mxu0 0
    %1369 = vmatprep.mubr.bf16.mxu0 0
    %1370 = vmatmul.mubr.bf16.gmra.mrb[0].mxu0 %v705
    %v1371 = vpop.f32.mrb[0].mxu0
    %v1372 = vadd.f32 0.0, %v1371
    %v1373 = vpop.f32.mrb[0].mxu0
    %v1374 = vadd.f32 0.0, %v1373
    %v1375 = vpop.f32.mrb[0].mxu0
    %v1376 = vadd.f32 0.0, %v1375
    %v1377 = vpop.f32.mrb[0].mxu0
    %v1378 = vadd.f32 0.0, %v1377
    %1379 = vmatprep.mubr.bf16.mxu0 0
    %1380 = vmatmul.mubr.bf16.gmra.mrb[0].mxu0 %v708
    %v1381 = vpop.f32.mrb[0].mxu0
    %v1382 = vadd.f32 0.0, %v1381
    %v1383 = vpop.f32.mrb[0].mxu0
    %v1384 = vadd.f32 0.0, %v1383
    %v1385 = vpop.f32.mrb[0].mxu0
    %v1386 = vadd.f32 0.0, %v1385
    %v1387 = vpop.f32.mrb[0].mxu0
    %v1388 = vadd.f32 0.0, %v1387
    %1389 = vmatprep.mubr.bf16.mxu0 0
    %1390 = vmatmul.mubr.bf16.gmra.mrb[0].mxu0 %v711
    %v1391 = vpop.f32.mrb[0].mxu0
    %v1392 = vadd.f32 0.0, %v1391
    %v1393 = vpop.f32.mrb[0].mxu0
    %v1394 = vadd.f32 0.0, %v1393
    %v1395 = vpop.f32.mrb[0].mxu0
    %v1396 = vadd.f32 0.0, %v1395
    %v1397 = vpop.f32.mrb[0].mxu0
    %v1398 = vadd.f32 0.0, %v1397
    %1399 = vmatprep.mubr.bf16.mxu0 0
    %1400 = vmatmul.mubr.bf16.gmra.mrb[0].mxu0 %v714
    %v1401 = vpop.f32.mrb[0].mxu0
    %v1402 = vadd.f32 0.0, %v1401
    %v1403 = vpop.f32.mrb[0].mxu0
    %v1404 = vadd.f32 0.0, %v1403
    %v1405 = vpop.f32.mrb[0].mxu0
    %v1406 = vadd.f32 0.0, %v1405
    %v1407 = vpop.f32.mrb[0].mxu0
    %v1408 = vadd.f32 0.0, %v1407
    %1409 = vmatprep.mubr.bf16.mxu0 0
    %1410 = vmatmul.mubr.bf16.gmra.mrb[0].mxu0 %v717
    %v1411 = vpop.f32.mrb[0].mxu0
    %v1412 = vadd.f32 0.0, %v1411
    %v1413 = vpop.f32.mrb[0].mxu0
    %v1414 = vadd.f32 0.0, %v1413
    %v1415 = vpop.f32.mrb[0].mxu0
    %v1416 = vadd.f32 0.0, %v1415
    %v1417 = vpop.f32.mrb[0].mxu0
    %v1418 = vadd.f32 0.0, %v1417
    %1419 = vmatprep.mubr.bf16.mxu0 0
    %1420 = vmatmul.mubr.bf16.gmra.mrb[0].mxu0 %v720
    %v1421 = vpop.f32.mrb[0].mxu0
    %v1422 = vadd.f32 0.0, %v1421
    %v1423 = vpop.f32.mrb[0].mxu0
    %v1424 = vadd.f32 0.0, %v1423
    %v1425 = vpop.f32.mrb[0].mxu0
    %v1426 = vadd.f32 0.0, %v1425
    %v1427 = vpop.f32.mrb[0].mxu0
    %v1428 = vadd.f32 0.0, %v1427
    %1429 = vmatprep.mubr.bf16.mxu0 0
    %1430 = vmatmul.mubr.bf16.gmra.mrb[0].mxu0 %v723
    %v1431 = vpop.f32.mrb[0].mxu0
    %v1432 = vadd.f32 0.0, %v1431
    %v1433 = vpop.f32.mrb[0].mxu0
    %v1434 = vadd.f32 0.0, %v1433
    %v1435 = vpop.f32.mrb[0].mxu0
    %v1436 = vadd.f32 0.0, %v1435
    %v1437 = vpop.f32.mrb[0].mxu0
    %v1438 = vadd.f32 0.0, %v1437
    %1439 = vmatprep.mubr.bf16.mxu0 0
    %1440 = vmatmul.mubr.bf16.gmra.mrb[0].mxu0 %v726
    %v1441 = vpop.f32.mrb[0].mxu0
    %v1442 = vadd.f32 0.0, %v1441
    %v1443 = vpop.f32.mrb[0].mxu0
    %v1444 = vadd.f32 0.0, %v1443
    %v1445 = vpop.f32.mrb[0].mxu0
    %v1446 = vadd.f32 0.0, %v1445
    %v1447 = vpop.f32.mrb[0].mxu0
    %v1448 = vadd.f32 0.0, %v1447
    %1449 = vmatprep.mubr.bf16.mxu0 0
    %1450 = vmatmul.mubr.bf16.gmra.mrb[0].mxu0 %v729
    %v1451 = vpop.f32.mrb[0].mxu0
    %v1452 = vadd.f32 0.0, %v1451
    %v1453 = vpop.f32.mrb[0].mxu0
    %v1454 = vadd.f32 0.0, %v1453
    %v1455 = vpop.f32.mrb[0].mxu0
    %v1456 = vadd.f32 0.0, %v1455
    %v1457 = vpop.f32.mrb[0].mxu0
    %v1458 = vadd.f32 0.0, %v1457
    %1459 = vmatprep.mubr.bf16.mxu0 0
    %1460 = vmatmul.mubr.bf16.gmra.mrb[0].mxu0 %v732
    %v1461 = vpop.f32.mrb[0].mxu0
    %v1462 = vadd.f32 0.0, %v1461
    %v1463 = vpop.f32.mrb[0].mxu0
    %v1464 = vadd.f32 0.0, %v1463
    %v1465 = vpop.f32.mrb[0].mxu0
    %v1466 = vadd.f32 0.0, %v1465
    %v1467 = vpop.f32.mrb[0].mxu0
    %v1468 = vadd.f32 0.0, %v1467
    %1469 = vmatprep.mubr.bf16.mxu0 0
    %1470 = vmatmul.mubr.bf16.gmra.mrb[0].mxu0 %v735
    %v1471 = vpop.f32.mrb[0].mxu0
    %v1472 = vadd.f32 0.0, %v1471
    %v1473 = vpop.f32.mrb[0].mxu0
    %v1474 = vadd.f32 0.0, %v1473
    %v1475 = vpop.f32.mrb[0].mxu0
    %v1476 = vadd.f32 0.0, %v1475
    %v1477 = vpop.f32.mrb[0].mxu0
    %v1478 = vadd.f32 0.0, %v1477
    %1479 = vmatprep.mubr.bf16.mxu0 0
    %1480 = vmatmul.mubr.bf16.gmra.mrb[0].mxu0 %v738
    %v1481 = vpop.f32.mrb[0].mxu0
    %v1482 = vadd.f32 0.0, %v1481
    %v1483 = vpop.f32.mrb[0].mxu0
    %v1484 = vadd.f32 0.0, %v1483
    %v1485 = vpop.f32.mrb[0].mxu0
    %v1486 = vadd.f32 0.0, %v1485
    %v1487 = vpop.f32.mrb[0].mxu0
    %v1488 = vadd.f32 0.0, %v1487
    %1489 = vmatprep.mubr.bf16.mxu0 0
    %1490 = vmatmul.mubr.bf16.gmra.mrb[0].mxu0 %v741
    %v1491 = vpop.f32.mrb[0].mxu0
    %v1492 = vadd.f32 0.0, %v1491
    %v1493 = vpop.f32.mrb[0].mxu0
    %v1494 = vadd.f32 0.0, %v1493
    %v1495 = vpop.f32.mrb[0].mxu0
    %v1496 = vadd.f32 0.0, %v1495
    %v1497 = vpop.f32.mrb[0].mxu0
    %v1498 = vadd.f32 0.0, %v1497
    %1499 = vmatprep.mubr.bf16.mxu0 0
    %1500 = vmatmul.mubr.bf16.gmra.mrb[0].mxu0 %v1150
    %v1501 = vpop.f32.mrb[0].mxu0
    %v1502 = vadd.f32 0.0, %v1501
    %v1503 = vpop.f32.mrb[0].mxu0
    %v1504 = vadd.f32 0.0, %v1503
    %v1505 = vpop.f32.mrb[0].mxu0
    %v1506 = vadd.f32 0.0, %v1505
    %v1507 = vpop.f32.mrb[0].mxu0
    %v1508 = vadd.f32 0.0, %v1507
    %1509 = vdwg.mxu0
    %v1510 = vadd.f32 %v790, %v1199
    %v1511 = vadd.f32 %v792, %v1201
    %v1512 = vadd.f32 %v963, %v1372
    %v1513 = vadd.f32 %v965, %v1374
    %v1514 = vadd.f32 %v794, %v1203
    %v1515 = vadd.f32 %v796, %v1205
    %v1516 = vadd.f32 %v967, %v1376
    %v1517 = vadd.f32 %v969, %v1378
    %v1518 = vadd.f32 %v800, %v1209
    %v1519 = vadd.f32 %v802, %v1211
    %v1520 = vadd.f32 %v973, %v1382
    %v1521 = vadd.f32 %v975, %v1384
    %v1522 = vadd.f32 %v804, %v1213
    %v1523 = vadd.f32 %v806, %v1215
    %v1524 = vadd.f32 %v977, %v1386
    %v1525 = vadd.f32 %v979, %v1388
    %v1526 = vadd.f32 %v810, %v1219
    %v1527 = vadd.f32 %v812, %v1221
    %v1528 = vadd.f32 %v983, %v1392
    %v1529 = vadd.f32 %v985, %v1394
    %v1530 = vadd.f32 %v814, %v1223
    %v1531 = vadd.f32 %v816, %v1225
    %v1532 = vadd.f32 %v987, %v1396
    %v1533 = vadd.f32 %v989, %v1398
    %v1534 = vadd.f32 %v820, %v1229
    %v1535 = vadd.f32 %v822, %v1231
    %v1536 = vadd.f32 %v993, %v1402
    %v1537 = vadd.f32 %v995, %v1404
    %v1538 = vadd.f32 %v824, %v1233
    %v1539 = vadd.f32 %v826, %v1235
    %v1540 = vadd.f32 %v997, %v1406
    %v1541 = vadd.f32 %v999, %v1408
    %v1542 = vadd.f32 %v830, %v1239
    %v1543 = vadd.f32 %v832, %v1241
    %v1544 = vadd.f32 %v1003, %v1412
    %v1545 = vadd.f32 %v1005, %v1414
    %v1546 = vadd.f32 %v834, %v1243
    %v1547 = vadd.f32 %v836, %v1245
    %v1548 = vadd.f32 %v1007, %v1416
    %v1549 = vadd.f32 %v1009, %v1418
    %v1550 = vadd.f32 %v840, %v1249
    %v1551 = vadd.f32 %v842, %v1251
    %v1552 = vadd.f32 %v1013, %v1422
    %v1553 = vadd.f32 %v1015, %v1424
    %v1554 = vadd.f32 %v844, %v1253
    %v1555 = vadd.f32 %v846, %v1255
    %v1556 = vadd.f32 %v1017, %v1426
    %v1557 = vadd.f32 %v1019, %v1428
    %v1558 = vadd.f32 %v850, %v1259
    %v1559 = vadd.f32 %v852, %v1261
    %v1560 = vadd.f32 %v1023, %v1432
    %v1561 = vadd.f32 %v1025, %v1434
    %v1562 = vadd.f32 %v854, %v1263
    %v1563 = vadd.f32 %v856, %v1265
    %v1564 = vadd.f32 %v1027, %v1436
    %v1565 = vadd.f32 %v1029, %v1438
    %v1566 = vadd.f32 %v860, %v1269
    %v1567 = vadd.f32 %v862, %v1271
    %v1568 = vadd.f32 %v1033, %v1442
    %v1569 = vadd.f32 %v1035, %v1444
    %v1570 = vadd.f32 %v864, %v1273
    %v1571 = vadd.f32 %v866, %v1275
    %v1572 = vadd.f32 %v1037, %v1446
    %v1573 = vadd.f32 %v1039, %v1448
    %v1574 = vadd.f32 %v870, %v1279
    %v1575 = vadd.f32 %v872, %v1281
    %v1576 = vadd.f32 %v1043, %v1452
    %v1577 = vadd.f32 %v1045, %v1454
    %v1578 = vadd.f32 %v874, %v1283
    %v1579 = vadd.f32 %v876, %v1285
    %v1580 = vadd.f32 %v1047, %v1456
    %v1581 = vadd.f32 %v1049, %v1458
    %v1582 = vadd.f32 %v880, %v1289
    %v1583 = vadd.f32 %v882, %v1291
    %v1584 = vadd.f32 %v1053, %v1462
    %v1585 = vadd.f32 %v1055, %v1464
    %v1586 = vadd.f32 %v884, %v1293
    %v1587 = vadd.f32 %v886, %v1295
    %v1588 = vadd.f32 %v1057, %v1466
    %v1589 = vadd.f32 %v1059, %v1468
    %v1590 = vadd.f32 %v890, %v1299
    %v1591 = vadd.f32 %v892, %v1301
    %v1592 = vadd.f32 %v1063, %v1472
    %v1593 = vadd.f32 %v1065, %v1474
    %v1594 = vadd.f32 %v894, %v1303
    %v1595 = vadd.f32 %v896, %v1305
    %v1596 = vadd.f32 %v1067, %v1476
    %v1597 = vadd.f32 %v1069, %v1478
    %v1598 = vadd.f32 %v900, %v1309
    %v1599 = vadd.f32 %v902, %v1311
    %v1600 = vadd.f32 %v1073, %v1482
    %v1601 = vadd.f32 %v1075, %v1484
    %v1602 = vadd.f32 %v904, %v1313
    %v1603 = vadd.f32 %v906, %v1315
    %v1604 = vadd.f32 %v1077, %v1486
    %v1605 = vadd.f32 %v1079, %v1488
    %v1606 = vadd.f32 %v910, %v1319
    %v1607 = vadd.f32 %v912, %v1321
    %v1608 = vadd.f32 %v1083, %v1492
    %v1609 = vadd.f32 %v1085, %v1494
    %v1610 = vadd.f32 %v914, %v1323
    %v1611 = vadd.f32 %v916, %v1325
    %v1612 = vadd.f32 %v1087, %v1496
    %v1613 = vadd.f32 %v1089, %v1498
    %v1614 = vadd.f32 %v920, %v1329
    %v1615 = vadd.f32 %v922, %v1331
    %v1616 = vadd.f32 %v1093, %v1502
    %v1617 = vadd.f32 %v1095, %v1504
    %v1618 = vadd.f32 %v924, %v1333
    %v1619 = vadd.f32 %v926, %v1335
    %v1620 = vadd.f32 %v1097, %v1506
    %v1621 = vadd.f32 %v1099, %v1508
    %v1622 = vld [vmem:[%s2] sm:$0xf]
    %v1624 = vlaneseq
    %v1625 = vshrl.u32 %v1624, 7
    %v1626 = vsub.s32 0, %v1625
    %v1627 = vrot.slane %v1622, %v1626
    %v1628 = vlaneseq
    %v1629 = vshrl.u32 %v1628, 7
    %v1630 = vsub.s32 1, %v1629
    %v1631 = vrot.slane %v1622, %v1630
    %v1632 = vlaneseq
    %v1633 = vshrl.u32 %v1632, 7
    %v1634 = vsub.s32 2, %v1633
    %v1635 = vrot.slane %v1622, %v1634
    %v1636 = vlaneseq
    %v1637 = vshrl.u32 %v1636, 7
    %v1638 = vsub.s32 3, %v1637
    %v1639 = vrot.slane %v1622, %v1638
    %v1644 = vadd.f32 %v1510, %v1627
    %v1645 = vadd.f32 %v1511, %v1631
    %v1646 = vadd.f32 %v1512, %v1635
    %v1647 = vadd.f32 %v1513, %v1639
    %v1648 = vadd.f32 %v1514, %v1627
    %v1649 = vadd.f32 %v1515, %v1631
    %v1650 = vadd.f32 %v1516, %v1635
    %v1651 = vadd.f32 %v1517, %v1639
    %v1652 = vadd.f32 %v1518, %v1627
    %v1653 = vadd.f32 %v1519, %v1631
    %v1654 = vadd.f32 %v1520, %v1635
    %v1655 = vadd.f32 %v1521, %v1639
    %v1656 = vadd.f32 %v1522, %v1627
    %v1657 = vadd.f32 %v1523, %v1631
    %v1658 = vadd.f32 %v1524, %v1635
    %v1659 = vadd.f32 %v1525, %v1639
    %v1660 = vadd.f32 %v1526, %v1627
    %v1661 = vadd.f32 %v1527, %v1631
    %v1662 = vadd.f32 %v1528, %v1635
    %v1663 = vadd.f32 %v1529, %v1639
    %v1664 = vadd.f32 %v1530, %v1627
    %v1665 = vadd.f32 %v1531, %v1631
    %v1666 = vadd.f32 %v1532, %v1635
    %v1667 = vadd.f32 %v1533, %v1639
    %v1668 = vadd.f32 %v1534, %v1627
    %v1669 = vadd.f32 %v1535, %v1631
    %v1670 = vadd.f32 %v1536, %v1635
    %v1671 = vadd.f32 %v1537, %v1639
    %v1672 = vadd.f32 %v1538, %v1627
    %v1673 = vadd.f32 %v1539, %v1631
    %v1674 = vadd.f32 %v1540, %v1635
    %v1675 = vadd.f32 %v1541, %v1639
    %v1676 = vadd.f32 %v1542, %v1627
    %v1677 = vadd.f32 %v1543, %v1631
    %v1678 = vadd.f32 %v1544, %v1635
    %v1679 = vadd.f32 %v1545, %v1639
    %v1680 = vadd.f32 %v1546, %v1627
    %v1681 = vadd.f32 %v1547, %v1631
    %v1682 = vadd.f32 %v1548, %v1635
    %v1683 = vadd.f32 %v1549, %v1639
    %v1684 = vadd.f32 %v1550, %v1627
    %v1685 = vadd.f32 %v1551, %v1631
    %v1686 = vadd.f32 %v1552, %v1635
    %v1687 = vadd.f32 %v1553, %v1639
    %v1688 = vadd.f32 %v1554, %v1627
    %v1689 = vadd.f32 %v1555, %v1631
    %v1690 = vadd.f32 %v1556, %v1635
    %v1691 = vadd.f32 %v1557, %v1639
    %v1692 = vadd.f32 %v1558, %v1627
    %v1693 = vadd.f32 %v1559, %v1631
    %v1694 = vadd.f32 %v1560, %v1635
    %v1695 = vadd.f32 %v1561, %v1639
    %v1696 = vadd.f32 %v1562, %v1627
    %v1697 = vadd.f32 %v1563, %v1631
    %v1698 = vadd.f32 %v1564, %v1635
    %v1699 = vadd.f32 %v1565, %v1639
    %v1700 = vadd.f32 %v1566, %v1627
    %v1701 = vadd.f32 %v1567, %v1631
    %v1702 = vadd.f32 %v1568, %v1635
    %v1703 = vadd.f32 %v1569, %v1639
    %v1704 = vadd.f32 %v1570, %v1627
    %v1705 = vadd.f32 %v1571, %v1631
    %v1706 = vadd.f32 %v1572, %v1635
    %v1707 = vadd.f32 %v1573, %v1639
    %v1708 = vadd.f32 %v1574, %v1627
    %v1709 = vadd.f32 %v1575, %v1631
    %v1710 = vadd.f32 %v1576, %v1635
    %v1711 = vadd.f32 %v1577, %v1639
    %v1712 = vadd.f32 %v1578, %v1627
    %v1713 = vadd.f32 %v1579, %v1631
    %v1714 = vadd.f32 %v1580, %v1635
    %v1715 = vadd.f32 %v1581, %v1639
    %v1716 = vadd.f32 %v1582, %v1627
    %v1717 = vadd.f32 %v1583, %v1631
    %v1718 = vadd.f32 %v1584, %v1635
    %v1719 = vadd.f32 %v1585, %v1639
    %v1720 = vadd.f32 %v1586, %v1627
    %v1721 = vadd.f32 %v1587, %v1631
    %v1722 = vadd.f32 %v1588, %v1635
    %v1723 = vadd.f32 %v1589, %v1639
    %v1724 = vadd.f32 %v1590, %v1627
    %v1725 = vadd.f32 %v1591, %v1631
    %v1726 = vadd.f32 %v1592, %v1635
    %v1727 = vadd.f32 %v1593, %v1639
    %v1728 = vadd.f32 %v1594, %v1627
    %v1729 = vadd.f32 %v1595, %v1631
    %v1730 = vadd.f32 %v1596, %v1635
    %v1731 = vadd.f32 %v1597, %v1639
    %v1732 = vadd.f32 %v1598, %v1627
    %v1733 = vadd.f32 %v1599, %v1631
    %v1734 = vadd.f32 %v1600, %v1635
    %v1735 = vadd.f32 %v1601, %v1639
    %v1736 = vadd.f32 %v1602, %v1627
    %v1737 = vadd.f32 %v1603, %v1631
    %v1738 = vadd.f32 %v1604, %v1635
    %v1739 = vadd.f32 %v1605, %v1639
    %v1740 = vadd.f32 %v1606, %v1627
    %v1741 = vadd.f32 %v1607, %v1631
    %v1742 = vadd.f32 %v1608, %v1635
    %v1743 = vadd.f32 %v1609, %v1639
    %v1744 = vadd.f32 %v1610, %v1627
    %v1745 = vadd.f32 %v1611, %v1631
    %v1746 = vadd.f32 %v1612, %v1635
    %v1747 = vadd.f32 %v1613, %v1639
    %v1748 = vadd.f32 %v1614, %v1627
    %v1749 = vadd.f32 %v1615, %v1631
    %v1750 = vadd.f32 %v1616, %v1635
    %v1751 = vadd.f32 %v1617, %v1639
    %v1752 = vadd.f32 %v1618, %v1627
    %v1753 = vadd.f32 %v1619, %v1631
    %v1754 = vadd.f32 %v1620, %v1635
    %v1755 = vadd.f32 %v1621, %v1639
    %v1756 = vmax.f32 %v1644, 0.0
    %v1757 = vmax.f32 %v1645, 0.0
    %v1758 = vmax.f32 %v1646, 0.0
    %v1759 = vmax.f32 %v1647, 0.0
    %v1760 = vmax.f32 %v1648, 0.0
    %v1761 = vmax.f32 %v1649, 0.0
    %v1762 = vmax.f32 %v1650, 0.0
    %v1763 = vmax.f32 %v1651, 0.0
    %v1764 = vmax.f32 %v1652, 0.0
    %v1765 = vmax.f32 %v1653, 0.0
    %v1766 = vmax.f32 %v1654, 0.0
    %v1767 = vmax.f32 %v1655, 0.0
    %v1768 = vmax.f32 %v1656, 0.0
    %v1769 = vmax.f32 %v1657, 0.0
    %v1770 = vmax.f32 %v1658, 0.0
    %v1771 = vmax.f32 %v1659, 0.0
    %v1772 = vmax.f32 %v1660, 0.0
    %v1773 = vmax.f32 %v1661, 0.0
    %v1774 = vmax.f32 %v1662, 0.0
    %v1775 = vmax.f32 %v1663, 0.0
    %v1776 = vmax.f32 %v1664, 0.0
    %v1777 = vmax.f32 %v1665, 0.0
    %v1778 = vmax.f32 %v1666, 0.0
    %v1779 = vmax.f32 %v1667, 0.0
    %v1780 = vmax.f32 %v1668, 0.0
    %v1781 = vmax.f32 %v1669, 0.0
    %v1782 = vmax.f32 %v1670, 0.0
    %v1783 = vmax.f32 %v1671, 0.0
    %v1784 = vmax.f32 %v1672, 0.0
    %v1785 = vmax.f32 %v1673, 0.0
    %v1786 = vmax.f32 %v1674, 0.0
    %v1787 = vmax.f32 %v1675, 0.0
    %v1788 = vmax.f32 %v1676, 0.0
    %v1789 = vmax.f32 %v1677, 0.0
    %v1790 = vmax.f32 %v1678, 0.0
    %v1791 = vmax.f32 %v1679, 0.0
    %v1792 = vmax.f32 %v1680, 0.0
    %v1793 = vmax.f32 %v1681, 0.0
    %v1794 = vmax.f32 %v1682, 0.0
    %v1795 = vmax.f32 %v1683, 0.0
    %v1796 = vmax.f32 %v1684, 0.0
    %v1797 = vmax.f32 %v1685, 0.0
    %v1798 = vmax.f32 %v1686, 0.0
    %v1799 = vmax.f32 %v1687, 0.0
    %v1800 = vmax.f32 %v1688, 0.0
    %v1801 = vmax.f32 %v1689, 0.0
    %v1802 = vmax.f32 %v1690, 0.0
    %v1803 = vmax.f32 %v1691, 0.0
    %v1804 = vmax.f32 %v1692, 0.0
    %v1805 = vmax.f32 %v1693, 0.0
    %v1806 = vmax.f32 %v1694, 0.0
    %v1807 = vmax.f32 %v1695, 0.0
    %v1808 = vmax.f32 %v1696, 0.0
    %v1809 = vmax.f32 %v1697, 0.0
    %v1810 = vmax.f32 %v1698, 0.0
    %v1811 = vmax.f32 %v1699, 0.0
    %v1812 = vmax.f32 %v1700, 0.0
    %v1813 = vmax.f32 %v1701, 0.0
    %v1814 = vmax.f32 %v1702, 0.0
    %v1815 = vmax.f32 %v1703, 0.0
    %v1816 = vmax.f32 %v1704, 0.0
    %v1817 = vmax.f32 %v1705, 0.0
    %v1818 = vmax.f32 %v1706, 0.0
    %v1819 = vmax.f32 %v1707, 0.0
    %v1820 = vmax.f32 %v1708, 0.0
    %v1821 = vmax.f32 %v1709, 0.0
    %v1822 = vmax.f32 %v1710, 0.0
    %v1823 = vmax.f32 %v1711, 0.0
    %v1824 = vmax.f32 %v1712, 0.0
    %v1825 = vmax.f32 %v1713, 0.0
    %v1826 = vmax.f32 %v1714, 0.0
    %v1827 = vmax.f32 %v1715, 0.0
    %v1828 = vmax.f32 %v1716, 0.0
    %v1829 = vmax.f32 %v1717, 0.0
    %v1830 = vmax.f32 %v1718, 0.0
    %v1831 = vmax.f32 %v1719, 0.0
    %v1832 = vmax.f32 %v1720, 0.0
    %v1833 = vmax.f32 %v1721, 0.0
    %v1834 = vmax.f32 %v1722, 0.0
    %v1835 = vmax.f32 %v1723, 0.0
    %v1836 = vmax.f32 %v1724, 0.0
    %v1837 = vmax.f32 %v1725, 0.0
    %v1838 = vmax.f32 %v1726, 0.0
    %v1839 = vmax.f32 %v1727, 0.0
    %v1840 = vmax.f32 %v1728, 0.0
    %v1841 = vmax.f32 %v1729, 0.0
    %v1842 = vmax.f32 %v1730, 0.0
    %v1843 = vmax.f32 %v1731, 0.0
    %v1844 = vmax.f32 %v1732, 0.0
    %v1845 = vmax.f32 %v1733, 0.0
    %v1846 = vmax.f32 %v1734, 0.0
    %v1847 = vmax.f32 %v1735, 0.0
    %v1848 = vmax.f32 %v1736, 0.0
    %v1849 = vmax.f32 %v1737, 0.0
    %v1850 = vmax.f32 %v1738, 0.0
    %v1851 = vmax.f32 %v1739, 0.0
    %v1852 = vmax.f32 %v1740, 0.0
    %v1853 = vmax.f32 %v1741, 0.0
    %v1854 = vmax.f32 %v1742, 0.0
    %v1855 = vmax.f32 %v1743, 0.0
    %v1856 = vmax.f32 %v1744, 0.0
    %v1857 = vmax.f32 %v1745, 0.0
    %v1858 = vmax.f32 %v1746, 0.0
    %v1859 = vmax.f32 %v1747, 0.0
    %v1860 = vmax.f32 %v1748, 0.0
    %v1861 = vmax.f32 %v1749, 0.0
    %v1862 = vmax.f32 %v1750, 0.0
    %v1863 = vmax.f32 %v1751, 0.0
    %v1864 = vmax.f32 %v1752, 0.0
    %v1865 = vmax.f32 %v1753, 0.0
    %v1866 = vmax.f32 %v1754, 0.0
    %v1867 = vmax.f32 %v1755, 0.0
    %v1868 = vmax.f32 %v1756, %v1760
    %v1869 = vmax.f32 %v1757, %v1761
    %v1870 = vmax.f32 %v1758, %v1762
    %v1871 = vmax.f32 %v1759, %v1763
    %v1872 = vmax.f32 %v1764, %v1768
    %v1873 = vmax.f32 %v1765, %v1769
    %v1874 = vmax.f32 %v1766, %v1770
    %v1875 = vmax.f32 %v1767, %v1771
    %v1876 = vmax.f32 %v1772, %v1776
    %v1877 = vmax.f32 %v1773, %v1777
    %v1878 = vmax.f32 %v1774, %v1778
    %v1879 = vmax.f32 %v1775, %v1779
    %v1880 = vmax.f32 %v1780, %v1784
    %v1881 = vmax.f32 %v1781, %v1785
    %v1882 = vmax.f32 %v1782, %v1786
    %v1883 = vmax.f32 %v1783, %v1787
    %v1884 = vmax.f32 %v1788, %v1792
    %v1885 = vmax.f32 %v1789, %v1793
    %v1886 = vmax.f32 %v1790, %v1794
    %v1887 = vmax.f32 %v1791, %v1795
    %v1888 = vmax.f32 %v1796, %v1800
    %v1889 = vmax.f32 %v1797, %v1801
    %v1890 = vmax.f32 %v1798, %v1802
    %v1891 = vmax.f32 %v1799, %v1803
    %v1892 = vmax.f32 %v1804, %v1808
    %v1893 = vmax.f32 %v1805, %v1809
    %v1894 = vmax.f32 %v1806, %v1810
    %v1895 = vmax.f32 %v1807, %v1811
    %v1896 = vmax.f32 %v1812, %v1816
    %v1897 = vmax.f32 %v1813, %v1817
    %v1898 = vmax.f32 %v1814, %v1818
    %v1899 = vmax.f32 %v1815, %v1819
    %v1900 = vmax.f32 %v1820, %v1824
    %v1901 = vmax.f32 %v1821, %v1825
    %v1902 = vmax.f32 %v1822, %v1826
    %v1903 = vmax.f32 %v1823, %v1827
    %v1904 = vmax.f32 %v1828, %v1832
    %v1905 = vmax.f32 %v1829, %v1833
    %v1906 = vmax.f32 %v1830, %v1834
    %v1907 = vmax.f32 %v1831, %v1835
    %v1908 = vmax.f32 %v1836, %v1840
    %v1909 = vmax.f32 %v1837, %v1841
    %v1910 = vmax.f32 %v1838, %v1842
    %v1911 = vmax.f32 %v1839, %v1843
    %v1912 = vmax.f32 %v1844, %v1848
    %v1913 = vmax.f32 %v1845, %v1849
    %v1914 = vmax.f32 %v1846, %v1850
    %v1915 = vmax.f32 %v1847, %v1851
    %v1916 = vmax.f32 %v1852, %v1856
    %v1917 = vmax.f32 %v1853, %v1857
    %v1918 = vmax.f32 %v1854, %v1858
    %v1919 = vmax.f32 %v1855, %v1859
    %v1920 = vmax.f32 %v1860, %v1864
    %v1921 = vmax.f32 %v1861, %v1865
    %v1922 = vmax.f32 %v1862, %v1866
    %v1923 = vmax.f32 %v1863, %v1867
    %v1924 = vmax.f32 %v1868, %v1870
    %v1925 = vmax.f32 %v1869, %v1871
    %v1926 = vmax.f32 %v1872, %v1874
    %v1927 = vmax.f32 %v1873, %v1875
    %v1928 = vmax.f32 %v1876, %v1878
    %v1929 = vmax.f32 %v1877, %v1879
    %v1930 = vmax.f32 %v1880, %v1882
    %v1931 = vmax.f32 %v1881, %v1883
    %v1932 = vmax.f32 %v1884, %v1886
    %v1933 = vmax.f32 %v1885, %v1887
    %v1934 = vmax.f32 %v1888, %v1890
    %v1935 = vmax.f32 %v1889, %v1891
    %v1936 = vmax.f32 %v1892, %v1894
    %v1937 = vmax.f32 %v1893, %v1895
    %v1938 = vmax.f32 %v1896, %v1898
    %v1939 = vmax.f32 %v1897, %v1899
    %v1940 = vmax.f32 %v1900, %v1902
    %v1941 = vmax.f32 %v1901, %v1903
    %v1942 = vmax.f32 %v1904, %v1906
    %v1943 = vmax.f32 %v1905, %v1907
    %v1944 = vmax.f32 %v1908, %v1910
    %v1945 = vmax.f32 %v1909, %v1911
    %v1946 = vmax.f32 %v1912, %v1914
    %v1947 = vmax.f32 %v1913, %v1915
    %v1948 = vmax.f32 %v1916, %v1918
    %v1949 = vmax.f32 %v1917, %v1919
    %v1950 = vmax.f32 %v1920, %v1922
    %v1951 = vmax.f32 %v1921, %v1923
    %v1952 = vpack.c.bf16 %v1924, %v1924
    %v1953 = vpack.c.bf16 %v1925, %v1925
    %v1954 = vpack.c.bf16 %v1926, %v1926
    %v1955 = vpack.c.bf16 %v1927, %v1927
    %v1956 = vpack.c.bf16 %v1928, %v1928
    %v1957 = vpack.c.bf16 %v1929, %v1929
    %v1958 = vpack.c.bf16 %v1930, %v1930
    %v1959 = vpack.c.bf16 %v1931, %v1931
    %v1960 = vpack.c.bf16 %v1932, %v1932
    %v1961 = vpack.c.bf16 %v1933, %v1933
    %v1962 = vpack.c.bf16 %v1934, %v1934
    %v1963 = vpack.c.bf16 %v1935, %v1935
    %v1964 = vpack.c.bf16 %v1936, %v1936
    %v1965 = vpack.c.bf16 %v1937, %v1937
    %v1966 = vpack.c.bf16 %v1938, %v1938
    %v1967 = vpack.c.bf16 %v1939, %v1939
    %v1968 = vpack.c.bf16 %v1940, %v1940
    %v1969 = vpack.c.bf16 %v1941, %v1941
    %v1970 = vpack.c.bf16 %v1942, %v1942
    %v1971 = vpack.c.bf16 %v1943, %v1943
    %v1972 = vpack.c.bf16 %v1944, %v1944
    %v1973 = vpack.c.bf16 %v1945, %v1945
    %v1974 = vpack.c.bf16 %v1946, %v1946
    %v1975 = vpack.c.bf16 %v1947, %v1947
    %v1976 = vpack.c.bf16 %v1948, %v1948
    %v1977 = vpack.c.bf16 %v1949, %v1949
    %v1978 = vpack.c.bf16 %v1950, %v1950
    %v1979 = vpack.c.bf16 %v1951, %v1951
    %v2007 = vunpack.c.l.b16 0
    %v2008 = vunpack.c.l.b16 %v1952
    %v2009 = vunpack.c.l.b16 %v1953
    %v2010 = vunpack.c.l.b16 %v1954
    %v2011 = vunpack.c.l.b16 %v1955
    %v2012 = vunpack.c.l.b16 %v1956
    %v2013 = vunpack.c.l.b16 %v1957
    %v2014 = vunpack.c.l.b16 %v1958
    %v2015 = vunpack.c.l.b16 %v1959
    %v2016 = vunpack.c.l.b16 %v1960
    %v2017 = vunpack.c.l.b16 %v1961
    %v2018 = vunpack.c.l.b16 %v1962
    %v2019 = vunpack.c.l.b16 %v1963
    %v2020 = vunpack.c.l.b16 %v1964
    %v2021 = vunpack.c.l.b16 %v1965
    %v2022 = vunpack.c.l.b16 %v1966
    %v2023 = vunpack.c.l.b16 %v1967
    %v2024 = vunpack.c.l.b16 %v1968
    %v2025 = vunpack.c.l.b16 %v1969
    %v2026 = vunpack.c.l.b16 %v1970
    %v2027 = vunpack.c.l.b16 %v1971
    %v2028 = vunpack.c.l.b16 %v1972
    %v2029 = vunpack.c.l.b16 %v1973
    %v2030 = vunpack.c.l.b16 %v1974
    %v2031 = vunpack.c.l.b16 %v1975
    %v2032 = vunpack.c.l.b16 %v1976
    %v2033 = vunpack.c.l.b16 %v1977
    %v2034 = vld [vmem:[#allocation2] sm:$0xff]
    %v2035 = vld [vmem:[#allocation2 + $0x8] sm:$0xff]
    %v2036 = vld [vmem:[#allocation2 + $0x10] sm:$0xff]
    %v2037 = vld [vmem:[#allocation2 + $0x18] sm:$0xff]
    %v2038 = vld [vmem:[#allocation2 + $0x20] sm:$0xff]
    %v2039 = vld [vmem:[#allocation2 + $0x28] sm:$0xff]
    %v2040 = vld [vmem:[#allocation2 + $0x30] sm:$0xff]
    %v2041 = vld [vmem:[#allocation2 + $0x38] sm:$0xff]
    %v2042 = vld [vmem:[#allocation2 + $0x40] sm:$0xff]
    %v2043 = vld [vmem:[#allocation2 + $0x48] sm:$0xff]
    %v2044 = vld [vmem:[#allocation2 + $0x50] sm:$0xff]
    %v2045 = vld [vmem:[#allocation2 + $0x58] sm:$0xff]
    %v2046 = vld [vmem:[#allocation2 + $0x60] sm:$0xff]
    %v2047 = vld [vmem:[#allocation2 + $0x68] sm:$0xff]
    %v2048 = vld [vmem:[#allocation2 + $0x70] sm:$0xff]
    %v2049 = vld [vmem:[#allocation2 + $0x78] sm:$0xff]
    %v2050 = vld [vmem:[#allocation2 + $0x80] sm:$0xff]
    %v2051 = vld [vmem:[#allocation2 + $0x88] sm:$0xff]
    %v2052 = vld [vmem:[#allocation2 + $0x90] sm:$0xff]
    %v2053 = vld [vmem:[#allocation2 + $0x98] sm:$0xff]
    %v2054 = vld [vmem:[#allocation2 + $0xa0] sm:$0xff]
    %v2055 = vld [vmem:[#allocation2 + $0xa8] sm:$0xff]
    %v2056 = vld [vmem:[#allocation2 + $0xb0] sm:$0xff]
    %v2057 = vld [vmem:[#allocation2 + $0xb8] sm:$0xff]
    %v2058 = vld [vmem:[#allocation2 + $0xc0] sm:$0xff]
    %v2059 = vld [vmem:[#allocation2 + $0xc8] sm:$0xff]
    %v2060 = vld [vmem:[#allocation2 + $0xd0] sm:$0xff]
    %v2061 = vld [vmem:[#allocation2 + $0xd8] sm:$0xff]
    %v2062 = vld [vmem:[#allocation2 + $0xe0] sm:$0xff]
    %v2063 = vld [vmem:[#allocation2 + $0xe8] sm:$0xff]
    %v2064 = vld [vmem:[#allocation2 + $0xf0] sm:$0xff]
    %v2065 = vld [vmem:[#allocation2 + $0xf8] sm:$0xff]
    %v2066 = vld [vmem:[#allocation2 + $0x100] sm:$0xff]
    %v2067 = vld [vmem:[#allocation2 + $0x108] sm:$0xff]
    %v2068 = vld [vmem:[#allocation2 + $0x110] sm:$0xff]
    %v2069 = vld [vmem:[#allocation2 + $0x118] sm:$0xff]
    %v2070 = vld [vmem:[#allocation2 + $0x120] sm:$0xff]
    %v2071 = vld [vmem:[#allocation2 + $0x128] sm:$0xff]
    %v2072 = vld [vmem:[#allocation2 + $0x130] sm:$0xff]
    %v2073 = vld [vmem:[#allocation2 + $0x138] sm:$0xff]
    %v2074 = vld [vmem:[#allocation2 + $0x140] sm:$0xff]
    %v2075 = vld [vmem:[#allocation2 + $0x148] sm:$0xff]
    %v2076 = vld [vmem:[#allocation2 + $0x150] sm:$0xff]
    %v2077 = vld [vmem:[#allocation2 + $0x158] sm:$0xff]
    %v2078 = vld [vmem:[#allocation2 + $0x160] sm:$0xff]
    %v2079 = vld [vmem:[#allocation2 + $0x168] sm:$0xff]
    %v2080 = vld [vmem:[#allocation2 + $0x170] sm:$0xff]
    %v2081 = vld [vmem:[#allocation2 + $0x178] sm:$0xff]
    %v2082 = vld [vmem:[#allocation2 + $0x180] sm:$0xff]
    %v2083 = vld [vmem:[#allocation2 + $0x188] sm:$0xff]
    %v2084 = vld [vmem:[#allocation2 + $0x190] sm:$0xff]
    %v2085 = vld [vmem:[#allocation2 + $0x198] sm:$0xff]
    %v2086 = vld [vmem:[#allocation2 + $0x1a0] sm:$0xff]
    %v2087 = vld [vmem:[#allocation2 + $0x1a8] sm:$0xff]
    %v2088 = vld [vmem:[#allocation2 + $0x1b0] sm:$0xff]
    %v2089 = vld [vmem:[#allocation2 + $0x1b8] sm:$0xff]
    %v2090 = vld [vmem:[#allocation2 + $0x1c0] sm:$0xff]
    %v2091 = vld [vmem:[#allocation2 + $0x1c8] sm:$0xff]
    %v2092 = vld [vmem:[#allocation2 + $0x1d0] sm:$0xff]
    %v2093 = vld [vmem:[#allocation2 + $0x1d8] sm:$0xff]
    %v2094 = vld [vmem:[#allocation2 + $0x1e0] sm:$0xff]
    %v2095 = vld [vmem:[#allocation2 + $0x1e8] sm:$0xff]
    %v2096 = vld [vmem:[#allocation2 + $0x1f0] sm:$0xff]
    %v2097 = vld [vmem:[#allocation2 + $0x1f8] sm:$0xff]
    %v2100 = vunpack.c.l.b16 %v1978
    %v2101 = vunpack.c.l.b16 %v1979
    %s2102 = scalar_lea.vmem [#allocation2], 512
    %v2103 = vld [vmem:[%s2102] sm:$0xff]
    %v2104 = vld [vmem:[%s2102 + $0x8] sm:$0xff]
    %v2105 = vld [vmem:[%s2102 + $0x10] sm:$0xff]
    %v2106 = vld [vmem:[%s2102 + $0x18] sm:$0xff]
    %v2107 = vld [vmem:[%s2102 + $0x20] sm:$0xff]
    %v2108 = vld [vmem:[%s2102 + $0x28] sm:$0xff]
    %v2109 = vld [vmem:[%s2102 + $0x30] sm:$0xff]
    %v2110 = vld [vmem:[%s2102 + $0x38] sm:$0xff]
    %v2111 = vld [vmem:[%s2102 + $0x40] sm:$0xff]
    %v2112 = vld [vmem:[%s2102 + $0x48] sm:$0xff]
    %v2113 = vld [vmem:[%s2102 + $0x50] sm:$0xff]
    %v2114 = vld [vmem:[%s2102 + $0x58] sm:$0xff]
    %v2115 = vld [vmem:[%s2102 + $0x60] sm:$0xff]
    %v2116 = vld [vmem:[%s2102 + $0x68] sm:$0xff]
    %v2117 = vld [vmem:[%s2102 + $0x70] sm:$0xff]
    %v2118 = vld [vmem:[%s2102 + $0x78] sm:$0xff]
    %v2119 = vld [vmem:[%s2102 + $0x80] sm:$0xff]
    %v2120 = vld [vmem:[%s2102 + $0x88] sm:$0xff]
    %v2121 = vld [vmem:[%s2102 + $0x90] sm:$0xff]
    %v2122 = vld [vmem:[%s2102 + $0x98] sm:$0xff]
    %v2123 = vld [vmem:[%s2102 + $0xa0] sm:$0xff]
    %v2124 = vld [vmem:[%s2102 + $0xa8] sm:$0xff]
    %v2125 = vld [vmem:[%s2102 + $0xb0] sm:$0xff]
    %v2126 = vld [vmem:[%s2102 + $0xb8] sm:$0xff]
    %v2127 = vld [vmem:[%s2102 + $0xc0] sm:$0xff]
    %v2128 = vld [vmem:[%s2102 + $0xc8] sm:$0xff]
    %v2129 = vld [vmem:[%s2102 + $0xd0] sm:$0xff]
    %v2130 = vld [vmem:[%s2102 + $0xd8] sm:$0xff]
    %v2131 = vld [vmem:[%s2102 + $0xe0] sm:$0xff]
    %v2132 = vld [vmem:[%s2102 + $0xe8] sm:$0xff]
    %v2133 = vld [vmem:[%s2102 + $0xf0] sm:$0xff]
    %v2134 = vld [vmem:[%s2102 + $0xf8] sm:$0xff]
    %v2135 = vld [vmem:[%s2102 + $0x100] sm:$0xff]
    %v2136 = vld [vmem:[%s2102 + $0x108] sm:$0xff]
    %v2137 = vld [vmem:[%s2102 + $0x110] sm:$0xff]
    %v2138 = vld [vmem:[%s2102 + $0x118] sm:$0xff]
    %v2139 = vld [vmem:[%s2102 + $0x120] sm:$0xff]
    %v2140 = vld [vmem:[%s2102 + $0x128] sm:$0xff]
    %v2141 = vld [vmem:[%s2102 + $0x130] sm:$0xff]
    %v2142 = vld [vmem:[%s2102 + $0x138] sm:$0xff]
    %v2143 = vld [vmem:[%s2102 + $0x140] sm:$0xff]
    %v2144 = vld [vmem:[%s2102 + $0x148] sm:$0xff]
    %v2145 = vld [vmem:[%s2102 + $0x150] sm:$0xff]
    %v2146 = vld [vmem:[%s2102 + $0x158] sm:$0xff]
    %v2147 = vld [vmem:[%s2102 + $0x160] sm:$0xff]
    %v2148 = vld [vmem:[%s2102 + $0x168] sm:$0xff]
    %v2149 = vld [vmem:[%s2102 + $0x170] sm:$0xff]
    %v2150 = vld [vmem:[%s2102 + $0x178] sm:$0xff]
    %v2151 = vld [vmem:[%s2102 + $0x180] sm:$0xff]
    %v2152 = vld [vmem:[%s2102 + $0x188] sm:$0xff]
    %v2153 = vld [vmem:[%s2102 + $0x190] sm:$0xff]
    %v2154 = vld [vmem:[%s2102 + $0x198] sm:$0xff]
    %v2155 = vld [vmem:[%s2102 + $0x1a0] sm:$0xff]
    %v2156 = vld [vmem:[%s2102 + $0x1a8] sm:$0xff]
    %v2157 = vld [vmem:[%s2102 + $0x1b0] sm:$0xff]
    %v2158 = vld [vmem:[%s2102 + $0x1b8] sm:$0xff]
    %v2159 = vld [vmem:[%s2102 + $0x1c0] sm:$0xff]
    %v2160 = vld [vmem:[%s2102 + $0x1c8] sm:$0xff]
    %v2161 = vld [vmem:[%s2102 + $0x1d0] sm:$0xff]
    %v2162 = vld [vmem:[%s2102 + $0x1d8] sm:$0xff]
    %v2163 = vld [vmem:[%s2102 + $0x1e0] sm:$0xff]
    %v2164 = vld [vmem:[%s2102 + $0x1e8] sm:$0xff]
    %v2165 = vld [vmem:[%s2102 + $0x1f0] sm:$0xff]
    %v2166 = vld [vmem:[%s2102 + $0x1f8] sm:$0xff]
    %v2167 = vpack.c.b16 %v2010, %v2008
    %v2168 = vpack.c.b16 %v2011, %v2009
    %v2169 = vpack.c.b16 %v2014, %v2012
    %v2170 = vpack.c.b16 %v2015, %v2013
    %v2171 = vpack.c.b16 %v2018, %v2016
    %v2172 = vpack.c.b16 %v2019, %v2017
    %v2173 = vpack.c.b16 %v2022, %v2020
    %v2174 = vpack.c.b16 %v2023, %v2021
    %v2175 = vpack.c.b16 %v2026, %v2024
    %v2176 = vpack.c.b16 %v2027, %v2025
    %v2177 = vpack.c.b16 %v2030, %v2028
    %v2178 = vpack.c.b16 %v2031, %v2029
    %v2179 = vpack.c.b16 %v2100, %v2032
    %v2180 = vpack.c.b16 %v2101, %v2033
    %v2259 = vunpack.c.l.b16 %v2103
    %v2260 = vunpack.c.h.b16 %v2103
    %v2261 = vunpack.c.l.b16 %v2104
    %v2262 = vunpack.c.h.b16 %v2104
    %v2263 = vunpack.c.l.b16 %v2105
    %v2264 = vunpack.c.h.b16 %v2105
    %v2265 = vunpack.c.l.b16 %v2106
    %v2266 = vunpack.c.h.b16 %v2106
    %v2267 = vunpack.c.l.b16 %v2107
    %v2268 = vunpack.c.h.b16 %v2107
    %v2269 = vunpack.c.l.b16 %v2108
    %v2270 = vunpack.c.h.b16 %v2108
    %v2271 = vunpack.c.l.b16 %v2109
    %v2272 = vunpack.c.h.b16 %v2109
    %v2273 = vunpack.c.l.b16 %v2110
    %v2274 = vunpack.c.h.b16 %v2110
    %v2275 = vunpack.c.l.b16 %v2111
    %v2276 = vunpack.c.h.b16 %v2111
    %v2277 = vunpack.c.l.b16 %v2112
    %v2278 = vunpack.c.h.b16 %v2112
    %v2279 = vunpack.c.l.b16 %v2113
    %v2280 = vunpack.c.h.b16 %v2113
    %v2281 = vunpack.c.l.b16 %v2114
    %v2282 = vunpack.c.h.b16 %v2114
    %v2283 = vunpack.c.l.b16 %v2115
    %v2284 = vunpack.c.h.b16 %v2115
    %v2285 = vunpack.c.l.b16 %v2116
    %v2286 = vunpack.c.h.b16 %v2116
    %v2287 = vunpack.c.l.b16 %v2117
    %v2288 = vunpack.c.h.b16 %v2117
    %v2289 = vunpack.c.l.b16 %v2118
    %v2290 = vunpack.c.h.b16 %v2118
    %v2291 = vunpack.c.l.b16 %v2119
    %v2292 = vunpack.c.h.b16 %v2119
    %v2293 = vunpack.c.l.b16 %v2120
    %v2294 = vunpack.c.h.b16 %v2120
    %v2295 = vunpack.c.l.b16 %v2121
    %v2296 = vunpack.c.h.b16 %v2121
    %v2297 = vunpack.c.l.b16 %v2122
    %v2298 = vunpack.c.h.b16 %v2122
    %v2299 = vunpack.c.l.b16 %v2123
    %v2300 = vunpack.c.h.b16 %v2123
    %v2301 = vunpack.c.l.b16 %v2124
    %v2302 = vunpack.c.h.b16 %v2124
    %v2303 = vunpack.c.l.b16 %v2125
    %v2304 = vunpack.c.h.b16 %v2125
    %v2305 = vunpack.c.l.b16 %v2126
    %v2306 = vunpack.c.h.b16 %v2126
    %v2307 = vunpack.c.l.b16 %v2127
    %v2308 = vunpack.c.h.b16 %v2127
    %v2309 = vunpack.c.l.b16 %v2128
    %v2310 = vunpack.c.h.b16 %v2128
    %v2311 = vunpack.c.l.b16 %v2129
    %v2312 = vunpack.c.h.b16 %v2129
    %v2313 = vunpack.c.l.b16 %v2130
    %v2314 = vunpack.c.h.b16 %v2130
    %v2315 = vunpack.c.l.b16 %v2131
    %v2316 = vunpack.c.h.b16 %v2131
    %v2317 = vunpack.c.l.b16 %v2132
    %v2318 = vunpack.c.h.b16 %v2132
    %v2319 = vunpack.c.l.b16 %v2133
    %v2320 = vunpack.c.h.b16 %v2133
    %v2321 = vunpack.c.l.b16 %v2134
    %v2322 = vunpack.c.h.b16 %v2134
    %v2323 = vunpack.c.l.b16 %v2135
    %v2324 = vunpack.c.h.b16 %v2135
    %v2325 = vunpack.c.l.b16 %v2136
    %v2326 = vunpack.c.h.b16 %v2136
    %v2327 = vunpack.c.l.b16 %v2137
    %v2328 = vunpack.c.h.b16 %v2137
    %v2329 = vunpack.c.l.b16 %v2138
    %v2330 = vunpack.c.h.b16 %v2138
    %v2331 = vunpack.c.l.b16 %v2139
    %v2332 = vunpack.c.h.b16 %v2139
    %v2333 = vunpack.c.l.b16 %v2140
    %v2334 = vunpack.c.h.b16 %v2140
    %v2335 = vunpack.c.l.b16 %v2141
    %v2336 = vunpack.c.h.b16 %v2141
    %v2337 = vunpack.c.l.b16 %v2142
    %v2338 = vunpack.c.h.b16 %v2142
    %v2339 = vunpack.c.l.b16 %v2143
    %v2340 = vunpack.c.h.b16 %v2143
    %v2341 = vunpack.c.l.b16 %v2144
    %v2342 = vunpack.c.h.b16 %v2144
    %v2343 = vunpack.c.l.b16 %v2145
    %v2344 = vunpack.c.h.b16 %v2145
    %v2345 = vunpack.c.l.b16 %v2146
    %v2346 = vunpack.c.h.b16 %v2146
    %v2347 = vunpack.c.l.b16 %v2147
    %v2348 = vunpack.c.h.b16 %v2147
    %v2349 = vunpack.c.l.b16 %v2148
    %v2350 = vunpack.c.h.b16 %v2148
    %v2351 = vunpack.c.l.b16 %v2149
    %v2352 = vunpack.c.h.b16 %v2149
    %v2353 = vunpack.c.l.b16 %v2150
    %v2354 = vunpack.c.h.b16 %v2150
    %v2355 = vunpack.c.l.b16 %v2151
    %v2356 = vunpack.c.h.b16 %v2151
    %v2357 = vunpack.c.l.b16 %v2152
    %v2358 = vunpack.c.h.b16 %v2152
    %v2359 = vunpack.c.l.b16 %v2153
    %v2360 = vunpack.c.h.b16 %v2153
    %v2361 = vunpack.c.l.b16 %v2154
    %v2362 = vunpack.c.h.b16 %v2154
    %v2363 = vunpack.c.l.b16 %v2155
    %v2364 = vunpack.c.h.b16 %v2155
    %v2365 = vunpack.c.l.b16 %v2156
    %v2366 = vunpack.c.h.b16 %v2156
    %v2367 = vunpack.c.l.b16 %v2157
    %v2368 = vunpack.c.h.b16 %v2157
    %v2369 = vunpack.c.l.b16 %v2158
    %v2370 = vunpack.c.h.b16 %v2158
    %v2371 = vunpack.c.l.b16 %v2159
    %v2372 = vunpack.c.h.b16 %v2159
    %v2373 = vunpack.c.l.b16 %v2160
    %v2374 = vunpack.c.h.b16 %v2160
    %v2375 = vunpack.c.l.b16 %v2161
    %v2376 = vunpack.c.h.b16 %v2161
    %v2377 = vunpack.c.l.b16 %v2162
    %v2378 = vunpack.c.h.b16 %v2162
    %v2379 = vunpack.c.l.b16 %v2163
    %v2380 = vunpack.c.h.b16 %v2163
    %v2381 = vunpack.c.l.b16 %v2164
    %v2382 = vunpack.c.h.b16 %v2164
    %v2383 = vunpack.c.l.b16 %v2165
    %v2384 = vunpack.c.h.b16 %v2165
    %v2385 = vunpack.c.l.b16 %v2166
    %v2386 = vunpack.c.h.b16 %v2166
    %v2387 = vpack.c.b16 %v2263, %v2259
    %v2388 = vpack.c.b16 %v2264, %v2260
    %v2389 = vpack.c.b16 %v2265, %v2261
    %v2390 = vpack.c.b16 %v2266, %v2262
    %v2391 = vpack.c.b16 %v2271, %v2267
    %v2392 = vpack.c.b16 %v2272, %v2268
    %v2393 = vpack.c.b16 %v2273, %v2269
    %v2394 = vpack.c.b16 %v2274, %v2270
    %v2395 = vpack.c.b16 %v2279, %v2275
    %v2396 = vpack.c.b16 %v2280, %v2276
    %v2397 = vpack.c.b16 %v2281, %v2277
    %v2398 = vpack.c.b16 %v2282, %v2278
    %v2399 = vpack.c.b16 %v2287, %v2283
    %v2400 = vpack.c.b16 %v2288, %v2284
    %v2401 = vpack.c.b16 %v2289, %v2285
    %v2402 = vpack.c.b16 %v2290, %v2286
    %v2403 = vpack.c.b16 %v2295, %v2291
    %v2404 = vpack.c.b16 %v2296, %v2292
    %v2405 = vpack.c.b16 %v2297, %v2293
    %v2406 = vpack.c.b16 %v2298, %v2294
    %v2407 = vpack.c.b16 %v2303, %v2299
    %v2408 = vpack.c.b16 %v2304, %v2300
    %v2409 = vpack.c.b16 %v2305, %v2301
    %v2410 = vpack.c.b16 %v2306, %v2302
    %v2411 = vpack.c.b16 %v2311, %v2307
    %v2412 = vpack.c.b16 %v2312, %v2308
    %v2413 = vpack.c.b16 %v2313, %v2309
    %v2414 = vpack.c.b16 %v2314, %v2310
    %v2415 = vpack.c.b16 %v2319, %v2315
    %v2416 = vpack.c.b16 %v2320, %v2316
    %v2417 = vpack.c.b16 %v2321, %v2317
    %v2418 = vpack.c.b16 %v2322, %v2318
    %v2419 = vpack.c.b16 %v2327, %v2323
    %v2420 = vpack.c.b16 %v2328, %v2324
    %v2421 = vpack.c.b16 %v2329, %v2325
    %v2422 = vpack.c.b16 %v2330, %v2326
    %v2423 = vpack.c.b16 %v2335, %v2331
    %v2424 = vpack.c.b16 %v2336, %v2332
    %v2425 = vpack.c.b16 %v2337, %v2333
    %v2426 = vpack.c.b16 %v2338, %v2334
    %v2427 = vpack.c.b16 %v2343, %v2339
    %v2428 = vpack.c.b16 %v2344, %v2340
    %v2429 = vpack.c.b16 %v2345, %v2341
    %v2430 = vpack.c.b16 %v2346, %v2342
    %v2431 = vpack.c.b16 %v2351, %v2347
    %v2432 = vpack.c.b16 %v2352, %v2348
    %v2433 = vpack.c.b16 %v2353, %v2349
    %v2434 = vpack.c.b16 %v2354, %v2350
    %v2435 = vpack.c.b16 %v2359, %v2355
    %v2436 = vpack.c.b16 %v2360, %v2356
    %v2437 = vpack.c.b16 %v2361, %v2357
    %v2438 = vpack.c.b16 %v2362, %v2358
    %v2439 = vpack.c.b16 %v2367, %v2363
    %v2440 = vpack.c.b16 %v2368, %v2364
    %v2441 = vpack.c.b16 %v2369, %v2365
    %v2442 = vpack.c.b16 %v2370, %v2366
    %v2443 = vpack.c.b16 %v2375, %v2371
    %v2444 = vpack.c.b16 %v2376, %v2372
    %v2445 = vpack.c.b16 %v2377, %v2373
    %v2446 = vpack.c.b16 %v2378, %v2374
    %v2447 = vpack.c.b16 %v2383, %v2379
    %v2448 = vpack.c.b16 %v2384, %v2380
    %v2449 = vpack.c.b16 %v2385, %v2381
    %v2450 = vpack.c.b16 %v2386, %v2382
    %2515 = vmatprep.subr.bf16.mxu0 %v2388
    %2516 = vmatpush1.bf16.msra.mxu0 %v2387
    %2517 = vmatprep.subr.bf16.mxu0 %v2392
    %2518 = vmatpush1.bf16.msra.mxu0 %v2391
    %2519 = vmatprep.subr.bf16.mxu0 %v2396
    %2520 = vmatpush1.bf16.msra.mxu0 %v2395
    %2521 = vmatprep.subr.bf16.mxu0 %v2400
    %2522 = vmatpush1.bf16.msra.mxu0 %v2399
    %2523 = vmatprep.subr.bf16.mxu0 %v2404
    %2524 = vmatpush1.bf16.msra.mxu0 %v2403
    %2525 = vmatprep.subr.bf16.mxu0 %v2408
    %2526 = vmatpush1.bf16.msra.mxu0 %v2407
    %2527 = vmatprep.subr.bf16.mxu0 %v2412
    %2528 = vmatpush1.bf16.msra.mxu0 %v2411
    %2529 = vmatprep.subr.bf16.mxu0 %v2416
    %2530 = vmatpush1.bf16.msra.mxu0 %v2415
    %2531 = vmatprep.subr.bf16.mxu0 %v2420
    %2532 = vmatpush1.bf16.msra.mxu0 %v2419
    %2533 = vmatprep.subr.bf16.mxu0 %v2424
    %2534 = vmatpush1.bf16.msra.mxu0 %v2423
    %2535 = vmatprep.subr.bf16.mxu0 %v2428
    %2536 = vmatpush1.bf16.msra.mxu0 %v2427
    %2537 = vmatprep.subr.bf16.mxu0 %v2432
    %2538 = vmatpush1.bf16.msra.mxu0 %v2431
    %2539 = vmatprep.subr.bf16.mxu0 %v2436
    %2540 = vmatpush1.bf16.msra.mxu0 %v2435
    %2541 = vmatprep.subr.bf16.mxu0 %v2440
    %2542 = vmatpush1.bf16.msra.mxu0 %v2439
    %2543 = vmatprep.subr.bf16.mxu0 %v2444
    %2544 = vmatpush1.bf16.msra.mxu0 %v2443
    %2545 = vmatprep.subr.bf16.mxu0 %v2448
    %2546 = vmatpush1.bf16.msra.mxu0 %v2447
    %2547 = vmatprep.mubr.bf16.mxu0 %v2168
    %2548 = vmatmul.mubr.bf16.gmra.mrb[0].mxu0 %v2167
    %v2549 = vpop.f32.mrb[0].mxu0
    %v2550 = vadd.f32 0.0, %v2549
    %v2551 = vpop.f32.mrb[0].mxu0
    %v2552 = vadd.f32 0.0, %v2551
    %v2553 = vpop.f32.mrb[0].mxu0
    %v2554 = vadd.f32 0.0, %v2553
    %v2555 = vpop.f32.mrb[0].mxu0
    %v2556 = vadd.f32 0.0, %v2555
    %2557 = vmatprep.mubr.bf16.mxu0 %v2170
    %2558 = vmatmul.mubr.bf16.gmra.mrb[0].mxu0 %v2169
    %v2559 = vpop.f32.mrb[0].mxu0
    %v2560 = vadd.f32 0.0, %v2559
    %v2561 = vpop.f32.mrb[0].mxu0
    %v2562 = vadd.f32 0.0, %v2561
    %v2563 = vpop.f32.mrb[0].mxu0
    %v2564 = vadd.f32 0.0, %v2563
    %v2565 = vpop.f32.mrb[0].mxu0
    %v2566 = vadd.f32 0.0, %v2565
    %2567 = vmatprep.mubr.bf16.mxu0 %v2172
    %2568 = vmatmul.mubr.bf16.gmra.mrb[0].mxu0 %v2171
    %v2569 = vpop.f32.mrb[0].mxu0
    %v2570 = vadd.f32 0.0, %v2569
    %v2571 = vpop.f32.mrb[0].mxu0
    %v2572 = vadd.f32 0.0, %v2571
    %v2573 = vpop.f32.mrb[0].mxu0
    %v2574 = vadd.f32 0.0, %v2573
    %v2575 = vpop.f32.mrb[0].mxu0
    %v2576 = vadd.f32 0.0, %v2575
    %2577 = vmatprep.mubr.bf16.mxu0 %v2174
    %2578 = vmatmul.mubr.bf16.gmra.mrb[0].mxu0 %v2173
    %v2579 = vpop.f32.mrb[0].mxu0
    %v2580 = vadd.f32 0.0, %v2579
    %v2581 = vpop.f32.mrb[0].mxu0
    %v2582 = vadd.f32 0.0, %v2581
    %v2583 = vpop.f32.mrb[0].mxu0
    %v2584 = vadd.f32 0.0, %v2583
    %v2585 = vpop.f32.mrb[0].mxu0
    %v2586 = vadd.f32 0.0, %v2585
    %2587 = vmatprep.mubr.bf16.mxu0 %v2176
    %2588 = vmatmul.mubr.bf16.gmra.mrb[0].mxu0 %v2175
    %v2589 = vpop.f32.mrb[0].mxu0
    %v2590 = vadd.f32 0.0, %v2589
    %v2591 = vpop.f32.mrb[0].mxu0
    %v2592 = vadd.f32 0.0, %v2591
    %v2593 = vpop.f32.mrb[0].mxu0
    %v2594 = vadd.f32 0.0, %v2593
    %v2595 = vpop.f32.mrb[0].mxu0
    %v2596 = vadd.f32 0.0, %v2595
    %2597 = vmatprep.mubr.bf16.mxu0 %v2178
    %2598 = vmatmul.mubr.bf16.gmra.mrb[0].mxu0 %v2177
    %v2599 = vpop.f32.mrb[0].mxu0
    %v2600 = vadd.f32 0.0, %v2599
    %v2601 = vpop.f32.mrb[0].mxu0
    %v2602 = vadd.f32 0.0, %v2601
    %v2603 = vpop.f32.mrb[0].mxu0
    %v2604 = vadd.f32 0.0, %v2603
    %v2605 = vpop.f32.mrb[0].mxu0
    %v2606 = vadd.f32 0.0, %v2605
    %2607 = vmatprep.mubr.bf16.mxu0 %v2180
    %2608 = vmatmul.mubr.bf16.gmra.mrb[0].mxu0 %v2179
    %v2609 = vpop.f32.mrb[0].mxu0
    %v2610 = vadd.f32 0.0, %v2609
    %v2611 = vpop.f32.mrb[0].mxu0
    %v2612 = vadd.f32 0.0, %v2611
    %v2613 = vpop.f32.mrb[0].mxu0
    %v2614 = vadd.f32 0.0, %v2613
    %v2615 = vpop.f32.mrb[0].mxu0
    %v2616 = vadd.f32 0.0, %v2615
    %2617 = vdwg.mxu0
    %2618 = vmatprep.subr.bf16.mxu0 %v2390
    %2619 = vmatpush1.bf16.msra.mxu0 %v2389
    %2620 = vmatprep.subr.bf16.mxu0 %v2394
    %2621 = vmatpush1.bf16.msra.mxu0 %v2393
    %2622 = vmatprep.subr.bf16.mxu0 %v2398
    %2623 = vmatpush1.bf16.msra.mxu0 %v2397
    %2624 = vmatprep.subr.bf16.mxu0 %v2402
    %2625 = vmatpush1.bf16.msra.mxu0 %v2401
    %2626 = vmatprep.subr.bf16.mxu0 %v2406
    %2627 = vmatpush1.bf16.msra.mxu0 %v2405
    %2628 = vmatprep.subr.bf16.mxu0 %v2410
    %2629 = vmatpush1.bf16.msra.mxu0 %v2409
    %2630 = vmatprep.subr.bf16.mxu0 %v2414
    %2631 = vmatpush1.bf16.msra.mxu0 %v2413
    %2632 = vmatprep.subr.bf16.mxu0 %v2418
    %2633 = vmatpush1.bf16.msra.mxu0 %v2417
    %2634 = vmatprep.subr.bf16.mxu0 %v2422
    %2635 = vmatpush1.bf16.msra.mxu0 %v2421
    %2636 = vmatprep.subr.bf16.mxu0 %v2426
    %2637 = vmatpush1.bf16.msra.mxu0 %v2425
    %2638 = vmatprep.subr.bf16.mxu0 %v2430
    %2639 = vmatpush1.bf16.msra.mxu0 %v2429
    %2640 = vmatprep.subr.bf16.mxu0 %v2434
    %2641 = vmatpush1.bf16.msra.mxu0 %v2433
    %2642 = vmatprep.subr.bf16.mxu0 %v2438
    %2643 = vmatpush1.bf16.msra.mxu0 %v2437
    %2644 = vmatprep.subr.bf16.mxu0 %v2442
    %2645 = vmatpush1.bf16.msra.mxu0 %v2441
    %2646 = vmatprep.subr.bf16.mxu0 %v2446
    %2647 = vmatpush1.bf16.msra.mxu0 %v2445
    %2648 = vmatprep.subr.bf16.mxu0 %v2450
    %2649 = vmatpush1.bf16.msra.mxu0 %v2449
    %2650 = vmatprep.mubr.bf16.mxu0 %v2168
    %2651 = vmatmul.mubr.bf16.gmra.mrb[0].mxu0 %v2167
    %v2652 = vpop.f32.mrb[0].mxu0
    %v2653 = vadd.f32 0.0, %v2652
    %v2654 = vpop.f32.mrb[0].mxu0
    %v2655 = vadd.f32 0.0, %v2654
    %v2656 = vpop.f32.mrb[0].mxu0
    %v2657 = vadd.f32 0.0, %v2656
    %v2658 = vpop.f32.mrb[0].mxu0
    %v2659 = vadd.f32 0.0, %v2658
    %2660 = vmatprep.mubr.bf16.mxu0 %v2170
    %2661 = vmatmul.mubr.bf16.gmra.mrb[0].mxu0 %v2169
    %v2662 = vpop.f32.mrb[0].mxu0
    %v2663 = vadd.f32 0.0, %v2662
    %v2664 = vpop.f32.mrb[0].mxu0
    %v2665 = vadd.f32 0.0, %v2664
    %v2666 = vpop.f32.mrb[0].mxu0
    %v2667 = vadd.f32 0.0, %v2666
    %v2668 = vpop.f32.mrb[0].mxu0
    %v2669 = vadd.f32 0.0, %v2668
    %2670 = vmatprep.mubr.bf16.mxu0 %v2172
    %2671 = vmatmul.mubr.bf16.gmra.mrb[0].mxu0 %v2171
    %v2672 = vpop.f32.mrb[0].mxu0
    %v2673 = vadd.f32 0.0, %v2672
    %v2674 = vpop.f32.mrb[0].mxu0
    %v2675 = vadd.f32 0.0, %v2674
    %v2676 = vpop.f32.mrb[0].mxu0
    %v2677 = vadd.f32 0.0, %v2676
    %v2678 = vpop.f32.mrb[0].mxu0
    %v2679 = vadd.f32 0.0, %v2678
    %2680 = vmatprep.mubr.bf16.mxu0 %v2174
    %2681 = vmatmul.mubr.bf16.gmra.mrb[0].mxu0 %v2173
    %v2682 = vpop.f32.mrb[0].mxu0
    %v2683 = vadd.f32 0.0, %v2682
    %v2684 = vpop.f32.mrb[0].mxu0
    %v2685 = vadd.f32 0.0, %v2684
    %v2686 = vpop.f32.mrb[0].mxu0
    %v2687 = vadd.f32 0.0, %v2686
    %v2688 = vpop.f32.mrb[0].mxu0
    %v2689 = vadd.f32 0.0, %v2688
    %2690 = vmatprep.mubr.bf16.mxu0 %v2176
    %2691 = vmatmul.mubr.bf16.gmra.mrb[0].mxu0 %v2175
    %v2692 = vpop.f32.mrb[0].mxu0
    %v2693 = vadd.f32 0.0, %v2692
    %v2694 = vpop.f32.mrb[0].mxu0
    %v2695 = vadd.f32 0.0, %v2694
    %v2696 = vpop.f32.mrb[0].mxu0
    %v2697 = vadd.f32 0.0, %v2696
    %v2698 = vpop.f32.mrb[0].mxu0
    %v2699 = vadd.f32 0.0, %v2698
    %2700 = vmatprep.mubr.bf16.mxu0 %v2178
    %2701 = vmatmul.mubr.bf16.gmra.mrb[0].mxu0 %v2177
    %v2702 = vpop.f32.mrb[0].mxu0
    %v2703 = vadd.f32 0.0, %v2702
    %v2704 = vpop.f32.mrb[0].mxu0
    %v2705 = vadd.f32 0.0, %v2704
    %v2706 = vpop.f32.mrb[0].mxu0
    %v2707 = vadd.f32 0.0, %v2706
    %v2708 = vpop.f32.mrb[0].mxu0
    %v2709 = vadd.f32 0.0, %v2708
    %2710 = vmatprep.mubr.bf16.mxu0 %v2180
    %2711 = vmatmul.mubr.bf16.gmra.mrb[0].mxu0 %v2179
    %v2712 = vpop.f32.mrb[0].mxu0
    %v2713 = vadd.f32 0.0, %v2712
    %v2714 = vpop.f32.mrb[0].mxu0
    %v2715 = vadd.f32 0.0, %v2714
    %v2716 = vpop.f32.mrb[0].mxu0
    %v2717 = vadd.f32 0.0, %v2716
    %v2718 = vpop.f32.mrb[0].mxu0
    %v2719 = vadd.f32 0.0, %v2718
    %2720 = vdwg.mxu0
    %v2721 = vpack.c.b16 %v2008, %v2007
    %v2722 = vpack.c.b16 %v2009, %v2007
    %v2723 = vpack.c.b16 %v2012, %v2010
    %v2724 = vpack.c.b16 %v2013, %v2011
    %v2725 = vpack.c.b16 %v2016, %v2014
    %v2726 = vpack.c.b16 %v2017, %v2015
    %v2727 = vpack.c.b16 %v2020, %v2018
    %v2728 = vpack.c.b16 %v2021, %v2019
    %v2729 = vpack.c.b16 %v2024, %v2022
    %v2730 = vpack.c.b16 %v2025, %v2023
    %v2731 = vpack.c.b16 %v2028, %v2026
    %v2732 = vpack.c.b16 %v2029, %v2027
    %v2733 = vpack.c.b16 %v2032, %v2030
    %v2734 = vpack.c.b16 %v2033, %v2031
    %v2813 = vunpack.c.l.b16 %v2034
    %v2814 = vunpack.c.h.b16 %v2034
    %v2815 = vunpack.c.l.b16 %v2035
    %v2816 = vunpack.c.h.b16 %v2035
    %v2817 = vunpack.c.l.b16 %v2036
    %v2818 = vunpack.c.h.b16 %v2036
    %v2819 = vunpack.c.l.b16 %v2037
    %v2820 = vunpack.c.h.b16 %v2037
    %v2821 = vunpack.c.l.b16 %v2038
    %v2822 = vunpack.c.h.b16 %v2038
    %v2823 = vunpack.c.l.b16 %v2039
    %v2824 = vunpack.c.h.b16 %v2039
    %v2825 = vunpack.c.l.b16 %v2040
    %v2826 = vunpack.c.h.b16 %v2040
    %v2827 = vunpack.c.l.b16 %v2041
    %v2828 = vunpack.c.h.b16 %v2041
    %v2829 = vunpack.c.l.b16 %v2042
    %v2830 = vunpack.c.h.b16 %v2042
    %v2831 = vunpack.c.l.b16 %v2043
    %v2832 = vunpack.c.h.b16 %v2043
    %v2833 = vunpack.c.l.b16 %v2044
    %v2834 = vunpack.c.h.b16 %v2044
    %v2835 = vunpack.c.l.b16 %v2045
    %v2836 = vunpack.c.h.b16 %v2045
    %v2837 = vunpack.c.l.b16 %v2046
    %v2838 = vunpack.c.h.b16 %v2046
    %v2839 = vunpack.c.l.b16 %v2047
    %v2840 = vunpack.c.h.b16 %v2047
    %v2841 = vunpack.c.l.b16 %v2048
    %v2842 = vunpack.c.h.b16 %v2048
    %v2843 = vunpack.c.l.b16 %v2049
    %v2844 = vunpack.c.h.b16 %v2049
    %v2845 = vunpack.c.l.b16 %v2050
    %v2846 = vunpack.c.h.b16 %v2050
    %v2847 = vunpack.c.l.b16 %v2051
    %v2848 = vunpack.c.h.b16 %v2051
    %v2849 = vunpack.c.l.b16 %v2052
    %v2850 = vunpack.c.h.b16 %v2052
    %v2851 = vunpack.c.l.b16 %v2053
    %v2852 = vunpack.c.h.b16 %v2053
    %v2853 = vunpack.c.l.b16 %v2054
    %v2854 = vunpack.c.h.b16 %v2054
    %v2855 = vunpack.c.l.b16 %v2055
    %v2856 = vunpack.c.h.b16 %v2055
    %v2857 = vunpack.c.l.b16 %v2056
    %v2858 = vunpack.c.h.b16 %v2056
    %v2859 = vunpack.c.l.b16 %v2057
    %v2860 = vunpack.c.h.b16 %v2057
    %v2861 = vunpack.c.l.b16 %v2058
    %v2862 = vunpack.c.h.b16 %v2058
    %v2863 = vunpack.c.l.b16 %v2059
    %v2864 = vunpack.c.h.b16 %v2059
    %v2865 = vunpack.c.l.b16 %v2060
    %v2866 = vunpack.c.h.b16 %v2060
    %v2867 = vunpack.c.l.b16 %v2061
    %v2868 = vunpack.c.h.b16 %v2061
    %v2869 = vunpack.c.l.b16 %v2062
    %v2870 = vunpack.c.h.b16 %v2062
    %v2871 = vunpack.c.l.b16 %v2063
    %v2872 = vunpack.c.h.b16 %v2063
    %v2873 = vunpack.c.l.b16 %v2064
    %v2874 = vunpack.c.h.b16 %v2064
    %v2875 = vunpack.c.l.b16 %v2065
    %v2876 = vunpack.c.h.b16 %v2065
    %v2877 = vunpack.c.l.b16 %v2066
    %v2878 = vunpack.c.h.b16 %v2066
    %v2879 = vunpack.c.l.b16 %v2067
    %v2880 = vunpack.c.h.b16 %v2067
    %v2881 = vunpack.c.l.b16 %v2068
    %v2882 = vunpack.c.h.b16 %v2068
    %v2883 = vunpack.c.l.b16 %v2069
    %v2884 = vunpack.c.h.b16 %v2069
    %v2885 = vunpack.c.l.b16 %v2070
    %v2886 = vunpack.c.h.b16 %v2070
    %v2887 = vunpack.c.l.b16 %v2071
    %v2888 = vunpack.c.h.b16 %v2071
    %v2889 = vunpack.c.l.b16 %v2072
    %v2890 = vunpack.c.h.b16 %v2072
    %v2891 = vunpack.c.l.b16 %v2073
    %v2892 = vunpack.c.h.b16 %v2073
    %v2893 = vunpack.c.l.b16 %v2074
    %v2894 = vunpack.c.h.b16 %v2074
    %v2895 = vunpack.c.l.b16 %v2075
    %v2896 = vunpack.c.h.b16 %v2075
    %v2897 = vunpack.c.l.b16 %v2076
    %v2898 = vunpack.c.h.b16 %v2076
    %v2899 = vunpack.c.l.b16 %v2077
    %v2900 = vunpack.c.h.b16 %v2077
    %v2901 = vunpack.c.l.b16 %v2078
    %v2902 = vunpack.c.h.b16 %v2078
    %v2903 = vunpack.c.l.b16 %v2079
    %v2904 = vunpack.c.h.b16 %v2079
    %v2905 = vunpack.c.l.b16 %v2080
    %v2906 = vunpack.c.h.b16 %v2080
    %v2907 = vunpack.c.l.b16 %v2081
    %v2908 = vunpack.c.h.b16 %v2081
    %v2909 = vunpack.c.l.b16 %v2082
    %v2910 = vunpack.c.h.b16 %v2082
    %v2911 = vunpack.c.l.b16 %v2083
    %v2912 = vunpack.c.h.b16 %v2083
    %v2913 = vunpack.c.l.b16 %v2084
    %v2914 = vunpack.c.h.b16 %v2084
    %v2915 = vunpack.c.l.b16 %v2085
    %v2916 = vunpack.c.h.b16 %v2085
    %v2917 = vunpack.c.l.b16 %v2086
    %v2918 = vunpack.c.h.b16 %v2086
    %v2919 = vunpack.c.l.b16 %v2087
    %v2920 = vunpack.c.h.b16 %v2087
    %v2921 = vunpack.c.l.b16 %v2088
    %v2922 = vunpack.c.h.b16 %v2088
    %v2923 = vunpack.c.l.b16 %v2089
    %v2924 = vunpack.c.h.b16 %v2089
    %v2925 = vunpack.c.l.b16 %v2090
    %v2926 = vunpack.c.h.b16 %v2090
    %v2927 = vunpack.c.l.b16 %v2091
    %v2928 = vunpack.c.h.b16 %v2091
    %v2929 = vunpack.c.l.b16 %v2092
    %v2930 = vunpack.c.h.b16 %v2092
    %v2931 = vunpack.c.l.b16 %v2093
    %v2932 = vunpack.c.h.b16 %v2093
    %v2933 = vunpack.c.l.b16 %v2094
    %v2934 = vunpack.c.h.b16 %v2094
    %v2935 = vunpack.c.l.b16 %v2095
    %v2936 = vunpack.c.h.b16 %v2095
    %v2937 = vunpack.c.l.b16 %v2096
    %v2938 = vunpack.c.h.b16 %v2096
    %v2939 = vunpack.c.l.b16 %v2097
    %v2940 = vunpack.c.h.b16 %v2097
    %v2941 = vpack.c.b16 %v2817, %v2813
    %v2942 = vpack.c.b16 %v2818, %v2814
    %v2943 = vpack.c.b16 %v2819, %v2815
    %v2944 = vpack.c.b16 %v2820, %v2816
    %v2945 = vpack.c.b16 %v2825, %v2821
    %v2946 = vpack.c.b16 %v2826, %v2822
    %v2947 = vpack.c.b16 %v2827, %v2823
    %v2948 = vpack.c.b16 %v2828, %v2824
    %v2949 = vpack.c.b16 %v2833, %v2829
    %v2950 = vpack.c.b16 %v2834, %v2830
    %v2951 = vpack.c.b16 %v2835, %v2831
    %v2952 = vpack.c.b16 %v2836, %v2832
    %v2953 = vpack.c.b16 %v2841, %v2837
    %v2954 = vpack.c.b16 %v2842, %v2838
    %v2955 = vpack.c.b16 %v2843, %v2839
    %v2956 = vpack.c.b16 %v2844, %v2840
    %v2957 = vpack.c.b16 %v2849, %v2845
    %v2958 = vpack.c.b16 %v2850, %v2846
    %v2959 = vpack.c.b16 %v2851, %v2847
    %v2960 = vpack.c.b16 %v2852, %v2848
    %v2961 = vpack.c.b16 %v2857, %v2853
    %v2962 = vpack.c.b16 %v2858, %v2854
    %v2963 = vpack.c.b16 %v2859, %v2855
    %v2964 = vpack.c.b16 %v2860, %v2856
    %v2965 = vpack.c.b16 %v2865, %v2861
    %v2966 = vpack.c.b16 %v2866, %v2862
    %v2967 = vpack.c.b16 %v2867, %v2863
    %v2968 = vpack.c.b16 %v2868, %v2864
    %v2969 = vpack.c.b16 %v2873, %v2869
    %v2970 = vpack.c.b16 %v2874, %v2870
    %v2971 = vpack.c.b16 %v2875, %v2871
    %v2972 = vpack.c.b16 %v2876, %v2872
    %v2973 = vpack.c.b16 %v2881, %v2877
    %v2974 = vpack.c.b16 %v2882, %v2878
    %v2975 = vpack.c.b16 %v2883, %v2879
    %v2976 = vpack.c.b16 %v2884, %v2880
    %v2977 = vpack.c.b16 %v2889, %v2885
    %v2978 = vpack.c.b16 %v2890, %v2886
    %v2979 = vpack.c.b16 %v2891, %v2887
    %v2980 = vpack.c.b16 %v2892, %v2888
    %v2981 = vpack.c.b16 %v2897, %v2893
    %v2982 = vpack.c.b16 %v2898, %v2894
    %v2983 = vpack.c.b16 %v2899, %v2895
    %v2984 = vpack.c.b16 %v2900, %v2896
    %v2985 = vpack.c.b16 %v2905, %v2901
    %v2986 = vpack.c.b16 %v2906, %v2902
    %v2987 = vpack.c.b16 %v2907, %v2903
    %v2988 = vpack.c.b16 %v2908, %v2904
    %v2989 = vpack.c.b16 %v2913, %v2909
    %v2990 = vpack.c.b16 %v2914, %v2910
    %v2991 = vpack.c.b16 %v2915, %v2911
    %v2992 = vpack.c.b16 %v2916, %v2912
    %v2993 = vpack.c.b16 %v2921, %v2917
    %v2994 = vpack.c.b16 %v2922, %v2918
    %v2995 = vpack.c.b16 %v2923, %v2919
    %v2996 = vpack.c.b16 %v2924, %v2920
    %v2997 = vpack.c.b16 %v2929, %v2925
    %v2998 = vpack.c.b16 %v2930, %v2926
    %v2999 = vpack.c.b16 %v2931, %v2927
    %v3000 = vpack.c.b16 %v2932, %v2928
    %v3001 = vpack.c.b16 %v2937, %v2933
    %v3002 = vpack.c.b16 %v2938, %v2934
    %v3003 = vpack.c.b16 %v2939, %v2935
    %v3004 = vpack.c.b16 %v2940, %v2936
    %3069 = vmatprep.subr.bf16.mxu0 %v2942
    %3070 = vmatpush1.bf16.msra.mxu0 %v2941
    %3071 = vmatprep.subr.bf16.mxu0 %v2946
    %3072 = vmatpush1.bf16.msra.mxu0 %v2945
    %3073 = vmatprep.subr.bf16.mxu0 %v2950
    %3074 = vmatpush1.bf16.msra.mxu0 %v2949
    %3075 = vmatprep.subr.bf16.mxu0 %v2954
    %3076 = vmatpush1.bf16.msra.mxu0 %v2953
    %3077 = vmatprep.subr.bf16.mxu0 %v2958
    %3078 = vmatpush1.bf16.msra.mxu0 %v2957
    %3079 = vmatprep.subr.bf16.mxu0 %v2962
    %3080 = vmatpush1.bf16.msra.mxu0 %v2961
    %3081 = vmatprep.subr.bf16.mxu0 %v2966
    %3082 = vmatpush1.bf16.msra.mxu0 %v2965
    %3083 = vmatprep.subr.bf16.mxu0 %v2970
    %3084 = vmatpush1.bf16.msra.mxu0 %v2969
    %3085 = vmatprep.subr.bf16.mxu0 %v2974
    %3086 = vmatpush1.bf16.msra.mxu0 %v2973
    %3087 = vmatprep.subr.bf16.mxu0 %v2978
    %3088 = vmatpush1.bf16.msra.mxu0 %v2977
    %3089 = vmatprep.subr.bf16.mxu0 %v2982
    %3090 = vmatpush1.bf16.msra.mxu0 %v2981
    %3091 = vmatprep.subr.bf16.mxu0 %v2986
    %3092 = vmatpush1.bf16.msra.mxu0 %v2985
    %3093 = vmatprep.subr.bf16.mxu0 %v2990
    %3094 = vmatpush1.bf16.msra.mxu0 %v2989
    %3095 = vmatprep.subr.bf16.mxu0 %v2994
    %3096 = vmatpush1.bf16.msra.mxu0 %v2993
    %3097 = vmatprep.subr.bf16.mxu0 %v2998
    %3098 = vmatpush1.bf16.msra.mxu0 %v2997
    %3099 = vmatprep.subr.bf16.mxu0 %v3002
    %3100 = vmatpush1.bf16.msra.mxu0 %v3001
    %3101 = vmatprep.mubr.bf16.mxu0 %v2722
    %3102 = vmatmul.mubr.bf16.gmra.mrb[0].mxu0 %v2721
    %v3103 = vpop.f32.mrb[0].mxu0
    %v3104 = vadd.f32 %v2550, %v3103
    %v3105 = vpop.f32.mrb[0].mxu0
    %v3106 = vadd.f32 %v2552, %v3105
    %v3107 = vpop.f32.mrb[0].mxu0
    %v3108 = vadd.f32 %v2554, %v3107
    %v3109 = vpop.f32.mrb[0].mxu0
    %v3110 = vadd.f32 %v2556, %v3109
    %3111 = vmatprep.mubr.bf16.mxu0 %v2724
    %3112 = vmatmul.mubr.bf16.gmra.mrb[0].mxu0 %v2723
    %v3113 = vpop.f32.mrb[0].mxu0
    %v3114 = vadd.f32 %v2560, %v3113
    %v3115 = vpop.f32.mrb[0].mxu0
    %v3116 = vadd.f32 %v2562, %v3115
    %v3117 = vpop.f32.mrb[0].mxu0
    %v3118 = vadd.f32 %v2564, %v3117
    %v3119 = vpop.f32.mrb[0].mxu0
    %v3120 = vadd.f32 %v2566, %v3119
    %3121 = vmatprep.mubr.bf16.mxu0 %v2726
    %3122 = vmatmul.mubr.bf16.gmra.mrb[0].mxu0 %v2725
    %v3123 = vpop.f32.mrb[0].mxu0
    %v3124 = vadd.f32 %v2570, %v3123
    %v3125 = vpop.f32.mrb[0].mxu0
    %v3126 = vadd.f32 %v2572, %v3125
    %v3127 = vpop.f32.mrb[0].mxu0
    %v3128 = vadd.f32 %v2574, %v3127
    %v3129 = vpop.f32.mrb[0].mxu0
    %v3130 = vadd.f32 %v2576, %v3129
    %3131 = vmatprep.mubr.bf16.mxu0 %v2728
    %3132 = vmatmul.mubr.bf16.gmra.mrb[0].mxu0 %v2727
    %v3133 = vpop.f32.mrb[0].mxu0
    %v3134 = vadd.f32 %v2580, %v3133
    %v3135 = vpop.f32.mrb[0].mxu0
    %v3136 = vadd.f32 %v2582, %v3135
    %v3137 = vpop.f32.mrb[0].mxu0
    %v3138 = vadd.f32 %v2584, %v3137
    %v3139 = vpop.f32.mrb[0].mxu0
    %v3140 = vadd.f32 %v2586, %v3139
    %3141 = vmatprep.mubr.bf16.mxu0 %v2730
    %3142 = vmatmul.mubr.bf16.gmra.mrb[0].mxu0 %v2729
    %v3143 = vpop.f32.mrb[0].mxu0
    %v3144 = vadd.f32 %v2590, %v3143
    %v3145 = vpop.f32.mrb[0].mxu0
    %v3146 = vadd.f32 %v2592, %v3145
    %v3147 = vpop.f32.mrb[0].mxu0
    %v3148 = vadd.f32 %v2594, %v3147
    %v3149 = vpop.f32.mrb[0].mxu0
    %v3150 = vadd.f32 %v2596, %v3149
    %3151 = vmatprep.mubr.bf16.mxu0 %v2732
    %3152 = vmatmul.mubr.bf16.gmra.mrb[0].mxu0 %v2731
    %v3153 = vpop.f32.mrb[0].mxu0
    %v3154 = vadd.f32 %v2600, %v3153
    %v3155 = vpop.f32.mrb[0].mxu0
    %v3156 = vadd.f32 %v2602, %v3155
    %v3157 = vpop.f32.mrb[0].mxu0
    %v3158 = vadd.f32 %v2604, %v3157
    %v3159 = vpop.f32.mrb[0].mxu0
    %v3160 = vadd.f32 %v2606, %v3159
    %3161 = vmatprep.mubr.bf16.mxu0 %v2734
    %3162 = vmatmul.mubr.bf16.gmra.mrb[0].mxu0 %v2733
    %v3163 = vpop.f32.mrb[0].mxu0
    %v3164 = vadd.f32 %v2610, %v3163
    %v3165 = vpop.f32.mrb[0].mxu0
    %v3166 = vadd.f32 %v2612, %v3165
    %v3167 = vpop.f32.mrb[0].mxu0
    %v3168 = vadd.f32 %v2614, %v3167
    %v3169 = vpop.f32.mrb[0].mxu0
    %v3170 = vadd.f32 %v2616, %v3169
    %3171 = vdwg.mxu0
    %3172 = vmatprep.subr.bf16.mxu0 %v2944
    %3173 = vmatpush1.bf16.msra.mxu0 %v2943
    %3174 = vmatprep.subr.bf16.mxu0 %v2948
    %3175 = vmatpush1.bf16.msra.mxu0 %v2947
    %3176 = vmatprep.subr.bf16.mxu0 %v2952
    %3177 = vmatpush1.bf16.msra.mxu0 %v2951
    %3178 = vmatprep.subr.bf16.mxu0 %v2956
    %3179 = vmatpush1.bf16.msra.mxu0 %v2955
    %3180 = vmatprep.subr.bf16.mxu0 %v2960
    %3181 = vmatpush1.bf16.msra.mxu0 %v2959
    %3182 = vmatprep.subr.bf16.mxu0 %v2964
    %3183 = vmatpush1.bf16.msra.mxu0 %v2963
    %3184 = vmatprep.subr.bf16.mxu0 %v2968
    %3185 = vmatpush1.bf16.msra.mxu0 %v2967
    %3186 = vmatprep.subr.bf16.mxu0 %v2972
    %3187 = vmatpush1.bf16.msra.mxu0 %v2971
    %3188 = vmatprep.subr.bf16.mxu0 %v2976
    %3189 = vmatpush1.bf16.msra.mxu0 %v2975
    %3190 = vmatprep.subr.bf16.mxu0 %v2980
    %3191 = vmatpush1.bf16.msra.mxu0 %v2979
    %3192 = vmatprep.subr.bf16.mxu0 %v2984
    %3193 = vmatpush1.bf16.msra.mxu0 %v2983
    %3194 = vmatprep.subr.bf16.mxu0 %v2988
    %3195 = vmatpush1.bf16.msra.mxu0 %v2987
    %3196 = vmatprep.subr.bf16.mxu0 %v2992
    %3197 = vmatpush1.bf16.msra.mxu0 %v2991
    %3198 = vmatprep.subr.bf16.mxu0 %v2996
    %3199 = vmatpush1.bf16.msra.mxu0 %v2995
    %3200 = vmatprep.subr.bf16.mxu0 %v3000
    %3201 = vmatpush1.bf16.msra.mxu0 %v2999
    %3202 = vmatprep.subr.bf16.mxu0 %v3004
    %3203 = vmatpush1.bf16.msra.mxu0 %v3003
    %3204 = vmatprep.mubr.bf16.mxu0 %v2722
    %3205 = vmatmul.mubr.bf16.gmra.mrb[0].mxu0 %v2721
    %v3206 = vpop.f32.mrb[0].mxu0
    %v3207 = vadd.f32 %v2653, %v3206
    %v3208 = vpop.f32.mrb[0].mxu0
    %v3209 = vadd.f32 %v2655, %v3208
    %v3210 = vpop.f32.mrb[0].mxu0
    %v3211 = vadd.f32 %v2657, %v3210
    %v3212 = vpop.f32.mrb[0].mxu0
    %v3213 = vadd.f32 %v2659, %v3212
    %3214 = vmatprep.mubr.bf16.mxu0 %v2724
    %3215 = vmatmul.mubr.bf16.gmra.mrb[0].mxu0 %v2723
    %v3216 = vpop.f32.mrb[0].mxu0
    %v3217 = vadd.f32 %v2663, %v3216
    %v3218 = vpop.f32.mrb[0].mxu0
    %v3219 = vadd.f32 %v2665, %v3218
    %v3220 = vpop.f32.mrb[0].mxu0
    %v3221 = vadd.f32 %v2667, %v3220
    %v3222 = vpop.f32.mrb[0].mxu0
    %v3223 = vadd.f32 %v2669, %v3222
    %3224 = vmatprep.mubr.bf16.mxu0 %v2726
    %3225 = vmatmul.mubr.bf16.gmra.mrb[0].mxu0 %v2725
    %v3226 = vpop.f32.mrb[0].mxu0
    %v3227 = vadd.f32 %v2673, %v3226
    %v3228 = vpop.f32.mrb[0].mxu0
    %v3229 = vadd.f32 %v2675, %v3228
    %v3230 = vpop.f32.mrb[0].mxu0
    %v3231 = vadd.f32 %v2677, %v3230
    %v3232 = vpop.f32.mrb[0].mxu0
    %v3233 = vadd.f32 %v2679, %v3232
    %3234 = vmatprep.mubr.bf16.mxu0 %v2728
    %3235 = vmatmul.mubr.bf16.gmra.mrb[0].mxu0 %v2727
    %v3236 = vpop.f32.mrb[0].mxu0
    %v3237 = vadd.f32 %v2683, %v3236
    %v3238 = vpop.f32.mrb[0].mxu0
    %v3239 = vadd.f32 %v2685, %v3238
    %v3240 = vpop.f32.mrb[0].mxu0
    %v3241 = vadd.f32 %v2687, %v3240
    %v3242 = vpop.f32.mrb[0].mxu0
    %v3243 = vadd.f32 %v2689, %v3242
    %3244 = vmatprep.mubr.bf16.mxu0 %v2730
    %3245 = vmatmul.mubr.bf16.gmra.mrb[0].mxu0 %v2729
    %v3246 = vpop.f32.mrb[0].mxu0
    %v3247 = vadd.f32 %v2693, %v3246
    %v3248 = vpop.f32.mrb[0].mxu0
    %v3249 = vadd.f32 %v2695, %v3248
    %v3250 = vpop.f32.mrb[0].mxu0
    %v3251 = vadd.f32 %v2697, %v3250
    %v3252 = vpop.f32.mrb[0].mxu0
    %v3253 = vadd.f32 %v2699, %v3252
    %3254 = vmatprep.mubr.bf16.mxu0 %v2732
    %3255 = vmatmul.mubr.bf16.gmra.mrb[0].mxu0 %v2731
    %v3256 = vpop.f32.mrb[0].mxu0
    %v3257 = vadd.f32 %v2703, %v3256
    %v3258 = vpop.f32.mrb[0].mxu0
    %v3259 = vadd.f32 %v2705, %v3258
    %v3260 = vpop.f32.mrb[0].mxu0
    %v3261 = vadd.f32 %v2707, %v3260
    %v3262 = vpop.f32.mrb[0].mxu0
    %v3263 = vadd.f32 %v2709, %v3262
    %3264 = vmatprep.mubr.bf16.mxu0 %v2734
    %3265 = vmatmul.mubr.bf16.gmra.mrb[0].mxu0 %v2733
    %v3266 = vpop.f32.mrb[0].mxu0
    %v3267 = vadd.f32 %v2713, %v3266
    %v3268 = vpop.f32.mrb[0].mxu0
    %v3269 = vadd.f32 %v2715, %v3268
    %v3270 = vpop.f32.mrb[0].mxu0
    %v3271 = vadd.f32 %v2717, %v3270
    %v3272 = vpop.f32.mrb[0].mxu0
    %v3273 = vadd.f32 %v2719, %v3272
    %3274 = vdwg.mxu0
    %s3275 = scalar_lea.vmem [#allocation2], 1024
    %v3276 = vld [vmem:[%s3275] sm:$0xff]
    %v3277 = vld [vmem:[%s3275 + $0x8] sm:$0xff]
    %v3278 = vld [vmem:[%s3275 + $0x10] sm:$0xff]
    %v3279 = vld [vmem:[%s3275 + $0x18] sm:$0xff]
    %v3280 = vld [vmem:[%s3275 + $0x20] sm:$0xff]
    %v3281 = vld [vmem:[%s3275 + $0x28] sm:$0xff]
    %v3282 = vld [vmem:[%s3275 + $0x30] sm:$0xff]
    %v3283 = vld [vmem:[%s3275 + $0x38] sm:$0xff]
    %v3284 = vld [vmem:[%s3275 + $0x40] sm:$0xff]
    %v3285 = vld [vmem:[%s3275 + $0x48] sm:$0xff]
    %v3286 = vld [vmem:[%s3275 + $0x50] sm:$0xff]
    %v3287 = vld [vmem:[%s3275 + $0x58] sm:$0xff]
    %v3288 = vld [vmem:[%s3275 + $0x60] sm:$0xff]
    %v3289 = vld [vmem:[%s3275 + $0x68] sm:$0xff]
    %v3290 = vld [vmem:[%s3275 + $0x70] sm:$0xff]
    %v3291 = vld [vmem:[%s3275 + $0x78] sm:$0xff]
    %v3292 = vld [vmem:[%s3275 + $0x80] sm:$0xff]
    %v3293 = vld [vmem:[%s3275 + $0x88] sm:$0xff]
    %v3294 = vld [vmem:[%s3275 + $0x90] sm:$0xff]
    %v3295 = vld [vmem:[%s3275 + $0x98] sm:$0xff]
    %v3296 = vld [vmem:[%s3275 + $0xa0] sm:$0xff]
    %v3297 = vld [vmem:[%s3275 + $0xa8] sm:$0xff]
    %v3298 = vld [vmem:[%s3275 + $0xb0] sm:$0xff]
    %v3299 = vld [vmem:[%s3275 + $0xb8] sm:$0xff]
    %v3300 = vld [vmem:[%s3275 + $0xc0] sm:$0xff]
    %v3301 = vld [vmem:[%s3275 + $0xc8] sm:$0xff]
    %v3302 = vld [vmem:[%s3275 + $0xd0] sm:$0xff]
    %v3303 = vld [vmem:[%s3275 + $0xd8] sm:$0xff]
    %v3304 = vld [vmem:[%s3275 + $0xe0] sm:$0xff]
    %v3305 = vld [vmem:[%s3275 + $0xe8] sm:$0xff]
    %v3306 = vld [vmem:[%s3275 + $0xf0] sm:$0xff]
    %v3307 = vld [vmem:[%s3275 + $0xf8] sm:$0xff]
    %v3308 = vld [vmem:[%s3275 + $0x100] sm:$0xff]
    %v3309 = vld [vmem:[%s3275 + $0x108] sm:$0xff]
    %v3310 = vld [vmem:[%s3275 + $0x110] sm:$0xff]
    %v3311 = vld [vmem:[%s3275 + $0x118] sm:$0xff]
    %v3312 = vld [vmem:[%s3275 + $0x120] sm:$0xff]
    %v3313 = vld [vmem:[%s3275 + $0x128] sm:$0xff]
    %v3314 = vld [vmem:[%s3275 + $0x130] sm:$0xff]
    %v3315 = vld [vmem:[%s3275 + $0x138] sm:$0xff]
    %v3316 = vld [vmem:[%s3275 + $0x140] sm:$0xff]
    %v3317 = vld [vmem:[%s3275 + $0x148] sm:$0xff]
    %v3318 = vld [vmem:[%s3275 + $0x150] sm:$0xff]
    %v3319 = vld [vmem:[%s3275 + $0x158] sm:$0xff]
    %v3320 = vld [vmem:[%s3275 + $0x160] sm:$0xff]
    %v3321 = vld [vmem:[%s3275 + $0x168] sm:$0xff]
    %v3322 = vld [vmem:[%s3275 + $0x170] sm:$0xff]
    %v3323 = vld [vmem:[%s3275 + $0x178] sm:$0xff]
    %v3324 = vld [vmem:[%s3275 + $0x180] sm:$0xff]
    %v3325 = vld [vmem:[%s3275 + $0x188] sm:$0xff]
    %v3326 = vld [vmem:[%s3275 + $0x190] sm:$0xff]
    %v3327 = vld [vmem:[%s3275 + $0x198] sm:$0xff]
    %v3328 = vld [vmem:[%s3275 + $0x1a0] sm:$0xff]
    %v3329 = vld [vmem:[%s3275 + $0x1a8] sm:$0xff]
    %v3330 = vld [vmem:[%s3275 + $0x1b0] sm:$0xff]
    %v3331 = vld [vmem:[%s3275 + $0x1b8] sm:$0xff]
    %v3332 = vld [vmem:[%s3275 + $0x1c0] sm:$0xff]
    %v3333 = vld [vmem:[%s3275 + $0x1c8] sm:$0xff]
    %v3334 = vld [vmem:[%s3275 + $0x1d0] sm:$0xff]
    %v3335 = vld [vmem:[%s3275 + $0x1d8] sm:$0xff]
    %v3336 = vld [vmem:[%s3275 + $0x1e0] sm:$0xff]
    %v3337 = vld [vmem:[%s3275 + $0x1e8] sm:$0xff]
    %v3338 = vld [vmem:[%s3275 + $0x1f0] sm:$0xff]
    %v3339 = vld [vmem:[%s3275 + $0x1f8] sm:$0xff]
    %v3340 = vpack.c.b16 %v2007, %v2100
    %v3341 = vpack.c.b16 %v2007, %v2101
    %v3408 = vunpack.c.l.b16 %v3276
    %v3409 = vunpack.c.h.b16 %v3276
    %v3410 = vunpack.c.l.b16 %v3277
    %v3411 = vunpack.c.h.b16 %v3277
    %v3412 = vunpack.c.l.b16 %v3278
    %v3413 = vunpack.c.h.b16 %v3278
    %v3414 = vunpack.c.l.b16 %v3279
    %v3415 = vunpack.c.h.b16 %v3279
    %v3416 = vunpack.c.l.b16 %v3280
    %v3417 = vunpack.c.h.b16 %v3280
    %v3418 = vunpack.c.l.b16 %v3281
    %v3419 = vunpack.c.h.b16 %v3281
    %v3420 = vunpack.c.l.b16 %v3282
    %v3421 = vunpack.c.h.b16 %v3282
    %v3422 = vunpack.c.l.b16 %v3283
    %v3423 = vunpack.c.h.b16 %v3283
    %v3424 = vunpack.c.l.b16 %v3284
    %v3425 = vunpack.c.h.b16 %v3284
    %v3426 = vunpack.c.l.b16 %v3285
    %v3427 = vunpack.c.h.b16 %v3285
    %v3428 = vunpack.c.l.b16 %v3286
    %v3429 = vunpack.c.h.b16 %v3286
    %v3430 = vunpack.c.l.b16 %v3287
    %v3431 = vunpack.c.h.b16 %v3287
    %v3432 = vunpack.c.l.b16 %v3288
    %v3433 = vunpack.c.h.b16 %v3288
    %v3434 = vunpack.c.l.b16 %v3289
    %v3435 = vunpack.c.h.b16 %v3289
    %v3436 = vunpack.c.l.b16 %v3290
    %v3437 = vunpack.c.h.b16 %v3290
    %v3438 = vunpack.c.l.b16 %v3291
    %v3439 = vunpack.c.h.b16 %v3291
    %v3440 = vunpack.c.l.b16 %v3292
    %v3441 = vunpack.c.h.b16 %v3292
    %v3442 = vunpack.c.l.b16 %v3293
    %v3443 = vunpack.c.h.b16 %v3293
    %v3444 = vunpack.c.l.b16 %v3294
    %v3445 = vunpack.c.h.b16 %v3294
    %v3446 = vunpack.c.l.b16 %v3295
    %v3447 = vunpack.c.h.b16 %v3295
    %v3448 = vunpack.c.l.b16 %v3296
    %v3449 = vunpack.c.h.b16 %v3296
    %v3450 = vunpack.c.l.b16 %v3297
    %v3451 = vunpack.c.h.b16 %v3297
    %v3452 = vunpack.c.l.b16 %v3298
    %v3453 = vunpack.c.h.b16 %v3298
    %v3454 = vunpack.c.l.b16 %v3299
    %v3455 = vunpack.c.h.b16 %v3299
    %v3456 = vunpack.c.l.b16 %v3300
    %v3457 = vunpack.c.h.b16 %v3300
    %v3458 = vunpack.c.l.b16 %v3301
    %v3459 = vunpack.c.h.b16 %v3301
    %v3460 = vunpack.c.l.b16 %v3302
    %v3461 = vunpack.c.h.b16 %v3302
    %v3462 = vunpack.c.l.b16 %v3303
    %v3463 = vunpack.c.h.b16 %v3303
    %v3464 = vunpack.c.l.b16 %v3304
    %v3465 = vunpack.c.h.b16 %v3304
    %v3466 = vunpack.c.l.b16 %v3305
    %v3467 = vunpack.c.h.b16 %v3305
    %v3468 = vunpack.c.l.b16 %v3306
    %v3469 = vunpack.c.h.b16 %v3306
    %v3470 = vunpack.c.l.b16 %v3307
    %v3471 = vunpack.c.h.b16 %v3307
    %v3472 = vunpack.c.l.b16 %v3308
    %v3473 = vunpack.c.h.b16 %v3308
    %v3474 = vunpack.c.l.b16 %v3309
    %v3475 = vunpack.c.h.b16 %v3309
    %v3476 = vunpack.c.l.b16 %v3310
    %v3477 = vunpack.c.h.b16 %v3310
    %v3478 = vunpack.c.l.b16 %v3311
    %v3479 = vunpack.c.h.b16 %v3311
    %v3480 = vunpack.c.l.b16 %v3312
    %v3481 = vunpack.c.h.b16 %v3312
    %v3482 = vunpack.c.l.b16 %v3313
    %v3483 = vunpack.c.h.b16 %v3313
    %v3484 = vunpack.c.l.b16 %v3314
    %v3485 = vunpack.c.h.b16 %v3314
    %v3486 = vunpack.c.l.b16 %v3315
    %v3487 = vunpack.c.h.b16 %v3315
    %v3488 = vunpack.c.l.b16 %v3316
    %v3489 = vunpack.c.h.b16 %v3316
    %v3490 = vunpack.c.l.b16 %v3317
    %v3491 = vunpack.c.h.b16 %v3317
    %v3492 = vunpack.c.l.b16 %v3318
    %v3493 = vunpack.c.h.b16 %v3318
    %v3494 = vunpack.c.l.b16 %v3319
    %v3495 = vunpack.c.h.b16 %v3319
    %v3496 = vunpack.c.l.b16 %v3320
    %v3497 = vunpack.c.h.b16 %v3320
    %v3498 = vunpack.c.l.b16 %v3321
    %v3499 = vunpack.c.h.b16 %v3321
    %v3500 = vunpack.c.l.b16 %v3322
    %v3501 = vunpack.c.h.b16 %v3322
    %v3502 = vunpack.c.l.b16 %v3323
    %v3503 = vunpack.c.h.b16 %v3323
    %v3504 = vunpack.c.l.b16 %v3324
    %v3505 = vunpack.c.h.b16 %v3324
    %v3506 = vunpack.c.l.b16 %v3325
    %v3507 = vunpack.c.h.b16 %v3325
    %v3508 = vunpack.c.l.b16 %v3326
    %v3509 = vunpack.c.h.b16 %v3326
    %v3510 = vunpack.c.l.b16 %v3327
    %v3511 = vunpack.c.h.b16 %v3327
    %v3512 = vunpack.c.l.b16 %v3328
    %v3513 = vunpack.c.h.b16 %v3328
    %v3514 = vunpack.c.l.b16 %v3329
    %v3515 = vunpack.c.h.b16 %v3329
    %v3516 = vunpack.c.l.b16 %v3330
    %v3517 = vunpack.c.h.b16 %v3330
    %v3518 = vunpack.c.l.b16 %v3331
    %v3519 = vunpack.c.h.b16 %v3331
    %v3520 = vunpack.c.l.b16 %v3332
    %v3521 = vunpack.c.h.b16 %v3332
    %v3522 = vunpack.c.l.b16 %v3333
    %v3523 = vunpack.c.h.b16 %v3333
    %v3524 = vunpack.c.l.b16 %v3334
    %v3525 = vunpack.c.h.b16 %v3334
    %v3526 = vunpack.c.l.b16 %v3335
    %v3527 = vunpack.c.h.b16 %v3335
    %v3528 = vunpack.c.l.b16 %v3336
    %v3529 = vunpack.c.h.b16 %v3336
    %v3530 = vunpack.c.l.b16 %v3337
    %v3531 = vunpack.c.h.b16 %v3337
    %v3532 = vunpack.c.l.b16 %v3338
    %v3533 = vunpack.c.h.b16 %v3338
    %v3534 = vunpack.c.l.b16 %v3339
    %v3535 = vunpack.c.h.b16 %v3339
    %v3536 = vpack.c.b16 %v3412, %v3408
    %v3537 = vpack.c.b16 %v3413, %v3409
    %v3538 = vpack.c.b16 %v3414, %v3410
    %v3539 = vpack.c.b16 %v3415, %v3411
    %v3540 = vpack.c.b16 %v3420, %v3416
    %v3541 = vpack.c.b16 %v3421, %v3417
    %v3542 = vpack.c.b16 %v3422, %v3418
    %v3543 = vpack.c.b16 %v3423, %v3419
    %v3544 = vpack.c.b16 %v3428, %v3424
    %v3545 = vpack.c.b16 %v3429, %v3425
    %v3546 = vpack.c.b16 %v3430, %v3426
    %v3547 = vpack.c.b16 %v3431, %v3427
    %v3548 = vpack.c.b16 %v3436, %v3432
    %v3549 = vpack.c.b16 %v3437, %v3433
    %v3550 = vpack.c.b16 %v3438, %v3434
    %v3551 = vpack.c.b16 %v3439, %v3435
    %v3552 = vpack.c.b16 %v3444, %v3440
    %v3553 = vpack.c.b16 %v3445, %v3441
    %v3554 = vpack.c.b16 %v3446, %v3442
    %v3555 = vpack.c.b16 %v3447, %v3443
    %v3556 = vpack.c.b16 %v3452, %v3448
    %v3557 = vpack.c.b16 %v3453, %v3449
    %v3558 = vpack.c.b16 %v3454, %v3450
    %v3559 = vpack.c.b16 %v3455, %v3451
    %v3560 = vpack.c.b16 %v3460, %v3456
    %v3561 = vpack.c.b16 %v3461, %v3457
    %v3562 = vpack.c.b16 %v3462, %v3458
    %v3563 = vpack.c.b16 %v3463, %v3459
    %v3564 = vpack.c.b16 %v3468, %v3464
    %v3565 = vpack.c.b16 %v3469, %v3465
    %v3566 = vpack.c.b16 %v3470, %v3466
    %v3567 = vpack.c.b16 %v3471, %v3467
    %v3568 = vpack.c.b16 %v3476, %v3472
    %v3569 = vpack.c.b16 %v3477, %v3473
    %v3570 = vpack.c.b16 %v3478, %v3474
    %v3571 = vpack.c.b16 %v3479, %v3475
    %v3572 = vpack.c.b16 %v3484, %v3480
    %v3573 = vpack.c.b16 %v3485, %v3481
    %v3574 = vpack.c.b16 %v3486, %v3482
    %v3575 = vpack.c.b16 %v3487, %v3483
    %v3576 = vpack.c.b16 %v3492, %v3488
    %v3577 = vpack.c.b16 %v3493, %v3489
    %v3578 = vpack.c.b16 %v3494, %v3490
    %v3579 = vpack.c.b16 %v3495, %v3491
    %v3580 = vpack.c.b16 %v3500, %v3496
    %v3581 = vpack.c.b16 %v3501, %v3497
    %v3582 = vpack.c.b16 %v3502, %v3498
    %v3583 = vpack.c.b16 %v3503, %v3499
    %v3584 = vpack.c.b16 %v3508, %v3504
    %v3585 = vpack.c.b16 %v3509, %v3505
    %v3586 = vpack.c.b16 %v3510, %v3506
    %v3587 = vpack.c.b16 %v3511, %v3507
    %v3588 = vpack.c.b16 %v3516, %v3512
    %v3589 = vpack.c.b16 %v3517, %v3513
    %v3590 = vpack.c.b16 %v3518, %v3514
    %v3591 = vpack.c.b16 %v3519, %v3515
    %v3592 = vpack.c.b16 %v3524, %v3520
    %v3593 = vpack.c.b16 %v3525, %v3521
    %v3594 = vpack.c.b16 %v3526, %v3522
    %v3595 = vpack.c.b16 %v3527, %v3523
    %v3596 = vpack.c.b16 %v3532, %v3528
    %v3597 = vpack.c.b16 %v3533, %v3529
    %v3598 = vpack.c.b16 %v3534, %v3530
    %v3599 = vpack.c.b16 %v3535, %v3531
    %3664 = vmatprep.subr.bf16.mxu0 %v3537
    %3665 = vmatpush1.bf16.msra.mxu0 %v3536
    %3666 = vmatprep.subr.bf16.mxu0 %v3541
    %3667 = vmatpush1.bf16.msra.mxu0 %v3540
    %3668 = vmatprep.subr.bf16.mxu0 %v3545
    %3669 = vmatpush1.bf16.msra.mxu0 %v3544
    %3670 = vmatprep.subr.bf16.mxu0 %v3549
    %3671 = vmatpush1.bf16.msra.mxu0 %v3548
    %3672 = vmatprep.subr.bf16.mxu0 %v3553
    %3673 = vmatpush1.bf16.msra.mxu0 %v3552
    %3674 = vmatprep.subr.bf16.mxu0 %v3557
    %3675 = vmatpush1.bf16.msra.mxu0 %v3556
    %3676 = vmatprep.subr.bf16.mxu0 %v3561
    %3677 = vmatpush1.bf16.msra.mxu0 %v3560
    %3678 = vmatprep.subr.bf16.mxu0 %v3565
    %3679 = vmatpush1.bf16.msra.mxu0 %v3564
    %3680 = vmatprep.subr.bf16.mxu0 %v3569
    %3681 = vmatpush1.bf16.msra.mxu0 %v3568
    %3682 = vmatprep.subr.bf16.mxu0 %v3573
    %3683 = vmatpush1.bf16.msra.mxu0 %v3572
    %3684 = vmatprep.subr.bf16.mxu0 %v3577
    %3685 = vmatpush1.bf16.msra.mxu0 %v3576
    %3686 = vmatprep.subr.bf16.mxu0 %v3581
    %3687 = vmatpush1.bf16.msra.mxu0 %v3580
    %3688 = vmatprep.subr.bf16.mxu0 %v3585
    %3689 = vmatpush1.bf16.msra.mxu0 %v3584
    %3690 = vmatprep.subr.bf16.mxu0 %v3589
    %3691 = vmatpush1.bf16.msra.mxu0 %v3588
    %3692 = vmatprep.subr.bf16.mxu0 %v3593
    %3693 = vmatpush1.bf16.msra.mxu0 %v3592
    %3694 = vmatprep.subr.bf16.mxu0 %v3597
    %3695 = vmatpush1.bf16.msra.mxu0 %v3596
    %3696 = vmatprep.mubr.bf16.mxu0 %v2724
    %3697 = vmatmul.mubr.bf16.gmra.mrb[0].mxu0 %v2723
    %v3698 = vpop.f32.mrb[0].mxu0
    %v3699 = vadd.f32 0.0, %v3698
    %v3700 = vpop.f32.mrb[0].mxu0
    %v3701 = vadd.f32 0.0, %v3700
    %v3702 = vpop.f32.mrb[0].mxu0
    %v3703 = vadd.f32 0.0, %v3702
    %v3704 = vpop.f32.mrb[0].mxu0
    %v3705 = vadd.f32 0.0, %v3704
    %3706 = vmatprep.mubr.bf16.mxu0 %v2726
    %3707 = vmatmul.mubr.bf16.gmra.mrb[0].mxu0 %v2725
    %v3708 = vpop.f32.mrb[0].mxu0
    %v3709 = vadd.f32 0.0, %v3708
    %v3710 = vpop.f32.mrb[0].mxu0
    %v3711 = vadd.f32 0.0, %v3710
    %v3712 = vpop.f32.mrb[0].mxu0
    %v3713 = vadd.f32 0.0, %v3712
    %v3714 = vpop.f32.mrb[0].mxu0
    %v3715 = vadd.f32 0.0, %v3714
    %3716 = vmatprep.mubr.bf16.mxu0 %v2728
    %3717 = vmatmul.mubr.bf16.gmra.mrb[0].mxu0 %v2727
    %v3718 = vpop.f32.mrb[0].mxu0
    %v3719 = vadd.f32 0.0, %v3718
    %v3720 = vpop.f32.mrb[0].mxu0
    %v3721 = vadd.f32 0.0, %v3720
    %v3722 = vpop.f32.mrb[0].mxu0
    %v3723 = vadd.f32 0.0, %v3722
    %v3724 = vpop.f32.mrb[0].mxu0
    %v3725 = vadd.f32 0.0, %v3724
    %3726 = vmatprep.mubr.bf16.mxu0 %v2730
    %3727 = vmatmul.mubr.bf16.gmra.mrb[0].mxu0 %v2729
    %v3728 = vpop.f32.mrb[0].mxu0
    %v3729 = vadd.f32 0.0, %v3728
    %v3730 = vpop.f32.mrb[0].mxu0
    %v3731 = vadd.f32 0.0, %v3730
    %v3732 = vpop.f32.mrb[0].mxu0
    %v3733 = vadd.f32 0.0, %v3732
    %v3734 = vpop.f32.mrb[0].mxu0
    %v3735 = vadd.f32 0.0, %v3734
    %3736 = vmatprep.mubr.bf16.mxu0 %v2732
    %3737 = vmatmul.mubr.bf16.gmra.mrb[0].mxu0 %v2731
    %v3738 = vpop.f32.mrb[0].mxu0
    %v3739 = vadd.f32 0.0, %v3738
    %v3740 = vpop.f32.mrb[0].mxu0
    %v3741 = vadd.f32 0.0, %v3740
    %v3742 = vpop.f32.mrb[0].mxu0
    %v3743 = vadd.f32 0.0, %v3742
    %v3744 = vpop.f32.mrb[0].mxu0
    %v3745 = vadd.f32 0.0, %v3744
    %3746 = vmatprep.mubr.bf16.mxu0 %v2734
    %3747 = vmatmul.mubr.bf16.gmra.mrb[0].mxu0 %v2733
    %v3748 = vpop.f32.mrb[0].mxu0
    %v3749 = vadd.f32 0.0, %v3748
    %v3750 = vpop.f32.mrb[0].mxu0
    %v3751 = vadd.f32 0.0, %v3750
    %v3752 = vpop.f32.mrb[0].mxu0
    %v3753 = vadd.f32 0.0, %v3752
    %v3754 = vpop.f32.mrb[0].mxu0
    %v3755 = vadd.f32 0.0, %v3754
    %3756 = vmatprep.mubr.bf16.mxu0 %v3341
    %3757 = vmatmul.mubr.bf16.gmra.mrb[0].mxu0 %v3340
    %v3758 = vpop.f32.mrb[0].mxu0
    %v3759 = vadd.f32 0.0, %v3758
    %v3760 = vpop.f32.mrb[0].mxu0
    %v3761 = vadd.f32 0.0, %v3760
    %v3762 = vpop.f32.mrb[0].mxu0
    %v3763 = vadd.f32 0.0, %v3762
    %v3764 = vpop.f32.mrb[0].mxu0
    %v3765 = vadd.f32 0.0, %v3764
    %3766 = vdwg.mxu0
    %3767 = vmatprep.subr.bf16.mxu0 %v3539
    %3768 = vmatpush1.bf16.msra.mxu0 %v3538
    %3769 = vmatprep.subr.bf16.mxu0 %v3543
    %3770 = vmatpush1.bf16.msra.mxu0 %v3542
    %3771 = vmatprep.subr.bf16.mxu0 %v3547
    %3772 = vmatpush1.bf16.msra.mxu0 %v3546
    %3773 = vmatprep.subr.bf16.mxu0 %v3551
    %3774 = vmatpush1.bf16.msra.mxu0 %v3550
    %3775 = vmatprep.subr.bf16.mxu0 %v3555
    %3776 = vmatpush1.bf16.msra.mxu0 %v3554
    %3777 = vmatprep.subr.bf16.mxu0 %v3559
    %3778 = vmatpush1.bf16.msra.mxu0 %v3558
    %3779 = vmatprep.subr.bf16.mxu0 %v3563
    %3780 = vmatpush1.bf16.msra.mxu0 %v3562
    %3781 = vmatprep.subr.bf16.mxu0 %v3567
    %3782 = vmatpush1.bf16.msra.mxu0 %v3566
    %3783 = vmatprep.subr.bf16.mxu0 %v3571
    %3784 = vmatpush1.bf16.msra.mxu0 %v3570
    %3785 = vmatprep.subr.bf16.mxu0 %v3575
    %3786 = vmatpush1.bf16.msra.mxu0 %v3574
    %3787 = vmatprep.subr.bf16.mxu0 %v3579
    %3788 = vmatpush1.bf16.msra.mxu0 %v3578
    %3789 = vmatprep.subr.bf16.mxu0 %v3583
    %3790 = vmatpush1.bf16.msra.mxu0 %v3582
    %3791 = vmatprep.subr.bf16.mxu0 %v3587
    %3792 = vmatpush1.bf16.msra.mxu0 %v3586
    %3793 = vmatprep.subr.bf16.mxu0 %v3591
    %3794 = vmatpush1.bf16.msra.mxu0 %v3590
    %3795 = vmatprep.subr.bf16.mxu0 %v3595
    %3796 = vmatpush1.bf16.msra.mxu0 %v3594
    %3797 = vmatprep.subr.bf16.mxu0 %v3599
    %3798 = vmatpush1.bf16.msra.mxu0 %v3598
    %3799 = vmatprep.mubr.bf16.mxu0 %v2724
    %3800 = vmatmul.mubr.bf16.gmra.mrb[0].mxu0 %v2723
    %v3801 = vpop.f32.mrb[0].mxu0
    %v3802 = vadd.f32 0.0, %v3801
    %v3803 = vpop.f32.mrb[0].mxu0
    %v3804 = vadd.f32 0.0, %v3803
    %v3805 = vpop.f32.mrb[0].mxu0
    %v3806 = vadd.f32 0.0, %v3805
    %v3807 = vpop.f32.mrb[0].mxu0
    %v3808 = vadd.f32 0.0, %v3807
    %3809 = vmatprep.mubr.bf16.mxu0 %v2726
    %3810 = vmatmul.mubr.bf16.gmra.mrb[0].mxu0 %v2725
    %v3811 = vpop.f32.mrb[0].mxu0
    %v3812 = vadd.f32 0.0, %v3811
    %v3813 = vpop.f32.mrb[0].mxu0
    %v3814 = vadd.f32 0.0, %v3813
    %v3815 = vpop.f32.mrb[0].mxu0
    %v3816 = vadd.f32 0.0, %v3815
    %v3817 = vpop.f32.mrb[0].mxu0
    %v3818 = vadd.f32 0.0, %v3817
    %3819 = vmatprep.mubr.bf16.mxu0 %v2728
    %3820 = vmatmul.mubr.bf16.gmra.mrb[0].mxu0 %v2727
    %v3821 = vpop.f32.mrb[0].mxu0
    %v3822 = vadd.f32 0.0, %v3821
    %v3823 = vpop.f32.mrb[0].mxu0
    %v3824 = vadd.f32 0.0, %v3823
    %v3825 = vpop.f32.mrb[0].mxu0
    %v3826 = vadd.f32 0.0, %v3825
    %v3827 = vpop.f32.mrb[0].mxu0
    %v3828 = vadd.f32 0.0, %v3827
    %3829 = vmatprep.mubr.bf16.mxu0 %v2730
    %3830 = vmatmul.mubr.bf16.gmra.mrb[0].mxu0 %v2729
    %v3831 = vpop.f32.mrb[0].mxu0
    %v3832 = vadd.f32 0.0, %v3831
    %v3833 = vpop.f32.mrb[0].mxu0
    %v3834 = vadd.f32 0.0, %v3833
    %v3835 = vpop.f32.mrb[0].mxu0
    %v3836 = vadd.f32 0.0, %v3835
    %v3837 = vpop.f32.mrb[0].mxu0
    %v3838 = vadd.f32 0.0, %v3837
    %3839 = vmatprep.mubr.bf16.mxu0 %v2732
    %3840 = vmatmul.mubr.bf16.gmra.mrb[0].mxu0 %v2731
    %v3841 = vpop.f32.mrb[0].mxu0
    %v3842 = vadd.f32 0.0, %v3841
    %v3843 = vpop.f32.mrb[0].mxu0
    %v3844 = vadd.f32 0.0, %v3843
    %v3845 = vpop.f32.mrb[0].mxu0
    %v3846 = vadd.f32 0.0, %v3845
    %v3847 = vpop.f32.mrb[0].mxu0
    %v3848 = vadd.f32 0.0, %v3847
    %3849 = vmatprep.mubr.bf16.mxu0 %v2734
    %3850 = vmatmul.mubr.bf16.gmra.mrb[0].mxu0 %v2733
    %v3851 = vpop.f32.mrb[0].mxu0
    %v3852 = vadd.f32 0.0, %v3851
    %v3853 = vpop.f32.mrb[0].mxu0
    %v3854 = vadd.f32 0.0, %v3853
    %v3855 = vpop.f32.mrb[0].mxu0
    %v3856 = vadd.f32 0.0, %v3855
    %v3857 = vpop.f32.mrb[0].mxu0
    %v3858 = vadd.f32 0.0, %v3857
    %3859 = vmatprep.mubr.bf16.mxu0 %v3341
    %3860 = vmatmul.mubr.bf16.gmra.mrb[0].mxu0 %v3340
    %v3861 = vpop.f32.mrb[0].mxu0
    %v3862 = vadd.f32 0.0, %v3861
    %v3863 = vpop.f32.mrb[0].mxu0
    %v3864 = vadd.f32 0.0, %v3863
    %v3865 = vpop.f32.mrb[0].mxu0
    %v3866 = vadd.f32 0.0, %v3865
    %v3867 = vpop.f32.mrb[0].mxu0
    %v3868 = vadd.f32 0.0, %v3867
    %3869 = vdwg.mxu0
    %v3870 = vadd.f32 %v3104, %v3699
    %v3871 = vadd.f32 %v3106, %v3701
    %v3872 = vadd.f32 %v3207, %v3802
    %v3873 = vadd.f32 %v3209, %v3804
    %v3874 = vadd.f32 %v3108, %v3703
    %v3875 = vadd.f32 %v3110, %v3705
    %v3876 = vadd.f32 %v3211, %v3806
    %v3877 = vadd.f32 %v3213, %v3808
    %v3878 = vadd.f32 %v3114, %v3709
    %v3879 = vadd.f32 %v3116, %v3711
    %v3880 = vadd.f32 %v3217, %v3812
    %v3881 = vadd.f32 %v3219, %v3814
    %v3882 = vadd.f32 %v3118, %v3713
    %v3883 = vadd.f32 %v3120, %v3715
    %v3884 = vadd.f32 %v3221, %v3816
    %v3885 = vadd.f32 %v3223, %v3818
    %v3886 = vadd.f32 %v3124, %v3719
    %v3887 = vadd.f32 %v3126, %v3721
    %v3888 = vadd.f32 %v3227, %v3822
    %v3889 = vadd.f32 %v3229, %v3824
    %v3890 = vadd.f32 %v3128, %v3723
    %v3891 = vadd.f32 %v3130, %v3725
    %v3892 = vadd.f32 %v3231, %v3826
    %v3893 = vadd.f32 %v3233, %v3828
    %v3894 = vadd.f32 %v3134, %v3729
    %v3895 = vadd.f32 %v3136, %v3731
    %v3896 = vadd.f32 %v3237, %v3832
    %v3897 = vadd.f32 %v3239, %v3834
    %v3898 = vadd.f32 %v3138, %v3733
    %v3899 = vadd.f32 %v3140, %v3735
    %v3900 = vadd.f32 %v3241, %v3836
    %v3901 = vadd.f32 %v3243, %v3838
    %v3902 = vadd.f32 %v3144, %v3739
    %v3903 = vadd.f32 %v3146, %v3741
    %v3904 = vadd.f32 %v3247, %v3842
    %v3905 = vadd.f32 %v3249, %v3844
    %v3906 = vadd.f32 %v3148, %v3743
    %v3907 = vadd.f32 %v3150, %v3745
    %v3908 = vadd.f32 %v3251, %v3846
    %v3909 = vadd.f32 %v3253, %v3848
    %v3910 = vadd.f32 %v3154, %v3749
    %v3911 = vadd.f32 %v3156, %v3751
    %v3912 = vadd.f32 %v3257, %v3852
    %v3913 = vadd.f32 %v3259, %v3854
    %v3914 = vadd.f32 %v3158, %v3753
    %v3915 = vadd.f32 %v3160, %v3755
    %v3916 = vadd.f32 %v3261, %v3856
    %v3917 = vadd.f32 %v3263, %v3858
    %v3918 = vadd.f32 %v3164, %v3759
    %v3919 = vadd.f32 %v3166, %v3761
    %v3920 = vadd.f32 %v3267, %v3862
    %v3921 = vadd.f32 %v3269, %v3864
    %v3922 = vadd.f32 %v3168, %v3763
    %v3923 = vadd.f32 %v3170, %v3765
    %v3924 = vadd.f32 %v3271, %v3866
    %v3925 = vadd.f32 %v3273, %v3868
    %v3926 = vld [vmem:[%s4] sm:$0xf]
    %v3928 = vlaneseq
    %v3929 = vshrl.u32 %v3928, 7
    %v3930 = vsub.s32 0, %v3929
    %v3931 = vrot.slane %v3926, %v3930
    %v3932 = vlaneseq
    %v3933 = vshrl.u32 %v3932, 7
    %v3934 = vsub.s32 1, %v3933
    %v3935 = vrot.slane %v3926, %v3934
    %v3936 = vlaneseq
    %v3937 = vshrl.u32 %v3936, 7
    %v3938 = vsub.s32 2, %v3937
    %v3939 = vrot.slane %v3926, %v3938
    %v3940 = vlaneseq
    %v3941 = vshrl.u32 %v3940, 7
    %v3942 = vsub.s32 3, %v3941
    %v3943 = vrot.slane %v3926, %v3942
    %v3948 = vadd.f32 %v3870, %v3931
    %v3949 = vadd.f32 %v3871, %v3935
    %v3950 = vadd.f32 %v3872, %v3939
    %v3951 = vadd.f32 %v3873, %v3943
    %v3952 = vadd.f32 %v3874, %v3931
    %v3953 = vadd.f32 %v3875, %v3935
    %v3954 = vadd.f32 %v3876, %v3939
    %v3955 = vadd.f32 %v3877, %v3943
    %v3956 = vadd.f32 %v3878, %v3931
    %v3957 = vadd.f32 %v3879, %v3935
    %v3958 = vadd.f32 %v3880, %v3939
    %v3959 = vadd.f32 %v3881, %v3943
    %v3960 = vadd.f32 %v3882, %v3931
    %v3961 = vadd.f32 %v3883, %v3935
    %v3962 = vadd.f32 %v3884, %v3939
    %v3963 = vadd.f32 %v3885, %v3943
    %v3964 = vadd.f32 %v3886, %v3931
    %v3965 = vadd.f32 %v3887, %v3935
    %v3966 = vadd.f32 %v3888, %v3939
    %v3967 = vadd.f32 %v3889, %v3943
    %v3968 = vadd.f32 %v3890, %v3931
    %v3969 = vadd.f32 %v3891, %v3935
    %v3970 = vadd.f32 %v3892, %v3939
    %v3971 = vadd.f32 %v3893, %v3943
    %v3972 = vadd.f32 %v3894, %v3931
    %v3973 = vadd.f32 %v3895, %v3935
    %v3974 = vadd.f32 %v3896, %v3939
    %v3975 = vadd.f32 %v3897, %v3943
    %v3976 = vadd.f32 %v3898, %v3931
    %v3977 = vadd.f32 %v3899, %v3935
    %v3978 = vadd.f32 %v3900, %v3939
    %v3979 = vadd.f32 %v3901, %v3943
    %v3980 = vadd.f32 %v3902, %v3931
    %v3981 = vadd.f32 %v3903, %v3935
    %v3982 = vadd.f32 %v3904, %v3939
    %v3983 = vadd.f32 %v3905, %v3943
    %v3984 = vadd.f32 %v3906, %v3931
    %v3985 = vadd.f32 %v3907, %v3935
    %v3986 = vadd.f32 %v3908, %v3939
    %v3987 = vadd.f32 %v3909, %v3943
    %v3988 = vadd.f32 %v3910, %v3931
    %v3989 = vadd.f32 %v3911, %v3935
    %v3990 = vadd.f32 %v3912, %v3939
    %v3991 = vadd.f32 %v3913, %v3943
    %v3992 = vadd.f32 %v3914, %v3931
    %v3993 = vadd.f32 %v3915, %v3935
    %v3994 = vadd.f32 %v3916, %v3939
    %v3995 = vadd.f32 %v3917, %v3943
    %v3996 = vadd.f32 %v3918, %v3931
    %v3997 = vadd.f32 %v3919, %v3935
    %v3998 = vadd.f32 %v3920, %v3939
    %v3999 = vadd.f32 %v3921, %v3943
    %v4000 = vadd.f32 %v3922, %v3931
    %v4001 = vadd.f32 %v3923, %v3935
    %v4002 = vadd.f32 %v3924, %v3939
    %v4003 = vadd.f32 %v3925, %v3943
    %v4004 = vmax.f32 %v3948, 0.0
    %v4005 = vmax.f32 %v3949, 0.0
    %v4006 = vmax.f32 %v3950, 0.0
    %v4007 = vmax.f32 %v3951, 0.0
    %v4008 = vmax.f32 %v3952, 0.0
    %v4009 = vmax.f32 %v3953, 0.0
    %v4010 = vmax.f32 %v3954, 0.0
    %v4011 = vmax.f32 %v3955, 0.0
    %v4012 = vmax.f32 %v3956, 0.0
    %v4013 = vmax.f32 %v3957, 0.0
    %v4014 = vmax.f32 %v3958, 0.0
    %v4015 = vmax.f32 %v3959, 0.0
    %v4016 = vmax.f32 %v3960, 0.0
    %v4017 = vmax.f32 %v3961, 0.0
    %v4018 = vmax.f32 %v3962, 0.0
    %v4019 = vmax.f32 %v3963, 0.0
    %v4020 = vmax.f32 %v3964, 0.0
    %v4021 = vmax.f32 %v3965, 0.0
    %v4022 = vmax.f32 %v3966, 0.0
    %v4023 = vmax.f32 %v3967, 0.0
    %v4024 = vmax.f32 %v3968, 0.0
    %v4025 = vmax.f32 %v3969, 0.0
    %v4026 = vmax.f32 %v3970, 0.0
    %v4027 = vmax.f32 %v3971, 0.0
    %v4028 = vmax.f32 %v3972, 0.0
    %v4029 = vmax.f32 %v3973, 0.0
    %v4030 = vmax.f32 %v3974, 0.0
    %v4031 = vmax.f32 %v3975, 0.0
    %v4032 = vmax.f32 %v3976, 0.0
    %v4033 = vmax.f32 %v3977, 0.0
    %v4034 = vmax.f32 %v3978, 0.0
    %v4035 = vmax.f32 %v3979, 0.0
    %v4036 = vmax.f32 %v3980, 0.0
    %v4037 = vmax.f32 %v3981, 0.0
    %v4038 = vmax.f32 %v3982, 0.0
    %v4039 = vmax.f32 %v3983, 0.0
    %v4040 = vmax.f32 %v3984, 0.0
    %v4041 = vmax.f32 %v3985, 0.0
    %v4042 = vmax.f32 %v3986, 0.0
    %v4043 = vmax.f32 %v3987, 0.0
    %v4044 = vmax.f32 %v3988, 0.0
    %v4045 = vmax.f32 %v3989, 0.0
    %v4046 = vmax.f32 %v3990, 0.0
    %v4047 = vmax.f32 %v3991, 0.0
    %v4048 = vmax.f32 %v3992, 0.0
    %v4049 = vmax.f32 %v3993, 0.0
    %v4050 = vmax.f32 %v3994, 0.0
    %v4051 = vmax.f32 %v3995, 0.0
    %v4052 = vmax.f32 %v3996, 0.0
    %v4053 = vmax.f32 %v3997, 0.0
    %v4054 = vmax.f32 %v3998, 0.0
    %v4055 = vmax.f32 %v3999, 0.0
    %v4056 = vmax.f32 %v4000, 0.0
    %v4057 = vmax.f32 %v4001, 0.0
    %v4058 = vmax.f32 %v4002, 0.0
    %v4059 = vmax.f32 %v4003, 0.0
    %v4060 = vmax.f32 %v4004, %v4008
    %v4061 = vmax.f32 %v4005, %v4009
    %v4062 = vmax.f32 %v4006, %v4010
    %v4063 = vmax.f32 %v4007, %v4011
    %v4064 = vmax.f32 %v4012, %v4016
    %v4065 = vmax.f32 %v4013, %v4017
    %v4066 = vmax.f32 %v4014, %v4018
    %v4067 = vmax.f32 %v4015, %v4019
    %v4068 = vmax.f32 %v4020, %v4024
    %v4069 = vmax.f32 %v4021, %v4025
    %v4070 = vmax.f32 %v4022, %v4026
    %v4071 = vmax.f32 %v4023, %v4027
    %v4072 = vmax.f32 %v4028, %v4032
    %v4073 = vmax.f32 %v4029, %v4033
    %v4074 = vmax.f32 %v4030, %v4034
    %v4075 = vmax.f32 %v4031, %v4035
    %v4076 = vmax.f32 %v4036, %v4040
    %v4077 = vmax.f32 %v4037, %v4041
    %v4078 = vmax.f32 %v4038, %v4042
    %v4079 = vmax.f32 %v4039, %v4043
    %v4080 = vmax.f32 %v4044, %v4048
    %v4081 = vmax.f32 %v4045, %v4049
    %v4082 = vmax.f32 %v4046, %v4050
    %v4083 = vmax.f32 %v4047, %v4051
    %v4084 = vmax.f32 %v4052, %v4056
    %v4085 = vmax.f32 %v4053, %v4057
    %v4086 = vmax.f32 %v4054, %v4058
    %v4087 = vmax.f32 %v4055, %v4059
    %v4088 = vmax.f32 %v4060, %v4062
    %v4089 = vmax.f32 %v4061, %v4063
    %v4090 = vmax.f32 %v4064, %v4066
    %v4091 = vmax.f32 %v4065, %v4067
    %v4092 = vmax.f32 %v4068, %v4070
    %v4093 = vmax.f32 %v4069, %v4071
    %v4094 = vmax.f32 %v4072, %v4074
    %v4095 = vmax.f32 %v4073, %v4075
    %v4096 = vmax.f32 %v4076, %v4078
    %v4097 = vmax.f32 %v4077, %v4079
    %v4098 = vmax.f32 %v4080, %v4082
    %v4099 = vmax.f32 %v4081, %v4083
    %v4100 = vmax.f32 %v4084, %v4086
    %v4101 = vmax.f32 %v4085, %v4087
    %v4102 = vpack.c.bf16 %v4088, %v4088
    %v4103 = vpack.c.bf16 %v4089, %v4089
    %v4104 = vpack.c.bf16 %v4090, %v4090
    %v4105 = vpack.c.bf16 %v4091, %v4091
    %v4106 = vpack.c.bf16 %v4092, %v4092
    %v4107 = vpack.c.bf16 %v4093, %v4093
    %v4108 = vpack.c.bf16 %v4094, %v4094
    %v4109 = vpack.c.bf16 %v4095, %v4095
    %v4110 = vpack.c.bf16 %v4096, %v4096
    %v4111 = vpack.c.bf16 %v4097, %v4097
    %v4112 = vpack.c.bf16 %v4098, %v4098
    %v4113 = vpack.c.bf16 %v4099, %v4099
    %v4114 = vpack.c.bf16 %v4100, %v4100
    %v4115 = vpack.c.bf16 %v4101, %v4101
    %v4128 = vunpack.c.l.b16 %v4102
    %v4129 = vunpack.c.l.b16 %v4103
    %v4130 = vunpack.c.l.b16 %v4104
    %v4131 = vunpack.c.l.b16 %v4105
    %v4132 = vunpack.c.l.b16 %v4106
    %v4133 = vunpack.c.l.b16 %v4107
    %v4134 = vunpack.c.l.b16 %v4108
    %v4135 = vunpack.c.l.b16 %v4109
    %v4136 = vunpack.c.l.b16 %v4110
    %v4137 = vunpack.c.l.b16 %v4111
    %v4138 = vunpack.c.l.b16 %v4112
    %v4139 = vunpack.c.l.b16 %v4113
    %v4140 = vld [vmem:[#allocation4] sm:$0xff]
    %v4141 = vld [vmem:[#allocation4 + $0x8] sm:$0xff]
    %v4142 = vld [vmem:[#allocation4 + $0x10] sm:$0xff]
    %v4143 = vld [vmem:[#allocation4 + $0x18] sm:$0xff]
    %v4144 = vld [vmem:[#allocation4 + $0x20] sm:$0xff]
    %v4145 = vld [vmem:[#allocation4 + $0x28] sm:$0xff]
    %v4146 = vld [vmem:[#allocation4 + $0x30] sm:$0xff]
    %v4147 = vld [vmem:[#allocation4 + $0x38] sm:$0xff]
    %v4148 = vld [vmem:[#allocation4 + $0x40] sm:$0xff]
    %v4149 = vld [vmem:[#allocation4 + $0x48] sm:$0xff]
    %v4150 = vld [vmem:[#allocation4 + $0x50] sm:$0xff]
    %v4151 = vld [vmem:[#allocation4 + $0x58] sm:$0xff]
    %v4152 = vld [vmem:[#allocation4 + $0x60] sm:$0xff]
    %v4153 = vld [vmem:[#allocation4 + $0x68] sm:$0xff]
    %v4154 = vld [vmem:[#allocation4 + $0x70] sm:$0xff]
    %v4155 = vld [vmem:[#allocation4 + $0x78] sm:$0xff]
    %v4156 = vld [vmem:[#allocation4 + $0x80] sm:$0xff]
    %v4157 = vld [vmem:[#allocation4 + $0x88] sm:$0xff]
    %v4158 = vld [vmem:[#allocation4 + $0x90] sm:$0xff]
    %v4159 = vld [vmem:[#allocation4 + $0x98] sm:$0xff]
    %v4160 = vld [vmem:[#allocation4 + $0xa0] sm:$0xff]
    %v4161 = vld [vmem:[#allocation4 + $0xa8] sm:$0xff]
    %v4162 = vld [vmem:[#allocation4 + $0xb0] sm:$0xff]
    %v4163 = vld [vmem:[#allocation4 + $0xb8] sm:$0xff]
    %v4164 = vld [vmem:[#allocation4 + $0xc0] sm:$0xff]
    %v4165 = vld [vmem:[#allocation4 + $0xc8] sm:$0xff]
    %v4166 = vld [vmem:[#allocation4 + $0xd0] sm:$0xff]
    %v4167 = vld [vmem:[#allocation4 + $0xd8] sm:$0xff]
    %v4168 = vld [vmem:[#allocation4 + $0xe0] sm:$0xff]
    %v4169 = vld [vmem:[#allocation4 + $0xe8] sm:$0xff]
    %v4170 = vld [vmem:[#allocation4 + $0xf0] sm:$0xff]
    %v4171 = vld [vmem:[#allocation4 + $0xf8] sm:$0xff]
    %v4172 = vld [vmem:[#allocation4 + $0x100] sm:$0xff]
    %v4173 = vld [vmem:[#allocation4 + $0x108] sm:$0xff]
    %v4174 = vld [vmem:[#allocation4 + $0x110] sm:$0xff]
    %v4175 = vld [vmem:[#allocation4 + $0x118] sm:$0xff]
    %v4176 = vld [vmem:[#allocation4 + $0x120] sm:$0xff]
    %v4177 = vld [vmem:[#allocation4 + $0x128] sm:$0xff]
    %v4178 = vld [vmem:[#allocation4 + $0x130] sm:$0xff]
    %v4179 = vld [vmem:[#allocation4 + $0x138] sm:$0xff]
    %v4180 = vld [vmem:[#allocation4 + $0x140] sm:$0xff]
    %v4181 = vld [vmem:[#allocation4 + $0x148] sm:$0xff]
    %v4182 = vld [vmem:[#allocation4 + $0x150] sm:$0xff]
    %v4183 = vld [vmem:[#allocation4 + $0x158] sm:$0xff]
    %v4184 = vld [vmem:[#allocation4 + $0x160] sm:$0xff]
    %v4185 = vld [vmem:[#allocation4 + $0x168] sm:$0xff]
    %v4186 = vld [vmem:[#allocation4 + $0x170] sm:$0xff]
    %v4187 = vld [vmem:[#allocation4 + $0x178] sm:$0xff]
    %v4188 = vld [vmem:[#allocation4 + $0x180] sm:$0xff]
    %v4189 = vld [vmem:[#allocation4 + $0x188] sm:$0xff]
    %v4190 = vld [vmem:[#allocation4 + $0x190] sm:$0xff]
    %v4191 = vld [vmem:[#allocation4 + $0x198] sm:$0xff]
    %v4192 = vld [vmem:[#allocation4 + $0x1a0] sm:$0xff]
    %v4193 = vld [vmem:[#allocation4 + $0x1a8] sm:$0xff]
    %v4194 = vld [vmem:[#allocation4 + $0x1b0] sm:$0xff]
    %v4195 = vld [vmem:[#allocation4 + $0x1b8] sm:$0xff]
    %v4196 = vld [vmem:[#allocation4 + $0x1c0] sm:$0xff]
    %v4197 = vld [vmem:[#allocation4 + $0x1c8] sm:$0xff]
    %v4198 = vld [vmem:[#allocation4 + $0x1d0] sm:$0xff]
    %v4199 = vld [vmem:[#allocation4 + $0x1d8] sm:$0xff]
    %v4200 = vld [vmem:[#allocation4 + $0x1e0] sm:$0xff]
    %v4201 = vld [vmem:[#allocation4 + $0x1e8] sm:$0xff]
    %v4202 = vld [vmem:[#allocation4 + $0x1f0] sm:$0xff]
    %v4203 = vld [vmem:[#allocation4 + $0x1f8] sm:$0xff]
    %v4206 = vunpack.c.l.b16 %v4114
    %v4207 = vunpack.c.l.b16 %v4115
    %s4208 = scalar_lea.vmem [#allocation4], 512
    %v4209 = vld [vmem:[%s4208] sm:$0xff]
    %v4210 = vld [vmem:[%s4208 + $0x8] sm:$0xff]
    %v4211 = vld [vmem:[%s4208 + $0x10] sm:$0xff]
    %v4212 = vld [vmem:[%s4208 + $0x18] sm:$0xff]
    %v4213 = vld [vmem:[%s4208 + $0x20] sm:$0xff]
    %v4214 = vld [vmem:[%s4208 + $0x28] sm:$0xff]
    %v4215 = vld [vmem:[%s4208 + $0x30] sm:$0xff]
    %v4216 = vld [vmem:[%s4208 + $0x38] sm:$0xff]
    %v4217 = vld [vmem:[%s4208 + $0x40] sm:$0xff]
    %v4218 = vld [vmem:[%s4208 + $0x48] sm:$0xff]
    %v4219 = vld [vmem:[%s4208 + $0x50] sm:$0xff]
    %v4220 = vld [vmem:[%s4208 + $0x58] sm:$0xff]
    %v4221 = vld [vmem:[%s4208 + $0x60] sm:$0xff]
    %v4222 = vld [vmem:[%s4208 + $0x68] sm:$0xff]
    %v4223 = vld [vmem:[%s4208 + $0x70] sm:$0xff]
    %v4224 = vld [vmem:[%s4208 + $0x78] sm:$0xff]
    %v4225 = vld [vmem:[%s4208 + $0x80] sm:$0xff]
    %v4226 = vld [vmem:[%s4208 + $0x88] sm:$0xff]
    %v4227 = vld [vmem:[%s4208 + $0x90] sm:$0xff]
    %v4228 = vld [vmem:[%s4208 + $0x98] sm:$0xff]
    %v4229 = vld [vmem:[%s4208 + $0xa0] sm:$0xff]
    %v4230 = vld [vmem:[%s4208 + $0xa8] sm:$0xff]
    %v4231 = vld [vmem:[%s4208 + $0xb0] sm:$0xff]
    %v4232 = vld [vmem:[%s4208 + $0xb8] sm:$0xff]
    %v4233 = vld [vmem:[%s4208 + $0xc0] sm:$0xff]
    %v4234 = vld [vmem:[%s4208 + $0xc8] sm:$0xff]
    %v4235 = vld [vmem:[%s4208 + $0xd0] sm:$0xff]
    %v4236 = vld [vmem:[%s4208 + $0xd8] sm:$0xff]
    %v4237 = vld [vmem:[%s4208 + $0xe0] sm:$0xff]
    %v4238 = vld [vmem:[%s4208 + $0xe8] sm:$0xff]
    %v4239 = vld [vmem:[%s4208 + $0xf0] sm:$0xff]
    %v4240 = vld [vmem:[%s4208 + $0xf8] sm:$0xff]
    %v4241 = vld [vmem:[%s4208 + $0x100] sm:$0xff]
    %v4242 = vld [vmem:[%s4208 + $0x108] sm:$0xff]
    %v4243 = vld [vmem:[%s4208 + $0x110] sm:$0xff]
    %v4244 = vld [vmem:[%s4208 + $0x118] sm:$0xff]
    %v4245 = vld [vmem:[%s4208 + $0x120] sm:$0xff]
    %v4246 = vld [vmem:[%s4208 + $0x128] sm:$0xff]
    %v4247 = vld [vmem:[%s4208 + $0x130] sm:$0xff]
    %v4248 = vld [vmem:[%s4208 + $0x138] sm:$0xff]
    %v4249 = vld [vmem:[%s4208 + $0x140] sm:$0xff]
    %v4250 = vld [vmem:[%s4208 + $0x148] sm:$0xff]
    %v4251 = vld [vmem:[%s4208 + $0x150] sm:$0xff]
    %v4252 = vld [vmem:[%s4208 + $0x158] sm:$0xff]
    %v4253 = vld [vmem:[%s4208 + $0x160] sm:$0xff]
    %v4254 = vld [vmem:[%s4208 + $0x168] sm:$0xff]
    %v4255 = vld [vmem:[%s4208 + $0x170] sm:$0xff]
    %v4256 = vld [vmem:[%s4208 + $0x178] sm:$0xff]
    %v4257 = vld [vmem:[%s4208 + $0x180] sm:$0xff]
    %v4258 = vld [vmem:[%s4208 + $0x188] sm:$0xff]
    %v4259 = vld [vmem:[%s4208 + $0x190] sm:$0xff]
    %v4260 = vld [vmem:[%s4208 + $0x198] sm:$0xff]
    %v4261 = vld [vmem:[%s4208 + $0x1a0] sm:$0xff]
    %v4262 = vld [vmem:[%s4208 + $0x1a8] sm:$0xff]
    %v4263 = vld [vmem:[%s4208 + $0x1b0] sm:$0xff]
    %v4264 = vld [vmem:[%s4208 + $0x1b8] sm:$0xff]
    %v4265 = vld [vmem:[%s4208 + $0x1c0] sm:$0xff]
    %v4266 = vld [vmem:[%s4208 + $0x1c8] sm:$0xff]
    %v4267 = vld [vmem:[%s4208 + $0x1d0] sm:$0xff]
    %v4268 = vld [vmem:[%s4208 + $0x1d8] sm:$0xff]
    %v4269 = vld [vmem:[%s4208 + $0x1e0] sm:$0xff]
    %v4270 = vld [vmem:[%s4208 + $0x1e8] sm:$0xff]
    %v4271 = vld [vmem:[%s4208 + $0x1f0] sm:$0xff]
    %v4272 = vld [vmem:[%s4208 + $0x1f8] sm:$0xff]
    %v4273 = vpack.c.b16 %v4130, %v4128
    %v4274 = vpack.c.b16 %v4131, %v4129
    %v4275 = vpack.c.b16 %v4134, %v4132
    %v4276 = vpack.c.b16 %v4135, %v4133
    %v4277 = vpack.c.b16 %v4138, %v4136
    %v4278 = vpack.c.b16 %v4139, %v4137
    %v4279 = vpack.c.b16 %v4206, %v4206
    %v4280 = vpack.c.b16 %v4207, %v4207
    %v4353 = vunpack.c.l.b16 %v4209
    %v4354 = vunpack.c.h.b16 %v4209
    %v4355 = vunpack.c.l.b16 %v4210
    %v4356 = vunpack.c.h.b16 %v4210
    %v4357 = vunpack.c.l.b16 %v4211
    %v4358 = vunpack.c.h.b16 %v4211
    %v4359 = vunpack.c.l.b16 %v4212
    %v4360 = vunpack.c.h.b16 %v4212
    %v4361 = vunpack.c.l.b16 %v4213
    %v4362 = vunpack.c.h.b16 %v4213
    %v4363 = vunpack.c.l.b16 %v4214
    %v4364 = vunpack.c.h.b16 %v4214
    %v4365 = vunpack.c.l.b16 %v4215
    %v4366 = vunpack.c.h.b16 %v4215
    %v4367 = vunpack.c.l.b16 %v4216
    %v4368 = vunpack.c.h.b16 %v4216
    %v4369 = vunpack.c.l.b16 %v4217
    %v4370 = vunpack.c.h.b16 %v4217
    %v4371 = vunpack.c.l.b16 %v4218
    %v4372 = vunpack.c.h.b16 %v4218
    %v4373 = vunpack.c.l.b16 %v4219
    %v4374 = vunpack.c.h.b16 %v4219
    %v4375 = vunpack.c.l.b16 %v4220
    %v4376 = vunpack.c.h.b16 %v4220
    %v4377 = vunpack.c.l.b16 %v4221
    %v4378 = vunpack.c.h.b16 %v4221
    %v4379 = vunpack.c.l.b16 %v4222
    %v4380 = vunpack.c.h.b16 %v4222
    %v4381 = vunpack.c.l.b16 %v4223
    %v4382 = vunpack.c.h.b16 %v4223
    %v4383 = vunpack.c.l.b16 %v4224
    %v4384 = vunpack.c.h.b16 %v4224
    %v4385 = vunpack.c.l.b16 %v4225
    %v4386 = vunpack.c.h.b16 %v4225
    %v4387 = vunpack.c.l.b16 %v4226
    %v4388 = vunpack.c.h.b16 %v4226
    %v4389 = vunpack.c.l.b16 %v4227
    %v4390 = vunpack.c.h.b16 %v4227
    %v4391 = vunpack.c.l.b16 %v4228
    %v4392 = vunpack.c.h.b16 %v4228
    %v4393 = vunpack.c.l.b16 %v4229
    %v4394 = vunpack.c.h.b16 %v4229
    %v4395 = vunpack.c.l.b16 %v4230
    %v4396 = vunpack.c.h.b16 %v4230
    %v4397 = vunpack.c.l.b16 %v4231
    %v4398 = vunpack.c.h.b16 %v4231
    %v4399 = vunpack.c.l.b16 %v4232
    %v4400 = vunpack.c.h.b16 %v4232
    %v4401 = vunpack.c.l.b16 %v4233
    %v4402 = vunpack.c.h.b16 %v4233
    %v4403 = vunpack.c.l.b16 %v4234
    %v4404 = vunpack.c.h.b16 %v4234
    %v4405 = vunpack.c.l.b16 %v4235
    %v4406 = vunpack.c.h.b16 %v4235
    %v4407 = vunpack.c.l.b16 %v4236
    %v4408 = vunpack.c.h.b16 %v4236
    %v4409 = vunpack.c.l.b16 %v4237
    %v4410 = vunpack.c.h.b16 %v4237
    %v4411 = vunpack.c.l.b16 %v4238
    %v4412 = vunpack.c.h.b16 %v4238
    %v4413 = vunpack.c.l.b16 %v4239
    %v4414 = vunpack.c.h.b16 %v4239
    %v4415 = vunpack.c.l.b16 %v4240
    %v4416 = vunpack.c.h.b16 %v4240
    %v4417 = vunpack.c.l.b16 %v4241
    %v4418 = vunpack.c.h.b16 %v4241
    %v4419 = vunpack.c.l.b16 %v4242
    %v4420 = vunpack.c.h.b16 %v4242
    %v4421 = vunpack.c.l.b16 %v4243
    %v4422 = vunpack.c.h.b16 %v4243
    %v4423 = vunpack.c.l.b16 %v4244
    %v4424 = vunpack.c.h.b16 %v4244
    %v4425 = vunpack.c.l.b16 %v4245
    %v4426 = vunpack.c.h.b16 %v4245
    %v4427 = vunpack.c.l.b16 %v4246
    %v4428 = vunpack.c.h.b16 %v4246
    %v4429 = vunpack.c.l.b16 %v4247
    %v4430 = vunpack.c.h.b16 %v4247
    %v4431 = vunpack.c.l.b16 %v4248
    %v4432 = vunpack.c.h.b16 %v4248
    %v4433 = vunpack.c.l.b16 %v4249
    %v4434 = vunpack.c.h.b16 %v4249
    %v4435 = vunpack.c.l.b16 %v4250
    %v4436 = vunpack.c.h.b16 %v4250
    %v4437 = vunpack.c.l.b16 %v4251
    %v4438 = vunpack.c.h.b16 %v4251
    %v4439 = vunpack.c.l.b16 %v4252
    %v4440 = vunpack.c.h.b16 %v4252
    %v4441 = vunpack.c.l.b16 %v4253
    %v4442 = vunpack.c.h.b16 %v4253
    %v4443 = vunpack.c.l.b16 %v4254
    %v4444 = vunpack.c.h.b16 %v4254
    %v4445 = vunpack.c.l.b16 %v4255
    %v4446 = vunpack.c.h.b16 %v4255
    %v4447 = vunpack.c.l.b16 %v4256
    %v4448 = vunpack.c.h.b16 %v4256
    %v4449 = vunpack.c.l.b16 %v4257
    %v4450 = vunpack.c.h.b16 %v4257
    %v4451 = vunpack.c.l.b16 %v4258
    %v4452 = vunpack.c.h.b16 %v4258
    %v4453 = vunpack.c.l.b16 %v4259
    %v4454 = vunpack.c.h.b16 %v4259
    %v4455 = vunpack.c.l.b16 %v4260
    %v4456 = vunpack.c.h.b16 %v4260
    %v4457 = vunpack.c.l.b16 %v4261
    %v4458 = vunpack.c.h.b16 %v4261
    %v4459 = vunpack.c.l.b16 %v4262
    %v4460 = vunpack.c.h.b16 %v4262
    %v4461 = vunpack.c.l.b16 %v4263
    %v4462 = vunpack.c.h.b16 %v4263
    %v4463 = vunpack.c.l.b16 %v4264
    %v4464 = vunpack.c.h.b16 %v4264
    %v4465 = vunpack.c.l.b16 %v4265
    %v4466 = vunpack.c.h.b16 %v4265
    %v4467 = vunpack.c.l.b16 %v4266
    %v4468 = vunpack.c.h.b16 %v4266
    %v4469 = vunpack.c.l.b16 %v4267
    %v4470 = vunpack.c.h.b16 %v4267
    %v4471 = vunpack.c.l.b16 %v4268
    %v4472 = vunpack.c.h.b16 %v4268
    %v4473 = vunpack.c.l.b16 %v4269
    %v4474 = vunpack.c.h.b16 %v4269
    %v4475 = vunpack.c.l.b16 %v4270
    %v4476 = vunpack.c.h.b16 %v4270
    %v4477 = vunpack.c.l.b16 %v4271
    %v4478 = vunpack.c.h.b16 %v4271
    %v4479 = vunpack.c.l.b16 %v4272
    %v4480 = vunpack.c.h.b16 %v4272
    %v4481 = vpack.c.b16 %v4357, %v4353
    %v4482 = vpack.c.b16 %v4358, %v4354
    %v4483 = vpack.c.b16 %v4359, %v4355
    %v4484 = vpack.c.b16 %v4360, %v4356
    %v4485 = vpack.c.b16 %v4365, %v4361
    %v4486 = vpack.c.b16 %v4366, %v4362
    %v4487 = vpack.c.b16 %v4367, %v4363
    %v4488 = vpack.c.b16 %v4368, %v4364
    %v4489 = vpack.c.b16 %v4373, %v4369
    %v4490 = vpack.c.b16 %v4374, %v4370
    %v4491 = vpack.c.b16 %v4375, %v4371
    %v4492 = vpack.c.b16 %v4376, %v4372
    %v4493 = vpack.c.b16 %v4381, %v4377
    %v4494 = vpack.c.b16 %v4382, %v4378
    %v4495 = vpack.c.b16 %v4383, %v4379
    %v4496 = vpack.c.b16 %v4384, %v4380
    %v4497 = vpack.c.b16 %v4389, %v4385
    %v4498 = vpack.c.b16 %v4390, %v4386
    %v4499 = vpack.c.b16 %v4391, %v4387
    %v4500 = vpack.c.b16 %v4392, %v4388
    %v4501 = vpack.c.b16 %v4397, %v4393
    %v4502 = vpack.c.b16 %v4398, %v4394
    %v4503 = vpack.c.b16 %v4399, %v4395
    %v4504 = vpack.c.b16 %v4400, %v4396
    %v4505 = vpack.c.b16 %v4405, %v4401
    %v4506 = vpack.c.b16 %v4406, %v4402
    %v4507 = vpack.c.b16 %v4407, %v4403
    %v4508 = vpack.c.b16 %v4408, %v4404
    %v4509 = vpack.c.b16 %v4413, %v4409
    %v4510 = vpack.c.b16 %v4414, %v4410
    %v4511 = vpack.c.b16 %v4415, %v4411
    %v4512 = vpack.c.b16 %v4416, %v4412
    %v4513 = vpack.c.b16 %v4421, %v4417
    %v4514 = vpack.c.b16 %v4422, %v4418
    %v4515 = vpack.c.b16 %v4423, %v4419
    %v4516 = vpack.c.b16 %v4424, %v4420
    %v4517 = vpack.c.b16 %v4429, %v4425
    %v4518 = vpack.c.b16 %v4430, %v4426
    %v4519 = vpack.c.b16 %v4431, %v4427
    %v4520 = vpack.c.b16 %v4432, %v4428
    %v4521 = vpack.c.b16 %v4437, %v4433
    %v4522 = vpack.c.b16 %v4438, %v4434
    %v4523 = vpack.c.b16 %v4439, %v4435
    %v4524 = vpack.c.b16 %v4440, %v4436
    %v4525 = vpack.c.b16 %v4445, %v4441
    %v4526 = vpack.c.b16 %v4446, %v4442
    %v4527 = vpack.c.b16 %v4447, %v4443
    %v4528 = vpack.c.b16 %v4448, %v4444
    %v4529 = vpack.c.b16 %v4453, %v4449
    %v4530 = vpack.c.b16 %v4454, %v4450
    %v4531 = vpack.c.b16 %v4455, %v4451
    %v4532 = vpack.c.b16 %v4456, %v4452
    %v4533 = vpack.c.b16 %v4461, %v4457
    %v4534 = vpack.c.b16 %v4462, %v4458
    %v4535 = vpack.c.b16 %v4463, %v4459
    %v4536 = vpack.c.b16 %v4464, %v4460
    %v4537 = vpack.c.b16 %v4469, %v4465
    %v4538 = vpack.c.b16 %v4470, %v4466
    %v4539 = vpack.c.b16 %v4471, %v4467
    %v4540 = vpack.c.b16 %v4472, %v4468
    %v4541 = vpack.c.b16 %v4477, %v4473
    %v4542 = vpack.c.b16 %v4478, %v4474
    %v4543 = vpack.c.b16 %v4479, %v4475
    %v4544 = vpack.c.b16 %v4480, %v4476
    %4609 = vmatprep.subr.bf16.mxu0 %v4482
    %4610 = vmatpush1.bf16.msra.mxu0 %v4481
    %4611 = vmatprep.subr.bf16.mxu0 %v4486
    %4612 = vmatpush1.bf16.msra.mxu0 %v4485
    %4613 = vmatprep.subr.bf16.mxu0 %v4490
    %4614 = vmatpush1.bf16.msra.mxu0 %v4489
    %4615 = vmatprep.subr.bf16.mxu0 %v4494
    %4616 = vmatpush1.bf16.msra.mxu0 %v4493
    %4617 = vmatprep.subr.bf16.mxu0 %v4498
    %4618 = vmatpush1.bf16.msra.mxu0 %v4497
    %4619 = vmatprep.subr.bf16.mxu0 %v4502
    %4620 = vmatpush1.bf16.msra.mxu0 %v4501
    %4621 = vmatprep.subr.bf16.mxu0 %v4506
    %4622 = vmatpush1.bf16.msra.mxu0 %v4505
    %4623 = vmatprep.subr.bf16.mxu0 %v4510
    %4624 = vmatpush1.bf16.msra.mxu0 %v4509
    %4625 = vmatprep.subr.bf16.mxu0 %v4514
    %4626 = vmatpush1.bf16.msra.mxu0 %v4513
    %4627 = vmatprep.subr.bf16.mxu0 %v4518
    %4628 = vmatpush1.bf16.msra.mxu0 %v4517
    %4629 = vmatprep.subr.bf16.mxu0 %v4522
    %4630 = vmatpush1.bf16.msra.mxu0 %v4521
    %4631 = vmatprep.subr.bf16.mxu0 %v4526
    %4632 = vmatpush1.bf16.msra.mxu0 %v4525
    %4633 = vmatprep.subr.bf16.mxu0 %v4530
    %4634 = vmatpush1.bf16.msra.mxu0 %v4529
    %4635 = vmatprep.subr.bf16.mxu0 %v4534
    %4636 = vmatpush1.bf16.msra.mxu0 %v4533
    %4637 = vmatprep.subr.bf16.mxu0 %v4538
    %4638 = vmatpush1.bf16.msra.mxu0 %v4537
    %4639 = vmatprep.subr.bf16.mxu0 %v4542
    %4640 = vmatpush1.bf16.msra.mxu0 %v4541
    %4641 = vmatprep.mubr.bf16.mxu0 %v4274
    %4642 = vmatmul.mubr.bf16.gmra.mrb[0].mxu0 %v4273
    %v4643 = vpop.f32.mrb[0].mxu0
    %v4644 = vadd.f32 0.0, %v4643
    %v4645 = vpop.f32.mrb[0].mxu0
    %v4646 = vadd.f32 0.0, %v4645
    %v4647 = vpop.f32.mrb[0].mxu0
    %v4648 = vadd.f32 0.0, %v4647
    %v4649 = vpop.f32.mrb[0].mxu0
    %v4650 = vadd.f32 0.0, %v4649
    %4651 = vmatprep.mubr.bf16.mxu0 %v4276
    %4652 = vmatmul.mubr.bf16.gmra.mrb[0].mxu0 %v4275
    %v4653 = vpop.f32.mrb[0].mxu0
    %v4654 = vadd.f32 0.0, %v4653
    %v4655 = vpop.f32.mrb[0].mxu0
    %v4656 = vadd.f32 0.0, %v4655
    %v4657 = vpop.f32.mrb[0].mxu0
    %v4658 = vadd.f32 0.0, %v4657
    %v4659 = vpop.f32.mrb[0].mxu0
    %v4660 = vadd.f32 0.0, %v4659
    %4661 = vmatprep.mubr.bf16.mxu0 %v4278
    %4662 = vmatmul.mubr.bf16.gmra.mrb[0].mxu0 %v4277
    %v4663 = vpop.f32.mrb[0].mxu0
    %v4664 = vadd.f32 0.0, %v4663
    %v4665 = vpop.f32.mrb[0].mxu0
    %v4666 = vadd.f32 0.0, %v4665
    %v4667 = vpop.f32.mrb[0].mxu0
    %v4668 = vadd.f32 0.0, %v4667
    %v4669 = vpop.f32.mrb[0].mxu0
    %v4670 = vadd.f32 0.0, %v4669
    %4671 = vmatprep.mubr.bf16.mxu0 %v4280
    %4672 = vmatmul.mubr.bf16.gmra.mrb[0].mxu0 %v4279
    %v4673 = vpop.f32.mrb[0].mxu0
    %v4674 = vpop.f32.mrb[0].mxu0
    %v4675 = vpop.f32.mrb[0].mxu0
    %v4676 = vpop.f32.mrb[0].mxu0
    %4677 = vdwg.mxu0
    %4678 = vmatprep.subr.bf16.mxu0 %v4484
    %4679 = vmatpush1.bf16.msra.mxu0 %v4483
    %4680 = vmatprep.subr.bf16.mxu0 %v4488
    %4681 = vmatpush1.bf16.msra.mxu0 %v4487
    %4682 = vmatprep.subr.bf16.mxu0 %v4492
    %4683 = vmatpush1.bf16.msra.mxu0 %v4491
    %4684 = vmatprep.subr.bf16.mxu0 %v4496
    %4685 = vmatpush1.bf16.msra.mxu0 %v4495
    %4686 = vmatprep.subr.bf16.mxu0 %v4500
    %4687 = vmatpush1.bf16.msra.mxu0 %v4499
    %4688 = vmatprep.subr.bf16.mxu0 %v4504
    %4689 = vmatpush1.bf16.msra.mxu0 %v4503
    %4690 = vmatprep.subr.bf16.mxu0 %v4508
    %4691 = vmatpush1.bf16.msra.mxu0 %v4507
    %4692 = vmatprep.subr.bf16.mxu0 %v4512
    %4693 = vmatpush1.bf16.msra.mxu0 %v4511
    %4694 = vmatprep.subr.bf16.mxu0 %v4516
    %4695 = vmatpush1.bf16.msra.mxu0 %v4515
    %4696 = vmatprep.subr.bf16.mxu0 %v4520
    %4697 = vmatpush1.bf16.msra.mxu0 %v4519
    %4698 = vmatprep.subr.bf16.mxu0 %v4524
    %4699 = vmatpush1.bf16.msra.mxu0 %v4523
    %4700 = vmatprep.subr.bf16.mxu0 %v4528
    %4701 = vmatpush1.bf16.msra.mxu0 %v4527
    %4702 = vmatprep.subr.bf16.mxu0 %v4532
    %4703 = vmatpush1.bf16.msra.mxu0 %v4531
    %4704 = vmatprep.subr.bf16.mxu0 %v4536
    %4705 = vmatpush1.bf16.msra.mxu0 %v4535
    %4706 = vmatprep.subr.bf16.mxu0 %v4540
    %4707 = vmatpush1.bf16.msra.mxu0 %v4539
    %4708 = vmatprep.subr.bf16.mxu0 %v4544
    %4709 = vmatpush1.bf16.msra.mxu0 %v4543
    %4710 = vmatprep.mubr.bf16.mxu0 %v4274
    %4711 = vmatmul.mubr.bf16.gmra.mrb[0].mxu0 %v4273
    %v4712 = vpop.f32.mrb[0].mxu0
    %v4713 = vadd.f32 0.0, %v4712
    %v4714 = vpop.f32.mrb[0].mxu0
    %v4715 = vadd.f32 0.0, %v4714
    %v4716 = vpop.f32.mrb[0].mxu0
    %v4717 = vadd.f32 0.0, %v4716
    %v4718 = vpop.f32.mrb[0].mxu0
    %v4719 = vadd.f32 0.0, %v4718
    %4720 = vmatprep.mubr.bf16.mxu0 %v4276
    %4721 = vmatmul.mubr.bf16.gmra.mrb[0].mxu0 %v4275
    %v4722 = vpop.f32.mrb[0].mxu0
    %v4723 = vadd.f32 0.0, %v4722
    %v4724 = vpop.f32.mrb[0].mxu0
    %v4725 = vadd.f32 0.0, %v4724
    %v4726 = vpop.f32.mrb[0].mxu0
    %v4727 = vadd.f32 0.0, %v4726
    %v4728 = vpop.f32.mrb[0].mxu0
    %v4729 = vadd.f32 0.0, %v4728
    %4730 = vmatprep.mubr.bf16.mxu0 %v4278
    %4731 = vmatmul.mubr.bf16.gmra.mrb[0].mxu0 %v4277
    %v4732 = vpop.f32.mrb[0].mxu0
    %v4733 = vadd.f32 0.0, %v4732
    %v4734 = vpop.f32.mrb[0].mxu0
    %v4735 = vadd.f32 0.0, %v4734
    %v4736 = vpop.f32.mrb[0].mxu0
    %v4737 = vadd.f32 0.0, %v4736
    %v4738 = vpop.f32.mrb[0].mxu0
    %v4739 = vadd.f32 0.0, %v4738
    %4740 = vmatprep.mubr.bf16.mxu0 %v4280
    %4741 = vmatmul.mubr.bf16.gmra.mrb[0].mxu0 %v4279
    %v4742 = vpop.f32.mrb[0].mxu0
    %v4743 = vpop.f32.mrb[0].mxu0
    %v4744 = vpop.f32.mrb[0].mxu0
    %v4745 = vpop.f32.mrb[0].mxu0
    %4746 = vdwg.mxu0
    %v4747 = vpack.c.b16 %v4128, %v2007
    %v4748 = vpack.c.b16 %v4129, %v2007
    %v4749 = vpack.c.b16 %v4132, %v4130
    %v4750 = vpack.c.b16 %v4133, %v4131
    %v4751 = vpack.c.b16 %v4136, %v4134
    %v4752 = vpack.c.b16 %v4137, %v4135
    %v4753 = vpack.c.b16 %v4138, %v4138
    %v4754 = vpack.c.b16 %v4139, %v4139
    %v4827 = vunpack.c.l.b16 %v4140
    %v4828 = vunpack.c.h.b16 %v4140
    %v4829 = vunpack.c.l.b16 %v4141
    %v4830 = vunpack.c.h.b16 %v4141
    %v4831 = vunpack.c.l.b16 %v4142
    %v4832 = vunpack.c.h.b16 %v4142
    %v4833 = vunpack.c.l.b16 %v4143
    %v4834 = vunpack.c.h.b16 %v4143
    %v4835 = vunpack.c.l.b16 %v4144
    %v4836 = vunpack.c.h.b16 %v4144
    %v4837 = vunpack.c.l.b16 %v4145
    %v4838 = vunpack.c.h.b16 %v4145
    %v4839 = vunpack.c.l.b16 %v4146
    %v4840 = vunpack.c.h.b16 %v4146
    %v4841 = vunpack.c.l.b16 %v4147
    %v4842 = vunpack.c.h.b16 %v4147
    %v4843 = vunpack.c.l.b16 %v4148
    %v4844 = vunpack.c.h.b16 %v4148
    %v4845 = vunpack.c.l.b16 %v4149
    %v4846 = vunpack.c.h.b16 %v4149
    %v4847 = vunpack.c.l.b16 %v4150
    %v4848 = vunpack.c.h.b16 %v4150
    %v4849 = vunpack.c.l.b16 %v4151
    %v4850 = vunpack.c.h.b16 %v4151
    %v4851 = vunpack.c.l.b16 %v4152
    %v4852 = vunpack.c.h.b16 %v4152
    %v4853 = vunpack.c.l.b16 %v4153
    %v4854 = vunpack.c.h.b16 %v4153
    %v4855 = vunpack.c.l.b16 %v4154
    %v4856 = vunpack.c.h.b16 %v4154
    %v4857 = vunpack.c.l.b16 %v4155
    %v4858 = vunpack.c.h.b16 %v4155
    %v4859 = vunpack.c.l.b16 %v4156
    %v4860 = vunpack.c.h.b16 %v4156
    %v4861 = vunpack.c.l.b16 %v4157
    %v4862 = vunpack.c.h.b16 %v4157
    %v4863 = vunpack.c.l.b16 %v4158
    %v4864 = vunpack.c.h.b16 %v4158
    %v4865 = vunpack.c.l.b16 %v4159
    %v4866 = vunpack.c.h.b16 %v4159
    %v4867 = vunpack.c.l.b16 %v4160
    %v4868 = vunpack.c.h.b16 %v4160
    %v4869 = vunpack.c.l.b16 %v4161
    %v4870 = vunpack.c.h.b16 %v4161
    %v4871 = vunpack.c.l.b16 %v4162
    %v4872 = vunpack.c.h.b16 %v4162
    %v4873 = vunpack.c.l.b16 %v4163
    %v4874 = vunpack.c.h.b16 %v4163
    %v4875 = vunpack.c.l.b16 %v4164
    %v4876 = vunpack.c.h.b16 %v4164
    %v4877 = vunpack.c.l.b16 %v4165
    %v4878 = vunpack.c.h.b16 %v4165
    %v4879 = vunpack.c.l.b16 %v4166
    %v4880 = vunpack.c.h.b16 %v4166
    %v4881 = vunpack.c.l.b16 %v4167
    %v4882 = vunpack.c.h.b16 %v4167
    %v4883 = vunpack.c.l.b16 %v4168
    %v4884 = vunpack.c.h.b16 %v4168
    %v4885 = vunpack.c.l.b16 %v4169
    %v4886 = vunpack.c.h.b16 %v4169
    %v4887 = vunpack.c.l.b16 %v4170
    %v4888 = vunpack.c.h.b16 %v4170
    %v4889 = vunpack.c.l.b16 %v4171
    %v4890 = vunpack.c.h.b16 %v4171
    %v4891 = vunpack.c.l.b16 %v4172
    %v4892 = vunpack.c.h.b16 %v4172
    %v4893 = vunpack.c.l.b16 %v4173
    %v4894 = vunpack.c.h.b16 %v4173
    %v4895 = vunpack.c.l.b16 %v4174
    %v4896 = vunpack.c.h.b16 %v4174
    %v4897 = vunpack.c.l.b16 %v4175
    %v4898 = vunpack.c.h.b16 %v4175
    %v4899 = vunpack.c.l.b16 %v4176
    %v4900 = vunpack.c.h.b16 %v4176
    %v4901 = vunpack.c.l.b16 %v4177
    %v4902 = vunpack.c.h.b16 %v4177
    %v4903 = vunpack.c.l.b16 %v4178
    %v4904 = vunpack.c.h.b16 %v4178
    %v4905 = vunpack.c.l.b16 %v4179
    %v4906 = vunpack.c.h.b16 %v4179
    %v4907 = vunpack.c.l.b16 %v4180
    %v4908 = vunpack.c.h.b16 %v4180
    %v4909 = vunpack.c.l.b16 %v4181
    %v4910 = vunpack.c.h.b16 %v4181
    %v4911 = vunpack.c.l.b16 %v4182
    %v4912 = vunpack.c.h.b16 %v4182
    %v4913 = vunpack.c.l.b16 %v4183
    %v4914 = vunpack.c.h.b16 %v4183
    %v4915 = vunpack.c.l.b16 %v4184
    %v4916 = vunpack.c.h.b16 %v4184
    %v4917 = vunpack.c.l.b16 %v4185
    %v4918 = vunpack.c.h.b16 %v4185
    %v4919 = vunpack.c.l.b16 %v4186
    %v4920 = vunpack.c.h.b16 %v4186
    %v4921 = vunpack.c.l.b16 %v4187
    %v4922 = vunpack.c.h.b16 %v4187
    %v4923 = vunpack.c.l.b16 %v4188
    %v4924 = vunpack.c.h.b16 %v4188
    %v4925 = vunpack.c.l.b16 %v4189
    %v4926 = vunpack.c.h.b16 %v4189
    %v4927 = vunpack.c.l.b16 %v4190
    %v4928 = vunpack.c.h.b16 %v4190
    %v4929 = vunpack.c.l.b16 %v4191
    %v4930 = vunpack.c.h.b16 %v4191
    %v4931 = vunpack.c.l.b16 %v4192
    %v4932 = vunpack.c.h.b16 %v4192
    %v4933 = vunpack.c.l.b16 %v4193
    %v4934 = vunpack.c.h.b16 %v4193
    %v4935 = vunpack.c.l.b16 %v4194
    %v4936 = vunpack.c.h.b16 %v4194
    %v4937 = vunpack.c.l.b16 %v4195
    %v4938 = vunpack.c.h.b16 %v4195
    %v4939 = vunpack.c.l.b16 %v4196
    %v4940 = vunpack.c.h.b16 %v4196
    %v4941 = vunpack.c.l.b16 %v4197
    %v4942 = vunpack.c.h.b16 %v4197
    %v4943 = vunpack.c.l.b16 %v4198
    %v4944 = vunpack.c.h.b16 %v4198
    %v4945 = vunpack.c.l.b16 %v4199
    %v4946 = vunpack.c.h.b16 %v4199
    %v4947 = vunpack.c.l.b16 %v4200
    %v4948 = vunpack.c.h.b16 %v4200
    %v4949 = vunpack.c.l.b16 %v4201
    %v4950 = vunpack.c.h.b16 %v4201
    %v4951 = vunpack.c.l.b16 %v4202
    %v4952 = vunpack.c.h.b16 %v4202
    %v4953 = vunpack.c.l.b16 %v4203
    %v4954 = vunpack.c.h.b16 %v4203
    %v4955 = vpack.c.b16 %v4831, %v4827
    %v4956 = vpack.c.b16 %v4832, %v4828
    %v4957 = vpack.c.b16 %v4833, %v4829
    %v4958 = vpack.c.b16 %v4834, %v4830
    %v4959 = vpack.c.b16 %v4839, %v4835
    %v4960 = vpack.c.b16 %v4840, %v4836
    %v4961 = vpack.c.b16 %v4841, %v4837
    %v4962 = vpack.c.b16 %v4842, %v4838
    %v4963 = vpack.c.b16 %v4847, %v4843
    %v4964 = vpack.c.b16 %v4848, %v4844
    %v4965 = vpack.c.b16 %v4849, %v4845
    %v4966 = vpack.c.b16 %v4850, %v4846
    %v4967 = vpack.c.b16 %v4855, %v4851
    %v4968 = vpack.c.b16 %v4856, %v4852
    %v4969 = vpack.c.b16 %v4857, %v4853
    %v4970 = vpack.c.b16 %v4858, %v4854
    %v4971 = vpack.c.b16 %v4863, %v4859
    %v4972 = vpack.c.b16 %v4864, %v4860
    %v4973 = vpack.c.b16 %v4865, %v4861
    %v4974 = vpack.c.b16 %v4866, %v4862
    %v4975 = vpack.c.b16 %v4871, %v4867
    %v4976 = vpack.c.b16 %v4872, %v4868
    %v4977 = vpack.c.b16 %v4873, %v4869
    %v4978 = vpack.c.b16 %v4874, %v4870
    %v4979 = vpack.c.b16 %v4879, %v4875
    %v4980 = vpack.c.b16 %v4880, %v4876
    %v4981 = vpack.c.b16 %v4881, %v4877
    %v4982 = vpack.c.b16 %v4882, %v4878
    %v4983 = vpack.c.b16 %v4887, %v4883
    %v4984 = vpack.c.b16 %v4888, %v4884
    %v4985 = vpack.c.b16 %v4889, %v4885
    %v4986 = vpack.c.b16 %v4890, %v4886
    %v4987 = vpack.c.b16 %v4895, %v4891
    %v4988 = vpack.c.b16 %v4896, %v4892
    %v4989 = vpack.c.b16 %v4897, %v4893
    %v4990 = vpack.c.b16 %v4898, %v4894
    %v4991 = vpack.c.b16 %v4903, %v4899
    %v4992 = vpack.c.b16 %v4904, %v4900
    %v4993 = vpack.c.b16 %v4905, %v4901
    %v4994 = vpack.c.b16 %v4906, %v4902
    %v4995 = vpack.c.b16 %v4911, %v4907
    %v4996 = vpack.c.b16 %v4912, %v4908
    %v4997 = vpack.c.b16 %v4913, %v4909
    %v4998 = vpack.c.b16 %v4914, %v4910
    %v4999 = vpack.c.b16 %v4919, %v4915
    %v5000 = vpack.c.b16 %v4920, %v4916
    %v5001 = vpack.c.b16 %v4921, %v4917
    %v5002 = vpack.c.b16 %v4922, %v4918
    %v5003 = vpack.c.b16 %v4927, %v4923
    %v5004 = vpack.c.b16 %v4928, %v4924
    %v5005 = vpack.c.b16 %v4929, %v4925
    %v5006 = vpack.c.b16 %v4930, %v4926
    %v5007 = vpack.c.b16 %v4935, %v4931
    %v5008 = vpack.c.b16 %v4936, %v4932
    %v5009 = vpack.c.b16 %v4937, %v4933
    %v5010 = vpack.c.b16 %v4938, %v4934
    %v5011 = vpack.c.b16 %v4943, %v4939
    %v5012 = vpack.c.b16 %v4944, %v4940
    %v5013 = vpack.c.b16 %v4945, %v4941
    %v5014 = vpack.c.b16 %v4946, %v4942
    %v5015 = vpack.c.b16 %v4951, %v4947
    %v5016 = vpack.c.b16 %v4952, %v4948
    %v5017 = vpack.c.b16 %v4953, %v4949
    %v5018 = vpack.c.b16 %v4954, %v4950
    %5083 = vmatprep.subr.bf16.mxu0 %v4956
    %5084 = vmatpush1.bf16.msra.mxu0 %v4955
    %5085 = vmatprep.subr.bf16.mxu0 %v4960
    %5086 = vmatpush1.bf16.msra.mxu0 %v4959
    %5087 = vmatprep.subr.bf16.mxu0 %v4964
    %5088 = vmatpush1.bf16.msra.mxu0 %v4963
    %5089 = vmatprep.subr.bf16.mxu0 %v4968
    %5090 = vmatpush1.bf16.msra.mxu0 %v4967
    %5091 = vmatprep.subr.bf16.mxu0 %v4972
    %5092 = vmatpush1.bf16.msra.mxu0 %v4971
    %5093 = vmatprep.subr.bf16.mxu0 %v4976
    %5094 = vmatpush1.bf16.msra.mxu0 %v4975
    %5095 = vmatprep.subr.bf16.mxu0 %v4980
    %5096 = vmatpush1.bf16.msra.mxu0 %v4979
    %5097 = vmatprep.subr.bf16.mxu0 %v4984
    %5098 = vmatpush1.bf16.msra.mxu0 %v4983
    %5099 = vmatprep.subr.bf16.mxu0 %v4988
    %5100 = vmatpush1.bf16.msra.mxu0 %v4987
    %5101 = vmatprep.subr.bf16.mxu0 %v4992
    %5102 = vmatpush1.bf16.msra.mxu0 %v4991
    %5103 = vmatprep.subr.bf16.mxu0 %v4996
    %5104 = vmatpush1.bf16.msra.mxu0 %v4995
    %5105 = vmatprep.subr.bf16.mxu0 %v5000
    %5106 = vmatpush1.bf16.msra.mxu0 %v4999
    %5107 = vmatprep.subr.bf16.mxu0 %v5004
    %5108 = vmatpush1.bf16.msra.mxu0 %v5003
    %5109 = vmatprep.subr.bf16.mxu0 %v5008
    %5110 = vmatpush1.bf16.msra.mxu0 %v5007
    %5111 = vmatprep.subr.bf16.mxu0 %v5012
    %5112 = vmatpush1.bf16.msra.mxu0 %v5011
    %5113 = vmatprep.subr.bf16.mxu0 %v5016
    %5114 = vmatpush1.bf16.msra.mxu0 %v5015
    %5115 = vmatprep.mubr.bf16.mxu0 %v4748
    %5116 = vmatmul.mubr.bf16.gmra.mrb[0].mxu0 %v4747
    %v5117 = vpop.f32.mrb[0].mxu0
    %v5118 = vadd.f32 %v4644, %v5117
    %v5119 = vpop.f32.mrb[0].mxu0
    %v5120 = vadd.f32 %v4646, %v5119
    %v5121 = vpop.f32.mrb[0].mxu0
    %v5122 = vadd.f32 %v4648, %v5121
    %v5123 = vpop.f32.mrb[0].mxu0
    %v5124 = vadd.f32 %v4650, %v5123
    %5125 = vmatprep.mubr.bf16.mxu0 %v4750
    %5126 = vmatmul.mubr.bf16.gmra.mrb[0].mxu0 %v4749
    %v5127 = vpop.f32.mrb[0].mxu0
    %v5128 = vadd.f32 %v4654, %v5127
    %v5129 = vpop.f32.mrb[0].mxu0
    %v5130 = vadd.f32 %v4656, %v5129
    %v5131 = vpop.f32.mrb[0].mxu0
    %v5132 = vadd.f32 %v4658, %v5131
    %v5133 = vpop.f32.mrb[0].mxu0
    %v5134 = vadd.f32 %v4660, %v5133
    %5135 = vmatprep.mubr.bf16.mxu0 %v4752
    %5136 = vmatmul.mubr.bf16.gmra.mrb[0].mxu0 %v4751
    %v5137 = vpop.f32.mrb[0].mxu0
    %v5138 = vadd.f32 %v4664, %v5137
    %v5139 = vpop.f32.mrb[0].mxu0
    %v5140 = vadd.f32 %v4666, %v5139
    %v5141 = vpop.f32.mrb[0].mxu0
    %v5142 = vadd.f32 %v4668, %v5141
    %v5143 = vpop.f32.mrb[0].mxu0
    %v5144 = vadd.f32 %v4670, %v5143
    %5145 = vmatprep.mubr.bf16.mxu0 %v4754
    %5146 = vmatmul.mubr.bf16.gmra.mrb[0].mxu0 %v4753
    %v5147 = vpop.f32.mrb[0].mxu0
    %v5148 = vpop.f32.mrb[0].mxu0
    %v5149 = vpop.f32.mrb[0].mxu0
    %v5150 = vpop.f32.mrb[0].mxu0
    %5151 = vdwg.mxu0
    %5152 = vmatprep.subr.bf16.mxu0 %v4958
    %5153 = vmatpush1.bf16.msra.mxu0 %v4957
    %5154 = vmatprep.subr.bf16.mxu0 %v4962
    %5155 = vmatpush1.bf16.msra.mxu0 %v4961
    %5156 = vmatprep.subr.bf16.mxu0 %v4966
    %5157 = vmatpush1.bf16.msra.mxu0 %v4965
    %5158 = vmatprep.subr.bf16.mxu0 %v4970
    %5159 = vmatpush1.bf16.msra.mxu0 %v4969
    %5160 = vmatprep.subr.bf16.mxu0 %v4974
    %5161 = vmatpush1.bf16.msra.mxu0 %v4973
    %5162 = vmatprep.subr.bf16.mxu0 %v4978
    %5163 = vmatpush1.bf16.msra.mxu0 %v4977
    %5164 = vmatprep.subr.bf16.mxu0 %v4982
    %5165 = vmatpush1.bf16.msra.mxu0 %v4981
    %5166 = vmatprep.subr.bf16.mxu0 %v4986
    %5167 = vmatpush1.bf16.msra.mxu0 %v4985
    %5168 = vmatprep.subr.bf16.mxu0 %v4990
    %5169 = vmatpush1.bf16.msra.mxu0 %v4989
    %5170 = vmatprep.subr.bf16.mxu0 %v4994
    %5171 = vmatpush1.bf16.msra.mxu0 %v4993
    %5172 = vmatprep.subr.bf16.mxu0 %v4998
    %5173 = vmatpush1.bf16.msra.mxu0 %v4997
    %5174 = vmatprep.subr.bf16.mxu0 %v5002
    %5175 = vmatpush1.bf16.msra.mxu0 %v5001
    %5176 = vmatprep.subr.bf16.mxu0 %v5006
    %5177 = vmatpush1.bf16.msra.mxu0 %v5005
    %5178 = vmatprep.subr.bf16.mxu0 %v5010
    %5179 = vmatpush1.bf16.msra.mxu0 %v5009
    %5180 = vmatprep.subr.bf16.mxu0 %v5014
    %5181 = vmatpush1.bf16.msra.mxu0 %v5013
    %5182 = vmatprep.subr.bf16.mxu0 %v5018
    %5183 = vmatpush1.bf16.msra.mxu0 %v5017
    %5184 = vmatprep.mubr.bf16.mxu0 %v4748
    %5185 = vmatmul.mubr.bf16.gmra.mrb[0].mxu0 %v4747
    %v5186 = vpop.f32.mrb[0].mxu0
    %v5187 = vadd.f32 %v4713, %v5186
    %v5188 = vpop.f32.mrb[0].mxu0
    %v5189 = vadd.f32 %v4715, %v5188
    %v5190 = vpop.f32.mrb[0].mxu0
    %v5191 = vadd.f32 %v4717, %v5190
    %v5192 = vpop.f32.mrb[0].mxu0
    %v5193 = vadd.f32 %v4719, %v5192
    %5194 = vmatprep.mubr.bf16.mxu0 %v4750
    %5195 = vmatmul.mubr.bf16.gmra.mrb[0].mxu0 %v4749
    %v5196 = vpop.f32.mrb[0].mxu0
    %v5197 = vadd.f32 %v4723, %v5196
    %v5198 = vpop.f32.mrb[0].mxu0
    %v5199 = vadd.f32 %v4725, %v5198
    %v5200 = vpop.f32.mrb[0].mxu0
    %v5201 = vadd.f32 %v4727, %v5200
    %v5202 = vpop.f32.mrb[0].mxu0
    %v5203 = vadd.f32 %v4729, %v5202
    %5204 = vmatprep.mubr.bf16.mxu0 %v4752
    %5205 = vmatmul.mubr.bf16.gmra.mrb[0].mxu0 %v4751
    %v5206 = vpop.f32.mrb[0].mxu0
    %v5207 = vadd.f32 %v4733, %v5206
    %v5208 = vpop.f32.mrb[0].mxu0
    %v5209 = vadd.f32 %v4735, %v5208
    %v5210 = vpop.f32.mrb[0].mxu0
    %v5211 = vadd.f32 %v4737, %v5210
    %v5212 = vpop.f32.mrb[0].mxu0
    %v5213 = vadd.f32 %v4739, %v5212
    %5214 = vmatprep.mubr.bf16.mxu0 %v4754
    %5215 = vmatmul.mubr.bf16.gmra.mrb[0].mxu0 %v4753
    %v5216 = vpop.f32.mrb[0].mxu0
    %v5217 = vpop.f32.mrb[0].mxu0
    %v5218 = vpop.f32.mrb[0].mxu0
    %v5219 = vpop.f32.mrb[0].mxu0
    %5220 = vdwg.mxu0
    %s5221 = scalar_lea.vmem [#allocation4], 1024
    %v5222 = vld [vmem:[%s5221] sm:$0xff]
    %v5223 = vld [vmem:[%s5221 + $0x8] sm:$0xff]
    %v5224 = vld [vmem:[%s5221 + $0x10] sm:$0xff]
    %v5225 = vld [vmem:[%s5221 + $0x18] sm:$0xff]
    %v5226 = vld [vmem:[%s5221 + $0x20] sm:$0xff]
    %v5227 = vld [vmem:[%s5221 + $0x28] sm:$0xff]
    %v5228 = vld [vmem:[%s5221 + $0x30] sm:$0xff]
    %v5229 = vld [vmem:[%s5221 + $0x38] sm:$0xff]
    %v5230 = vld [vmem:[%s5221 + $0x40] sm:$0xff]
    %v5231 = vld [vmem:[%s5221 + $0x48] sm:$0xff]
    %v5232 = vld [vmem:[%s5221 + $0x50] sm:$0xff]
    %v5233 = vld [vmem:[%s5221 + $0x58] sm:$0xff]
    %v5234 = vld [vmem:[%s5221 + $0x60] sm:$0xff]
    %v5235 = vld [vmem:[%s5221 + $0x68] sm:$0xff]
    %v5236 = vld [vmem:[%s5221 + $0x70] sm:$0xff]
    %v5237 = vld [vmem:[%s5221 + $0x78] sm:$0xff]
    %v5238 = vld [vmem:[%s5221 + $0x80] sm:$0xff]
    %v5239 = vld [vmem:[%s5221 + $0x88] sm:$0xff]
    %v5240 = vld [vmem:[%s5221 + $0x90] sm:$0xff]
    %v5241 = vld [vmem:[%s5221 + $0x98] sm:$0xff]
    %v5242 = vld [vmem:[%s5221 + $0xa0] sm:$0xff]
    %v5243 = vld [vmem:[%s5221 + $0xa8] sm:$0xff]
    %v5244 = vld [vmem:[%s5221 + $0xb0] sm:$0xff]
    %v5245 = vld [vmem:[%s5221 + $0xb8] sm:$0xff]
    %v5246 = vld [vmem:[%s5221 + $0xc0] sm:$0xff]
    %v5247 = vld [vmem:[%s5221 + $0xc8] sm:$0xff]
    %v5248 = vld [vmem:[%s5221 + $0xd0] sm:$0xff]
    %v5249 = vld [vmem:[%s5221 + $0xd8] sm:$0xff]
    %v5250 = vld [vmem:[%s5221 + $0xe0] sm:$0xff]
    %v5251 = vld [vmem:[%s5221 + $0xe8] sm:$0xff]
    %v5252 = vld [vmem:[%s5221 + $0xf0] sm:$0xff]
    %v5253 = vld [vmem:[%s5221 + $0xf8] sm:$0xff]
    %v5254 = vld [vmem:[%s5221 + $0x100] sm:$0xff]
    %v5255 = vld [vmem:[%s5221 + $0x108] sm:$0xff]
    %v5256 = vld [vmem:[%s5221 + $0x110] sm:$0xff]
    %v5257 = vld [vmem:[%s5221 + $0x118] sm:$0xff]
    %v5258 = vld [vmem:[%s5221 + $0x120] sm:$0xff]
    %v5259 = vld [vmem:[%s5221 + $0x128] sm:$0xff]
    %v5260 = vld [vmem:[%s5221 + $0x130] sm:$0xff]
    %v5261 = vld [vmem:[%s5221 + $0x138] sm:$0xff]
    %v5262 = vld [vmem:[%s5221 + $0x140] sm:$0xff]
    %v5263 = vld [vmem:[%s5221 + $0x148] sm:$0xff]
    %v5264 = vld [vmem:[%s5221 + $0x150] sm:$0xff]
    %v5265 = vld [vmem:[%s5221 + $0x158] sm:$0xff]
    %v5266 = vld [vmem:[%s5221 + $0x160] sm:$0xff]
    %v5267 = vld [vmem:[%s5221 + $0x168] sm:$0xff]
    %v5268 = vld [vmem:[%s5221 + $0x170] sm:$0xff]
    %v5269 = vld [vmem:[%s5221 + $0x178] sm:$0xff]
    %v5270 = vld [vmem:[%s5221 + $0x180] sm:$0xff]
    %v5271 = vld [vmem:[%s5221 + $0x188] sm:$0xff]
    %v5272 = vld [vmem:[%s5221 + $0x190] sm:$0xff]
    %v5273 = vld [vmem:[%s5221 + $0x198] sm:$0xff]
    %v5274 = vld [vmem:[%s5221 + $0x1a0] sm:$0xff]
    %v5275 = vld [vmem:[%s5221 + $0x1a8] sm:$0xff]
    %v5276 = vld [vmem:[%s5221 + $0x1b0] sm:$0xff]
    %v5277 = vld [vmem:[%s5221 + $0x1b8] sm:$0xff]
    %v5278 = vld [vmem:[%s5221 + $0x1c0] sm:$0xff]
    %v5279 = vld [vmem:[%s5221 + $0x1c8] sm:$0xff]
    %v5280 = vld [vmem:[%s5221 + $0x1d0] sm:$0xff]
    %v5281 = vld [vmem:[%s5221 + $0x1d8] sm:$0xff]
    %v5282 = vld [vmem:[%s5221 + $0x1e0] sm:$0xff]
    %v5283 = vld [vmem:[%s5221 + $0x1e8] sm:$0xff]
    %v5284 = vld [vmem:[%s5221 + $0x1f0] sm:$0xff]
    %v5285 = vld [vmem:[%s5221 + $0x1f8] sm:$0xff]
    %v5286 = vpack.c.b16 %v4206, %v4138
    %v5287 = vpack.c.b16 %v4207, %v4139
    %v5288 = vpack.c.b16 %v2007, %v2007
    %v5356 = vunpack.c.l.b16 %v5222
    %v5357 = vunpack.c.h.b16 %v5222
    %v5358 = vunpack.c.l.b16 %v5223
    %v5359 = vunpack.c.h.b16 %v5223
    %v5360 = vunpack.c.l.b16 %v5224
    %v5361 = vunpack.c.h.b16 %v5224
    %v5362 = vunpack.c.l.b16 %v5225
    %v5363 = vunpack.c.h.b16 %v5225
    %v5364 = vunpack.c.l.b16 %v5226
    %v5365 = vunpack.c.h.b16 %v5226
    %v5366 = vunpack.c.l.b16 %v5227
    %v5367 = vunpack.c.h.b16 %v5227
    %v5368 = vunpack.c.l.b16 %v5228
    %v5369 = vunpack.c.h.b16 %v5228
    %v5370 = vunpack.c.l.b16 %v5229
    %v5371 = vunpack.c.h.b16 %v5229
    %v5372 = vunpack.c.l.b16 %v5230
    %v5373 = vunpack.c.h.b16 %v5230
    %v5374 = vunpack.c.l.b16 %v5231
    %v5375 = vunpack.c.h.b16 %v5231
    %v5376 = vunpack.c.l.b16 %v5232
    %v5377 = vunpack.c.h.b16 %v5232
    %v5378 = vunpack.c.l.b16 %v5233
    %v5379 = vunpack.c.h.b16 %v5233
    %v5380 = vunpack.c.l.b16 %v5234
    %v5381 = vunpack.c.h.b16 %v5234
    %v5382 = vunpack.c.l.b16 %v5235
    %v5383 = vunpack.c.h.b16 %v5235
    %v5384 = vunpack.c.l.b16 %v5236
    %v5385 = vunpack.c.h.b16 %v5236
    %v5386 = vunpack.c.l.b16 %v5237
    %v5387 = vunpack.c.h.b16 %v5237
    %v5388 = vunpack.c.l.b16 %v5238
    %v5389 = vunpack.c.h.b16 %v5238
    %v5390 = vunpack.c.l.b16 %v5239
    %v5391 = vunpack.c.h.b16 %v5239
    %v5392 = vunpack.c.l.b16 %v5240
    %v5393 = vunpack.c.h.b16 %v5240
    %v5394 = vunpack.c.l.b16 %v5241
    %v5395 = vunpack.c.h.b16 %v5241
    %v5396 = vunpack.c.l.b16 %v5242
    %v5397 = vunpack.c.h.b16 %v5242
    %v5398 = vunpack.c.l.b16 %v5243
    %v5399 = vunpack.c.h.b16 %v5243
    %v5400 = vunpack.c.l.b16 %v5244
    %v5401 = vunpack.c.h.b16 %v5244
    %v5402 = vunpack.c.l.b16 %v5245
    %v5403 = vunpack.c.h.b16 %v5245
    %v5404 = vunpack.c.l.b16 %v5246
    %v5405 = vunpack.c.h.b16 %v5246
    %v5406 = vunpack.c.l.b16 %v5247
    %v5407 = vunpack.c.h.b16 %v5247
    %v5408 = vunpack.c.l.b16 %v5248
    %v5409 = vunpack.c.h.b16 %v5248
    %v5410 = vunpack.c.l.b16 %v5249
    %v5411 = vunpack.c.h.b16 %v5249
    %v5412 = vunpack.c.l.b16 %v5250
    %v5413 = vunpack.c.h.b16 %v5250
    %v5414 = vunpack.c.l.b16 %v5251
    %v5415 = vunpack.c.h.b16 %v5251
    %v5416 = vunpack.c.l.b16 %v5252
    %v5417 = vunpack.c.h.b16 %v5252
    %v5418 = vunpack.c.l.b16 %v5253
    %v5419 = vunpack.c.h.b16 %v5253
    %v5420 = vunpack.c.l.b16 %v5254
    %v5421 = vunpack.c.h.b16 %v5254
    %v5422 = vunpack.c.l.b16 %v5255
    %v5423 = vunpack.c.h.b16 %v5255
    %v5424 = vunpack.c.l.b16 %v5256
    %v5425 = vunpack.c.h.b16 %v5256
    %v5426 = vunpack.c.l.b16 %v5257
    %v5427 = vunpack.c.h.b16 %v5257
    %v5428 = vunpack.c.l.b16 %v5258
    %v5429 = vunpack.c.h.b16 %v5258
    %v5430 = vunpack.c.l.b16 %v5259
    %v5431 = vunpack.c.h.b16 %v5259
    %v5432 = vunpack.c.l.b16 %v5260
    %v5433 = vunpack.c.h.b16 %v5260
    %v5434 = vunpack.c.l.b16 %v5261
    %v5435 = vunpack.c.h.b16 %v5261
    %v5436 = vunpack.c.l.b16 %v5262
    %v5437 = vunpack.c.h.b16 %v5262
    %v5438 = vunpack.c.l.b16 %v5263
    %v5439 = vunpack.c.h.b16 %v5263
    %v5440 = vunpack.c.l.b16 %v5264
    %v5441 = vunpack.c.h.b16 %v5264
    %v5442 = vunpack.c.l.b16 %v5265
    %v5443 = vunpack.c.h.b16 %v5265
    %v5444 = vunpack.c.l.b16 %v5266
    %v5445 = vunpack.c.h.b16 %v5266
    %v5446 = vunpack.c.l.b16 %v5267
    %v5447 = vunpack.c.h.b16 %v5267
    %v5448 = vunpack.c.l.b16 %v5268
    %v5449 = vunpack.c.h.b16 %v5268
    %v5450 = vunpack.c.l.b16 %v5269
    %v5451 = vunpack.c.h.b16 %v5269
    %v5452 = vunpack.c.l.b16 %v5270
    %v5453 = vunpack.c.h.b16 %v5270
    %v5454 = vunpack.c.l.b16 %v5271
    %v5455 = vunpack.c.h.b16 %v5271
    %v5456 = vunpack.c.l.b16 %v5272
    %v5457 = vunpack.c.h.b16 %v5272
    %v5458 = vunpack.c.l.b16 %v5273
    %v5459 = vunpack.c.h.b16 %v5273
    %v5460 = vunpack.c.l.b16 %v5274
    %v5461 = vunpack.c.h.b16 %v5274
    %v5462 = vunpack.c.l.b16 %v5275
    %v5463 = vunpack.c.h.b16 %v5275
    %v5464 = vunpack.c.l.b16 %v5276
    %v5465 = vunpack.c.h.b16 %v5276
    %v5466 = vunpack.c.l.b16 %v5277
    %v5467 = vunpack.c.h.b16 %v5277
    %v5468 = vunpack.c.l.b16 %v5278
    %v5469 = vunpack.c.h.b16 %v5278
    %v5470 = vunpack.c.l.b16 %v5279
    %v5471 = vunpack.c.h.b16 %v5279
    %v5472 = vunpack.c.l.b16 %v5280
    %v5473 = vunpack.c.h.b16 %v5280
    %v5474 = vunpack.c.l.b16 %v5281
    %v5475 = vunpack.c.h.b16 %v5281
    %v5476 = vunpack.c.l.b16 %v5282
    %v5477 = vunpack.c.h.b16 %v5282
    %v5478 = vunpack.c.l.b16 %v5283
    %v5479 = vunpack.c.h.b16 %v5283
    %v5480 = vunpack.c.l.b16 %v5284
    %v5481 = vunpack.c.h.b16 %v5284
    %v5482 = vunpack.c.l.b16 %v5285
    %v5483 = vunpack.c.h.b16 %v5285
    %v5484 = vpack.c.b16 %v5360, %v5356
    %v5485 = vpack.c.b16 %v5361, %v5357
    %v5486 = vpack.c.b16 %v5362, %v5358
    %v5487 = vpack.c.b16 %v5363, %v5359
    %v5488 = vpack.c.b16 %v5368, %v5364
    %v5489 = vpack.c.b16 %v5369, %v5365
    %v5490 = vpack.c.b16 %v5370, %v5366
    %v5491 = vpack.c.b16 %v5371, %v5367
    %v5492 = vpack.c.b16 %v5376, %v5372
    %v5493 = vpack.c.b16 %v5377, %v5373
    %v5494 = vpack.c.b16 %v5378, %v5374
    %v5495 = vpack.c.b16 %v5379, %v5375
    %v5496 = vpack.c.b16 %v5384, %v5380
    %v5497 = vpack.c.b16 %v5385, %v5381
    %v5498 = vpack.c.b16 %v5386, %v5382
    %v5499 = vpack.c.b16 %v5387, %v5383
    %v5500 = vpack.c.b16 %v5392, %v5388
    %v5501 = vpack.c.b16 %v5393, %v5389
    %v5502 = vpack.c.b16 %v5394, %v5390
    %v5503 = vpack.c.b16 %v5395, %v5391
    %v5504 = vpack.c.b16 %v5400, %v5396
    %v5505 = vpack.c.b16 %v5401, %v5397
    %v5506 = vpack.c.b16 %v5402, %v5398
    %v5507 = vpack.c.b16 %v5403, %v5399
    %v5508 = vpack.c.b16 %v5408, %v5404
    %v5509 = vpack.c.b16 %v5409, %v5405
    %v5510 = vpack.c.b16 %v5410, %v5406
    %v5511 = vpack.c.b16 %v5411, %v5407
    %v5512 = vpack.c.b16 %v5416, %v5412
    %v5513 = vpack.c.b16 %v5417, %v5413
    %v5514 = vpack.c.b16 %v5418, %v5414
    %v5515 = vpack.c.b16 %v5419, %v5415
    %v5516 = vpack.c.b16 %v5424, %v5420
    %v5517 = vpack.c.b16 %v5425, %v5421
    %v5518 = vpack.c.b16 %v5426, %v5422
    %v5519 = vpack.c.b16 %v5427, %v5423
    %v5520 = vpack.c.b16 %v5432, %v5428
    %v5521 = vpack.c.b16 %v5433, %v5429
    %v5522 = vpack.c.b16 %v5434, %v5430
    %v5523 = vpack.c.b16 %v5435, %v5431
    %v5524 = vpack.c.b16 %v5440, %v5436
    %v5525 = vpack.c.b16 %v5441, %v5437
    %v5526 = vpack.c.b16 %v5442, %v5438
    %v5527 = vpack.c.b16 %v5443, %v5439
    %v5528 = vpack.c.b16 %v5448, %v5444
    %v5529 = vpack.c.b16 %v5449, %v5445
    %v5530 = vpack.c.b16 %v5450, %v5446
    %v5531 = vpack.c.b16 %v5451, %v5447
    %v5532 = vpack.c.b16 %v5456, %v5452
    %v5533 = vpack.c.b16 %v5457, %v5453
    %v5534 = vpack.c.b16 %v5458, %v5454
    %v5535 = vpack.c.b16 %v5459, %v5455
    %v5536 = vpack.c.b16 %v5464, %v5460
    %v5537 = vpack.c.b16 %v5465, %v5461
    %v5538 = vpack.c.b16 %v5466, %v5462
    %v5539 = vpack.c.b16 %v5467, %v5463
    %v5540 = vpack.c.b16 %v5472, %v5468
    %v5541 = vpack.c.b16 %v5473, %v5469
    %v5542 = vpack.c.b16 %v5474, %v5470
    %v5543 = vpack.c.b16 %v5475, %v5471
    %v5544 = vpack.c.b16 %v5480, %v5476
    %v5545 = vpack.c.b16 %v5481, %v5477
    %v5546 = vpack.c.b16 %v5482, %v5478
    %v5547 = vpack.c.b16 %v5483, %v5479
    %5612 = vmatprep.subr.bf16.mxu0 %v5485
    %5613 = vmatpush1.bf16.msra.mxu0 %v5484
    %5614 = vmatprep.subr.bf16.mxu0 %v5489
    %5615 = vmatpush1.bf16.msra.mxu0 %v5488
    %5616 = vmatprep.subr.bf16.mxu0 %v5493
    %5617 = vmatpush1.bf16.msra.mxu0 %v5492
    %5618 = vmatprep.subr.bf16.mxu0 %v5497
    %5619 = vmatpush1.bf16.msra.mxu0 %v5496
    %5620 = vmatprep.subr.bf16.mxu0 %v5501
    %5621 = vmatpush1.bf16.msra.mxu0 %v5500
    %5622 = vmatprep.subr.bf16.mxu0 %v5505
    %5623 = vmatpush1.bf16.msra.mxu0 %v5504
    %5624 = vmatprep.subr.bf16.mxu0 %v5509
    %5625 = vmatpush1.bf16.msra.mxu0 %v5508
    %5626 = vmatprep.subr.bf16.mxu0 %v5513
    %5627 = vmatpush1.bf16.msra.mxu0 %v5512
    %5628 = vmatprep.subr.bf16.mxu0 %v5517
    %5629 = vmatpush1.bf16.msra.mxu0 %v5516
    %5630 = vmatprep.subr.bf16.mxu0 %v5521
    %5631 = vmatpush1.bf16.msra.mxu0 %v5520
    %5632 = vmatprep.subr.bf16.mxu0 %v5525
    %5633 = vmatpush1.bf16.msra.mxu0 %v5524
    %5634 = vmatprep.subr.bf16.mxu0 %v5529
    %5635 = vmatpush1.bf16.msra.mxu0 %v5528
    %5636 = vmatprep.subr.bf16.mxu0 %v5533
    %5637 = vmatpush1.bf16.msra.mxu0 %v5532
    %5638 = vmatprep.subr.bf16.mxu0 %v5537
    %5639 = vmatpush1.bf16.msra.mxu0 %v5536
    %5640 = vmatprep.subr.bf16.mxu0 %v5541
    %5641 = vmatpush1.bf16.msra.mxu0 %v5540
    %5642 = vmatprep.subr.bf16.mxu0 %v5545
    %5643 = vmatpush1.bf16.msra.mxu0 %v5544
    %5644 = vmatprep.mubr.bf16.mxu0 %v4750
    %5645 = vmatmul.mubr.bf16.gmra.mrb[0].mxu0 %v4749
    %v5646 = vpop.f32.mrb[0].mxu0
    %v5647 = vadd.f32 0.0, %v5646
    %v5648 = vpop.f32.mrb[0].mxu0
    %v5649 = vadd.f32 0.0, %v5648
    %v5650 = vpop.f32.mrb[0].mxu0
    %v5651 = vadd.f32 0.0, %v5650
    %v5652 = vpop.f32.mrb[0].mxu0
    %v5653 = vadd.f32 0.0, %v5652
    %5654 = vmatprep.mubr.bf16.mxu0 %v4752
    %5655 = vmatmul.mubr.bf16.gmra.mrb[0].mxu0 %v4751
    %v5656 = vpop.f32.mrb[0].mxu0
    %v5657 = vadd.f32 0.0, %v5656
    %v5658 = vpop.f32.mrb[0].mxu0
    %v5659 = vadd.f32 0.0, %v5658
    %v5660 = vpop.f32.mrb[0].mxu0
    %v5661 = vadd.f32 0.0, %v5660
    %v5662 = vpop.f32.mrb[0].mxu0
    %v5663 = vadd.f32 0.0, %v5662
    %5664 = vmatprep.mubr.bf16.mxu0 %v5287
    %5665 = vmatmul.mubr.bf16.gmra.mrb[0].mxu0 %v5286
    %v5666 = vpop.f32.mrb[0].mxu0
    %v5667 = vadd.f32 0.0, %v5666
    %v5668 = vpop.f32.mrb[0].mxu0
    %v5669 = vadd.f32 0.0, %v5668
    %v5670 = vpop.f32.mrb[0].mxu0
    %v5671 = vadd.f32 0.0, %v5670
    %v5672 = vpop.f32.mrb[0].mxu0
    %v5673 = vadd.f32 0.0, %v5672
    %5674 = vmatprep.mubr.bf16.mxu0 %v5288
    %5675 = vmatmul.mubr.bf16.gmra.mrb[0].mxu0 %v5288
    %v5676 = vpop.f32.mrb[0].mxu0
    %v5677 = vpop.f32.mrb[0].mxu0
    %v5678 = vpop.f32.mrb[0].mxu0
    %v5679 = vpop.f32.mrb[0].mxu0
    %5680 = vdwg.mxu0
    %5681 = vmatprep.subr.bf16.mxu0 %v5487
    %5682 = vmatpush1.bf16.msra.mxu0 %v5486
    %5683 = vmatprep.subr.bf16.mxu0 %v5491
    %5684 = vmatpush1.bf16.msra.mxu0 %v5490
    %5685 = vmatprep.subr.bf16.mxu0 %v5495
    %5686 = vmatpush1.bf16.msra.mxu0 %v5494
    %5687 = vmatprep.subr.bf16.mxu0 %v5499
    %5688 = vmatpush1.bf16.msra.mxu0 %v5498
    %5689 = vmatprep.subr.bf16.mxu0 %v5503
    %5690 = vmatpush1.bf16.msra.mxu0 %v5502
    %5691 = vmatprep.subr.bf16.mxu0 %v5507
    %5692 = vmatpush1.bf16.msra.mxu0 %v5506
    %5693 = vmatprep.subr.bf16.mxu0 %v5511
    %5694 = vmatpush1.bf16.msra.mxu0 %v5510
    %5695 = vmatprep.subr.bf16.mxu0 %v5515
    %5696 = vmatpush1.bf16.msra.mxu0 %v5514
    %5697 = vmatprep.subr.bf16.mxu0 %v5519
    %5698 = vmatpush1.bf16.msra.mxu0 %v5518
    %5699 = vmatprep.subr.bf16.mxu0 %v5523
    %5700 = vmatpush1.bf16.msra.mxu0 %v5522
    %5701 = vmatprep.subr.bf16.mxu0 %v5527
    %5702 = vmatpush1.bf16.msra.mxu0 %v5526
    %5703 = vmatprep.subr.bf16.mxu0 %v5531
    %5704 = vmatpush1.bf16.msra.mxu0 %v5530
    %5705 = vmatprep.subr.bf16.mxu0 %v5535
    %5706 = vmatpush1.bf16.msra.mxu0 %v5534
    %5707 = vmatprep.subr.bf16.mxu0 %v5539
    %5708 = vmatpush1.bf16.msra.mxu0 %v5538
    %5709 = vmatprep.subr.bf16.mxu0 %v5543
    %5710 = vmatpush1.bf16.msra.mxu0 %v5542
    %5711 = vmatprep.subr.bf16.mxu0 %v5547
    %5712 = vmatpush1.bf16.msra.mxu0 %v5546
    %5713 = vmatprep.mubr.bf16.mxu0 %v4750
    %5714 = vmatmul.mubr.bf16.gmra.mrb[0].mxu0 %v4749
    %v5715 = vpop.f32.mrb[0].mxu0
    %v5716 = vadd.f32 0.0, %v5715
    %v5717 = vpop.f32.mrb[0].mxu0
    %v5718 = vadd.f32 0.0, %v5717
    %v5719 = vpop.f32.mrb[0].mxu0
    %v5720 = vadd.f32 0.0, %v5719
    %v5721 = vpop.f32.mrb[0].mxu0
    %v5722 = vadd.f32 0.0, %v5721
    %5723 = vmatprep.mubr.bf16.mxu0 %v4752
    %5724 = vmatmul.mubr.bf16.gmra.mrb[0].mxu0 %v4751
    %v5725 = vpop.f32.mrb[0].mxu0
    %v5726 = vadd.f32 0.0, %v5725
    %v5727 = vpop.f32.mrb[0].mxu0
    %v5728 = vadd.f32 0.0, %v5727
    %v5729 = vpop.f32.mrb[0].mxu0
    %v5730 = vadd.f32 0.0, %v5729
    %v5731 = vpop.f32.mrb[0].mxu0
    %v5732 = vadd.f32 0.0, %v5731
    %5733 = vmatprep.mubr.bf16.mxu0 %v5287
    %5734 = vmatmul.mubr.bf16.gmra.mrb[0].mxu0 %v5286
    %v5735 = vpop.f32.mrb[0].mxu0
    %v5736 = vadd.f32 0.0, %v5735
    %v5737 = vpop.f32.mrb[0].mxu0
    %v5738 = vadd.f32 0.0, %v5737
    %v5739 = vpop.f32.mrb[0].mxu0
    %v5740 = vadd.f32 0.0, %v5739
    %v5741 = vpop.f32.mrb[0].mxu0
    %v5742 = vadd.f32 0.0, %v5741
    %5743 = vmatprep.mubr.bf16.mxu0 %v5288
    %5744 = vmatmul.mubr.bf16.gmra.mrb[0].mxu0 %v5288
    %v5745 = vpop.f32.mrb[0].mxu0
    %v5746 = vpop.f32.mrb[0].mxu0
    %v5747 = vpop.f32.mrb[0].mxu0
    %v5748 = vpop.f32.mrb[0].mxu0
    %5749 = vdwg.mxu0
    %v5750 = vadd.f32 %v5118, %v5647
    %v5751 = vadd.f32 %v5120, %v5649
    %v5752 = vadd.f32 %v5187, %v5716
    %v5753 = vadd.f32 %v5189, %v5718
    %v5754 = vadd.f32 %v5122, %v5651
    %v5755 = vadd.f32 %v5124, %v5653
    %v5756 = vadd.f32 %v5191, %v5720
    %v5757 = vadd.f32 %v5193, %v5722
    %v5758 = vadd.f32 %v5128, %v5657
    %v5759 = vadd.f32 %v5130, %v5659
    %v5760 = vadd.f32 %v5197, %v5726
    %v5761 = vadd.f32 %v5199, %v5728
    %v5762 = vadd.f32 %v5132, %v5661
    %v5763 = vadd.f32 %v5134, %v5663
    %v5764 = vadd.f32 %v5201, %v5730
    %v5765 = vadd.f32 %v5203, %v5732
    %v5766 = vadd.f32 %v5138, %v5667
    %v5767 = vadd.f32 %v5140, %v5669
    %v5768 = vadd.f32 %v5207, %v5736
    %v5769 = vadd.f32 %v5209, %v5738
    %v5770 = vadd.f32 %v5142, %v5671
    %v5771 = vadd.f32 %v5144, %v5673
    %v5772 = vadd.f32 %v5211, %v5740
    %v5773 = vadd.f32 %v5213, %v5742
    %v5774 = vld [vmem:[%s6] sm:$0xf]
    %v5776 = vlaneseq
    %v5777 = vshrl.u32 %v5776, 7
    %v5778 = vsub.s32 0, %v5777
    %v5779 = vrot.slane %v5774, %v5778
    %v5780 = vlaneseq
    %v5781 = vshrl.u32 %v5780, 7
    %v5782 = vsub.s32 1, %v5781
    %v5783 = vrot.slane %v5774, %v5782
    %v5784 = vlaneseq
    %v5785 = vshrl.u32 %v5784, 7
    %v5786 = vsub.s32 2, %v5785
    %v5787 = vrot.slane %v5774, %v5786
    %v5788 = vlaneseq
    %v5789 = vshrl.u32 %v5788, 7
    %v5790 = vsub.s32 3, %v5789
    %v5791 = vrot.slane %v5774, %v5790
    %v5796 = vadd.f32 %v5750, %v5779
    %v5797 = vadd.f32 %v5751, %v5783
    %v5798 = vadd.f32 %v5752, %v5787
    %v5799 = vadd.f32 %v5753, %v5791
    %v5800 = vadd.f32 %v5754, %v5779
    %v5801 = vadd.f32 %v5755, %v5783
    %v5802 = vadd.f32 %v5756, %v5787
    %v5803 = vadd.f32 %v5757, %v5791
    %v5804 = vadd.f32 %v5758, %v5779
    %v5805 = vadd.f32 %v5759, %v5783
    %v5806 = vadd.f32 %v5760, %v5787
    %v5807 = vadd.f32 %v5761, %v5791
    %v5808 = vadd.f32 %v5762, %v5779
    %v5809 = vadd.f32 %v5763, %v5783
    %v5810 = vadd.f32 %v5764, %v5787
    %v5811 = vadd.f32 %v5765, %v5791
    %v5812 = vadd.f32 %v5766, %v5779
    %v5813 = vadd.f32 %v5767, %v5783
    %v5814 = vadd.f32 %v5768, %v5787
    %v5815 = vadd.f32 %v5769, %v5791
    %v5816 = vadd.f32 %v5770, %v5779
    %v5817 = vadd.f32 %v5771, %v5783
    %v5818 = vadd.f32 %v5772, %v5787
    %v5819 = vadd.f32 %v5773, %v5791
    %v5820 = vmax.f32 %v5796, 0.0
    %v5821 = vmax.f32 %v5797, 0.0
    %v5822 = vmax.f32 %v5798, 0.0
    %v5823 = vmax.f32 %v5799, 0.0
    %v5824 = vmax.f32 %v5800, 0.0
    %v5825 = vmax.f32 %v5801, 0.0
    %v5826 = vmax.f32 %v5802, 0.0
    %v5827 = vmax.f32 %v5803, 0.0
    %v5828 = vmax.f32 %v5804, 0.0
    %v5829 = vmax.f32 %v5805, 0.0
    %v5830 = vmax.f32 %v5806, 0.0
    %v5831 = vmax.f32 %v5807, 0.0
    %v5832 = vmax.f32 %v5808, 0.0
    %v5833 = vmax.f32 %v5809, 0.0
    %v5834 = vmax.f32 %v5810, 0.0
    %v5835 = vmax.f32 %v5811, 0.0
    %v5836 = vmax.f32 %v5812, 0.0
    %v5837 = vmax.f32 %v5813, 0.0
    %v5838 = vmax.f32 %v5814, 0.0
    %v5839 = vmax.f32 %v5815, 0.0
    %v5840 = vmax.f32 %v5816, 0.0
    %v5841 = vmax.f32 %v5817, 0.0
    %v5842 = vmax.f32 %v5818, 0.0
    %v5843 = vmax.f32 %v5819, 0.0
    %v5844 = vmax.f32 %v5820, %v5824
    %v5845 = vmax.f32 %v5821, %v5825
    %v5846 = vmax.f32 %v5822, %v5826
    %v5847 = vmax.f32 %v5823, %v5827
    %v5848 = vmax.f32 %v5828, %v5832
    %v5849 = vmax.f32 %v5829, %v5833
    %v5850 = vmax.f32 %v5830, %v5834
    %v5851 = vmax.f32 %v5831, %v5835
    %v5852 = vmax.f32 %v5836, %v5840
    %v5853 = vmax.f32 %v5837, %v5841
    %v5854 = vmax.f32 %v5838, %v5842
    %v5855 = vmax.f32 %v5839, %v5843
    %v5856 = vmax.f32 %v5844, %v5846
    %v5857 = vmax.f32 %v5845, %v5847
    %v5858 = vmax.f32 %v5848, %v5850
    %v5859 = vmax.f32 %v5849, %v5851
    %v5860 = vmax.f32 %v5852, %v5854
    %v5861 = vmax.f32 %v5853, %v5855
    %v5862 = vpack.c.bf16 %v5856, %v5856
    %v5863 = vpack.c.bf16 %v5857, %v5857
    %v5864 = vpack.c.bf16 %v5858, %v5858
    %v5865 = vpack.c.bf16 %v5859, %v5859
    %v5866 = vpack.c.bf16 %v5860, %v5860
    %v5867 = vpack.c.bf16 %v5861, %v5861
    %v5868 = vld [vmem:[%s8] sm:$0x3]
    %v5869 = vld [vmem:[#allocation6] sm:$0xff]
    %v5870 = vld [vmem:[#allocation6 + $0x8] sm:$0xff]
    %v5871 = vld [vmem:[#allocation6 + $0x10] sm:$0xff]
    %v5872 = vld [vmem:[#allocation6 + $0x18] sm:$0xff]
    %v5873 = vld [vmem:[#allocation6 + $0x20] sm:$0xff]
    %v5874 = vld [vmem:[#allocation6 + $0x28] sm:$0xff]
    %v5875 = vld [vmem:[#allocation6 + $0x30] sm:$0xff]
    %v5876 = vld [vmem:[#allocation6 + $0x38] sm:$0xff]
    %v5877 = vld [vmem:[#allocation6 + $0x40] sm:$0xff]
    %v5878 = vld [vmem:[#allocation6 + $0x48] sm:$0xff]
    %v5879 = vld [vmem:[#allocation6 + $0x50] sm:$0xff]
    %v5880 = vld [vmem:[#allocation6 + $0x58] sm:$0xff]
    %v5881 = vld [vmem:[#allocation6 + $0x60] sm:$0xff]
    %v5882 = vld [vmem:[#allocation6 + $0x68] sm:$0xff]
    %v5883 = vld [vmem:[#allocation6 + $0x70] sm:$0xff]
    %v5884 = vld [vmem:[#allocation6 + $0x78] sm:$0xff]
    %v5885 = vld [vmem:[#allocation6 + $0x80] sm:$0xff]
    %v5886 = vld [vmem:[#allocation6 + $0x88] sm:$0xff]
    %v5887 = vld [vmem:[#allocation6 + $0x90] sm:$0xff]
    %v5888 = vld [vmem:[#allocation6 + $0x98] sm:$0xff]
    %v5889 = vld [vmem:[#allocation6 + $0xa0] sm:$0xff]
    %v5890 = vld [vmem:[#allocation6 + $0xa8] sm:$0xff]
    %v5891 = vld [vmem:[#allocation6 + $0xb0] sm:$0xff]
    %v5892 = vld [vmem:[#allocation6 + $0xb8] sm:$0xff]
    %v5893 = vld [vmem:[#allocation6 + $0xc0] sm:$0xff]
    %v5894 = vld [vmem:[#allocation6 + $0xc8] sm:$0xff]
    %v5895 = vld [vmem:[#allocation6 + $0xd0] sm:$0xff]
    %v5896 = vld [vmem:[#allocation6 + $0xd8] sm:$0xff]
    %v5897 = vld [vmem:[#allocation6 + $0xe0] sm:$0xff]
    %v5898 = vld [vmem:[#allocation6 + $0xe8] sm:$0xff]
    %v5899 = vld [vmem:[#allocation6 + $0xf0] sm:$0xff]
    %v5900 = vld [vmem:[#allocation6 + $0xf8] sm:$0xff]
    %v5933 = vunpack.c.l.b16 %v5869
    %v5934 = vunpack.c.h.b16 %v5869
    %v5935 = vunpack.c.l.b16 %v5870
    %v5936 = vunpack.c.h.b16 %v5870
    %v5937 = vunpack.c.l.b16 %v5871
    %v5938 = vunpack.c.h.b16 %v5871
    %v5939 = vunpack.c.l.b16 %v5872
    %v5940 = vunpack.c.h.b16 %v5872
    %v5941 = vunpack.c.l.b16 %v5873
    %v5942 = vunpack.c.h.b16 %v5873
    %v5943 = vunpack.c.l.b16 %v5874
    %v5944 = vunpack.c.h.b16 %v5874
    %v5945 = vunpack.c.l.b16 %v5875
    %v5946 = vunpack.c.h.b16 %v5875
    %v5947 = vunpack.c.l.b16 %v5876
    %v5948 = vunpack.c.h.b16 %v5876
    %v5949 = vunpack.c.l.b16 %v5877
    %v5950 = vunpack.c.h.b16 %v5877
    %v5951 = vunpack.c.l.b16 %v5878
    %v5952 = vunpack.c.h.b16 %v5878
    %v5953 = vunpack.c.l.b16 %v5879
    %v5954 = vunpack.c.h.b16 %v5879
    %v5955 = vunpack.c.l.b16 %v5880
    %v5956 = vunpack.c.h.b16 %v5880
    %v5957 = vunpack.c.l.b16 %v5881
    %v5958 = vunpack.c.h.b16 %v5881
    %v5959 = vunpack.c.l.b16 %v5882
    %v5960 = vunpack.c.h.b16 %v5882
    %v5961 = vunpack.c.l.b16 %v5883
    %v5962 = vunpack.c.h.b16 %v5883
    %v5963 = vunpack.c.l.b16 %v5884
    %v5964 = vunpack.c.h.b16 %v5884
    %v5965 = vunpack.c.l.b16 %v5885
    %v5966 = vunpack.c.h.b16 %v5885
    %v5967 = vunpack.c.l.b16 %v5886
    %v5968 = vunpack.c.h.b16 %v5886
    %v5969 = vunpack.c.l.b16 %v5887
    %v5970 = vunpack.c.h.b16 %v5887
    %v5971 = vunpack.c.l.b16 %v5888
    %v5972 = vunpack.c.h.b16 %v5888
    %v5973 = vunpack.c.l.b16 %v5889
    %v5974 = vunpack.c.h.b16 %v5889
    %v5975 = vunpack.c.l.b16 %v5890
    %v5976 = vunpack.c.h.b16 %v5890
    %v5977 = vunpack.c.l.b16 %v5891
    %v5978 = vunpack.c.h.b16 %v5891
    %v5979 = vunpack.c.l.b16 %v5892
    %v5980 = vunpack.c.h.b16 %v5892
    %v5981 = vunpack.c.l.b16 %v5893
    %v5982 = vunpack.c.h.b16 %v5893
    %v5983 = vunpack.c.l.b16 %v5894
    %v5984 = vunpack.c.h.b16 %v5894
    %v5985 = vunpack.c.l.b16 %v5895
    %v5986 = vunpack.c.h.b16 %v5895
    %v5987 = vunpack.c.l.b16 %v5896
    %v5988 = vunpack.c.h.b16 %v5896
    %v5989 = vunpack.c.l.b16 %v5897
    %v5990 = vunpack.c.h.b16 %v5897
    %v5991 = vunpack.c.l.b16 %v5898
    %v5992 = vunpack.c.h.b16 %v5898
    %v5993 = vunpack.c.l.b16 %v5899
    %v5994 = vunpack.c.h.b16 %v5899
    %v5995 = vunpack.c.l.b16 %v5900
    %v5996 = vunpack.c.h.b16 %v5900
    %v5997 = vpack.c.b16 %v5935, %v5933
    %v5998 = vpack.c.b16 %v5936, %v5934
    %v5999 = vpack.c.b16 %v5939, %v5937
    %v6000 = vpack.c.b16 %v5940, %v5938
    %v6001 = vpack.c.b16 %v5943, %v5941
    %v6002 = vpack.c.b16 %v5944, %v5942
    %v6003 = vpack.c.b16 %v5947, %v5945
    %v6004 = vpack.c.b16 %v5948, %v5946
    %v6005 = vpack.c.b16 %v5951, %v5949
    %v6006 = vpack.c.b16 %v5952, %v5950
    %v6007 = vpack.c.b16 %v5955, %v5953
    %v6008 = vpack.c.b16 %v5956, %v5954
    %v6009 = vpack.c.b16 %v5959, %v5957
    %v6010 = vpack.c.b16 %v5960, %v5958
    %v6011 = vpack.c.b16 %v5963, %v5961
    %v6012 = vpack.c.b16 %v5964, %v5962
    %v6013 = vpack.c.b16 %v5967, %v5965
    %v6014 = vpack.c.b16 %v5968, %v5966
    %v6015 = vpack.c.b16 %v5971, %v5969
    %v6016 = vpack.c.b16 %v5972, %v5970
    %v6017 = vpack.c.b16 %v5975, %v5973
    %v6018 = vpack.c.b16 %v5976, %v5974
    %v6019 = vpack.c.b16 %v5979, %v5977
    %v6020 = vpack.c.b16 %v5980, %v5978
    %v6021 = vpack.c.b16 %v5983, %v5981
    %v6022 = vpack.c.b16 %v5984, %v5982
    %v6023 = vpack.c.b16 %v5987, %v5985
    %v6024 = vpack.c.b16 %v5988, %v5986
    %v6025 = vpack.c.b16 %v5991, %v5989
    %v6026 = vpack.c.b16 %v5992, %v5990
    %v6027 = vpack.c.b16 %v5995, %v5993
    %v6028 = vpack.c.b16 %v5996, %v5994
    %6061 = vmatprep.subr.bf16.mxu0 %v5998
    %6062 = vmatpush1.bf16.msra.mxu0 %v5997
    %6063 = vmatprep.subr.bf16.mxu0 %v6000
    %6064 = vmatpush1.bf16.msra.mxu0 %v5999
    %6065 = vmatprep.subr.bf16.mxu0 %v6002
    %6066 = vmatpush1.bf16.msra.mxu0 %v6001
    %6067 = vmatprep.subr.bf16.mxu0 %v6004
    %6068 = vmatpush1.bf16.msra.mxu0 %v6003
    %6069 = vmatprep.subr.bf16.mxu0 %v6006
    %6070 = vmatpush1.bf16.msra.mxu0 %v6005
    %6071 = vmatprep.subr.bf16.mxu0 %v6008
    %6072 = vmatpush1.bf16.msra.mxu0 %v6007
    %6073 = vmatprep.subr.bf16.mxu0 %v6010
    %6074 = vmatpush1.bf16.msra.mxu0 %v6009
    %6075 = vmatprep.subr.bf16.mxu0 %v6012
    %6076 = vmatpush1.bf16.msra.mxu0 %v6011
    %6077 = vmatprep.subr.bf16.mxu0 %v6014
    %6078 = vmatpush1.bf16.msra.mxu0 %v6013
    %6079 = vmatprep.subr.bf16.mxu0 %v6016
    %6080 = vmatpush1.bf16.msra.mxu0 %v6015
    %6081 = vmatprep.subr.bf16.mxu0 %v6018
    %6082 = vmatpush1.bf16.msra.mxu0 %v6017
    %6083 = vmatprep.subr.bf16.mxu0 %v6020
    %6084 = vmatpush1.bf16.msra.mxu0 %v6019
    %6085 = vmatprep.subr.bf16.mxu0 %v6022
    %6086 = vmatpush1.bf16.msra.mxu0 %v6021
    %6087 = vmatprep.subr.bf16.mxu0 %v6024
    %6088 = vmatpush1.bf16.msra.mxu0 %v6023
    %6089 = vmatprep.subr.bf16.mxu0 %v6026
    %6090 = vmatpush1.bf16.msra.mxu0 %v6025
    %6091 = vmatprep.subr.bf16.mxu0 %v6028
    %6092 = vmatpush1.bf16.msra.mxu0 %v6027
    %6093 = vmatprep.mubr.bf16.mxu0 %v5863
    %6094 = vmatmul.mubr.bf16.gmra.mrb[0].mxu0 %v5862
    %v6095 = vpop.f32.mrb[0].mxu0
    %v6096 = vadd.f32 0.0, %v6095
    %v6097 = vpop.f32.mrb[0].mxu0
    %v6098 = vadd.f32 0.0, %v6097
    %v6099 = vpop.f32.mrb[0].mxu0
    %v6100 = vpop.f32.mrb[0].mxu0
    %6101 = vdwg.mxu0
    %v6103 = vlaneseq
    %v6104 = vshrl.u32 %v6103, 7
    %v6105 = vsub.s32 0, %v6104
    %v6106 = vrot.slane %v5868, %v6105
    %v6107 = vlaneseq
    %v6108 = vshrl.u32 %v6107, 7
    %v6109 = vsub.s32 1, %v6108
    %v6110 = vrot.slane %v5868, %v6109
    %v6113 = vadd.f32 %v6106, %v6096
    %v6114 = vadd.f32 %v6110, %v6098
    %s6115 = scalar_lea.vmem [#allocation6], 256
    %v6116 = vld [vmem:[%s6115] sm:$0xff]
    %v6117 = vld [vmem:[%s6115 + $0x8] sm:$0xff]
    %v6118 = vld [vmem:[%s6115 + $0x10] sm:$0xff]
    %v6119 = vld [vmem:[%s6115 + $0x18] sm:$0xff]
    %v6120 = vld [vmem:[%s6115 + $0x20] sm:$0xff]
    %v6121 = vld [vmem:[%s6115 + $0x28] sm:$0xff]
    %v6122 = vld [vmem:[%s6115 + $0x30] sm:$0xff]
    %v6123 = vld [vmem:[%s6115 + $0x38] sm:$0xff]
    %v6124 = vld [vmem:[%s6115 + $0x40] sm:$0xff]
    %v6125 = vld [vmem:[%s6115 + $0x48] sm:$0xff]
    %v6126 = vld [vmem:[%s6115 + $0x50] sm:$0xff]
    %v6127 = vld [vmem:[%s6115 + $0x58] sm:$0xff]
    %v6128 = vld [vmem:[%s6115 + $0x60] sm:$0xff]
    %v6129 = vld [vmem:[%s6115 + $0x68] sm:$0xff]
    %v6130 = vld [vmem:[%s6115 + $0x70] sm:$0xff]
    %v6131 = vld [vmem:[%s6115 + $0x78] sm:$0xff]
    %v6132 = vld [vmem:[%s6115 + $0x80] sm:$0xff]
    %v6133 = vld [vmem:[%s6115 + $0x88] sm:$0xff]
    %v6134 = vld [vmem:[%s6115 + $0x90] sm:$0xff]
    %v6135 = vld [vmem:[%s6115 + $0x98] sm:$0xff]
    %v6136 = vld [vmem:[%s6115 + $0xa0] sm:$0xff]
    %v6137 = vld [vmem:[%s6115 + $0xa8] sm:$0xff]
    %v6138 = vld [vmem:[%s6115 + $0xb0] sm:$0xff]
    %v6139 = vld [vmem:[%s6115 + $0xb8] sm:$0xff]
    %v6140 = vld [vmem:[%s6115 + $0xc0] sm:$0xff]
    %v6141 = vld [vmem:[%s6115 + $0xc8] sm:$0xff]
    %v6142 = vld [vmem:[%s6115 + $0xd0] sm:$0xff]
    %v6143 = vld [vmem:[%s6115 + $0xd8] sm:$0xff]
    %v6144 = vld [vmem:[%s6115 + $0xe0] sm:$0xff]
    %v6145 = vld [vmem:[%s6115 + $0xe8] sm:$0xff]
    %v6146 = vld [vmem:[%s6115 + $0xf0] sm:$0xff]
    %v6147 = vld [vmem:[%s6115 + $0xf8] sm:$0xff]
    %v6180 = vunpack.c.l.b16 %v6116
    %v6181 = vunpack.c.h.b16 %v6116
    %v6182 = vunpack.c.l.b16 %v6117
    %v6183 = vunpack.c.h.b16 %v6117
    %v6184 = vunpack.c.l.b16 %v6118
    %v6185 = vunpack.c.h.b16 %v6118
    %v6186 = vunpack.c.l.b16 %v6119
    %v6187 = vunpack.c.h.b16 %v6119
    %v6188 = vunpack.c.l.b16 %v6120
    %v6189 = vunpack.c.h.b16 %v6120
    %v6190 = vunpack.c.l.b16 %v6121
    %v6191 = vunpack.c.h.b16 %v6121
    %v6192 = vunpack.c.l.b16 %v6122
    %v6193 = vunpack.c.h.b16 %v6122
    %v6194 = vunpack.c.l.b16 %v6123
    %v6195 = vunpack.c.h.b16 %v6123
    %v6196 = vunpack.c.l.b16 %v6124
    %v6197 = vunpack.c.h.b16 %v6124
    %v6198 = vunpack.c.l.b16 %v6125
    %v6199 = vunpack.c.h.b16 %v6125
    %v6200 = vunpack.c.l.b16 %v6126
    %v6201 = vunpack.c.h.b16 %v6126
    %v6202 = vunpack.c.l.b16 %v6127
    %v6203 = vunpack.c.h.b16 %v6127
    %v6204 = vunpack.c.l.b16 %v6128
    %v6205 = vunpack.c.h.b16 %v6128
    %v6206 = vunpack.c.l.b16 %v6129
    %v6207 = vunpack.c.h.b16 %v6129
    %v6208 = vunpack.c.l.b16 %v6130
    %v6209 = vunpack.c.h.b16 %v6130
    %v6210 = vunpack.c.l.b16 %v6131
    %v6211 = vunpack.c.h.b16 %v6131
    %v6212 = vunpack.c.l.b16 %v6132
    %v6213 = vunpack.c.h.b16 %v6132
    %v6214 = vunpack.c.l.b16 %v6133
    %v6215 = vunpack.c.h.b16 %v6133
    %v6216 = vunpack.c.l.b16 %v6134
    %v6217 = vunpack.c.h.b16 %v6134
    %v6218 = vunpack.c.l.b16 %v6135
    %v6219 = vunpack.c.h.b16 %v6135
    %v6220 = vunpack.c.l.b16 %v6136
    %v6221 = vunpack.c.h.b16 %v6136
    %v6222 = vunpack.c.l.b16 %v6137
    %v6223 = vunpack.c.h.b16 %v6137
    %v6224 = vunpack.c.l.b16 %v6138
    %v6225 = vunpack.c.h.b16 %v6138
    %v6226 = vunpack.c.l.b16 %v6139
    %v6227 = vunpack.c.h.b16 %v6139
    %v6228 = vunpack.c.l.b16 %v6140
    %v6229 = vunpack.c.h.b16 %v6140
    %v6230 = vunpack.c.l.b16 %v6141
    %v6231 = vunpack.c.h.b16 %v6141
    %v6232 = vunpack.c.l.b16 %v6142
    %v6233 = vunpack.c.h.b16 %v6142
    %v6234 = vunpack.c.l.b16 %v6143
    %v6235 = vunpack.c.h.b16 %v6143
    %v6236 = vunpack.c.l.b16 %v6144
    %v6237 = vunpack.c.h.b16 %v6144
    %v6238 = vunpack.c.l.b16 %v6145
    %v6239 = vunpack.c.h.b16 %v6145
    %v6240 = vunpack.c.l.b16 %v6146
    %v6241 = vunpack.c.h.b16 %v6146
    %v6242 = vunpack.c.l.b16 %v6147
    %v6243 = vunpack.c.h.b16 %v6147
    %v6244 = vpack.c.b16 %v6182, %v6180
    %v6245 = vpack.c.b16 %v6183, %v6181
    %v6246 = vpack.c.b16 %v6186, %v6184
    %v6247 = vpack.c.b16 %v6187, %v6185
    %v6248 = vpack.c.b16 %v6190, %v6188
    %v6249 = vpack.c.b16 %v6191, %v6189
    %v6250 = vpack.c.b16 %v6194, %v6192
    %v6251 = vpack.c.b16 %v6195, %v6193
    %v6252 = vpack.c.b16 %v6198, %v6196
    %v6253 = vpack.c.b16 %v6199, %v6197
    %v6254 = vpack.c.b16 %v6202, %v6200
    %v6255 = vpack.c.b16 %v6203, %v6201
    %v6256 = vpack.c.b16 %v6206, %v6204
    %v6257 = vpack.c.b16 %v6207, %v6205
    %v6258 = vpack.c.b16 %v6210, %v6208
    %v6259 = vpack.c.b16 %v6211, %v6209
    %v6260 = vpack.c.b16 %v6214, %v6212
    %v6261 = vpack.c.b16 %v6215, %v6213
    %v6262 = vpack.c.b16 %v6218, %v6216
    %v6263 = vpack.c.b16 %v6219, %v6217
    %v6264 = vpack.c.b16 %v6222, %v6220
    %v6265 = vpack.c.b16 %v6223, %v6221
    %v6266 = vpack.c.b16 %v6226, %v6224
    %v6267 = vpack.c.b16 %v6227, %v6225
    %v6268 = vpack.c.b16 %v6230, %v6228
    %v6269 = vpack.c.b16 %v6231, %v6229
    %v6270 = vpack.c.b16 %v6234, %v6232
    %v6271 = vpack.c.b16 %v6235, %v6233
    %v6272 = vpack.c.b16 %v6238, %v6236
    %v6273 = vpack.c.b16 %v6239, %v6237
    %v6274 = vpack.c.b16 %v6242, %v6240
    %v6275 = vpack.c.b16 %v6243, %v6241
    %6308 = vmatprep.subr.bf16.mxu0 %v6245
    %6309 = vmatpush1.bf16.msra.mxu0 %v6244
    %6310 = vmatprep.subr.bf16.mxu0 %v6247
    %6311 = vmatpush1.bf16.msra.mxu0 %v6246
    %6312 = vmatprep.subr.bf16.mxu0 %v6249
    %6313 = vmatpush1.bf16.msra.mxu0 %v6248
    %6314 = vmatprep.subr.bf16.mxu0 %v6251
    %6315 = vmatpush1.bf16.msra.mxu0 %v6250
    %6316 = vmatprep.subr.bf16.mxu0 %v6253
    %6317 = vmatpush1.bf16.msra.mxu0 %v6252
    %6318 = vmatprep.subr.bf16.mxu0 %v6255
    %6319 = vmatpush1.bf16.msra.mxu0 %v6254
    %6320 = vmatprep.subr.bf16.mxu0 %v6257
    %6321 = vmatpush1.bf16.msra.mxu0 %v6256
    %6322 = vmatprep.subr.bf16.mxu0 %v6259
    %6323 = vmatpush1.bf16.msra.mxu0 %v6258
    %6324 = vmatprep.subr.bf16.mxu0 %v6261
    %6325 = vmatpush1.bf16.msra.mxu0 %v6260
    %6326 = vmatprep.subr.bf16.mxu0 %v6263
    %6327 = vmatpush1.bf16.msra.mxu0 %v6262
    %6328 = vmatprep.subr.bf16.mxu0 %v6265
    %6329 = vmatpush1.bf16.msra.mxu0 %v6264
    %6330 = vmatprep.subr.bf16.mxu0 %v6267
    %6331 = vmatpush1.bf16.msra.mxu0 %v6266
    %6332 = vmatprep.subr.bf16.mxu0 %v6269
    %6333 = vmatpush1.bf16.msra.mxu0 %v6268
    %6334 = vmatprep.subr.bf16.mxu0 %v6271
    %6335 = vmatpush1.bf16.msra.mxu0 %v6270
    %6336 = vmatprep.subr.bf16.mxu0 %v6273
    %6337 = vmatpush1.bf16.msra.mxu0 %v6272
    %6338 = vmatprep.subr.bf16.mxu0 %v6275
    %6339 = vmatpush1.bf16.msra.mxu0 %v6274
    %6340 = vmatprep.mubr.bf16.mxu0 %v5865
    %6341 = vmatmul.mubr.bf16.gmra.mrb[0].mxu0 %v5864
    %v6342 = vpop.f32.mrb[0].mxu0
    %v6343 = vadd.f32 0.0, %v6342
    %v6344 = vpop.f32.mrb[0].mxu0
    %v6345 = vadd.f32 0.0, %v6344
    %v6346 = vpop.f32.mrb[0].mxu0
    %v6347 = vpop.f32.mrb[0].mxu0
    %6348 = vdwg.mxu0
    %v6349 = vadd.f32 %v6113, %v6343
    %v6350 = vadd.f32 %v6114, %v6345
    %s6351 = scalar_lea.vmem [#allocation6], 512
    %v6352 = vld [vmem:[%s6351] sm:$0xff]
    %v6353 = vld [vmem:[%s6351 + $0x8] sm:$0xff]
    %v6354 = vld [vmem:[%s6351 + $0x10] sm:$0xff]
    %v6355 = vld [vmem:[%s6351 + $0x18] sm:$0xff]
    %v6356 = vld [vmem:[%s6351 + $0x20] sm:$0xff]
    %v6357 = vld [vmem:[%s6351 + $0x28] sm:$0xff]
    %v6358 = vld [vmem:[%s6351 + $0x30] sm:$0xff]
    %v6359 = vld [vmem:[%s6351 + $0x38] sm:$0xff]
    %v6360 = vld [vmem:[%s6351 + $0x40] sm:$0xff]
    %v6361 = vld [vmem:[%s6351 + $0x48] sm:$0xff]
    %v6362 = vld [vmem:[%s6351 + $0x50] sm:$0xff]
    %v6363 = vld [vmem:[%s6351 + $0x58] sm:$0xff]
    %v6364 = vld [vmem:[%s6351 + $0x60] sm:$0xff]
    %v6365 = vld [vmem:[%s6351 + $0x68] sm:$0xff]
    %v6366 = vld [vmem:[%s6351 + $0x70] sm:$0xff]
    %v6367 = vld [vmem:[%s6351 + $0x78] sm:$0xff]
    %v6368 = vld [vmem:[%s6351 + $0x80] sm:$0xff]
    %v6369 = vld [vmem:[%s6351 + $0x88] sm:$0xff]
    %v6370 = vld [vmem:[%s6351 + $0x90] sm:$0xff]
    %v6371 = vld [vmem:[%s6351 + $0x98] sm:$0xff]
    %v6372 = vld [vmem:[%s6351 + $0xa0] sm:$0xff]
    %v6373 = vld [vmem:[%s6351 + $0xa8] sm:$0xff]
    %v6374 = vld [vmem:[%s6351 + $0xb0] sm:$0xff]
    %v6375 = vld [vmem:[%s6351 + $0xb8] sm:$0xff]
    %v6376 = vld [vmem:[%s6351 + $0xc0] sm:$0xff]
    %v6377 = vld [vmem:[%s6351 + $0xc8] sm:$0xff]
    %v6378 = vld [vmem:[%s6351 + $0xd0] sm:$0xff]
    %v6379 = vld [vmem:[%s6351 + $0xd8] sm:$0xff]
    %v6380 = vld [vmem:[%s6351 + $0xe0] sm:$0xff]
    %v6381 = vld [vmem:[%s6351 + $0xe8] sm:$0xff]
    %v6382 = vld [vmem:[%s6351 + $0xf0] sm:$0xff]
    %v6383 = vld [vmem:[%s6351 + $0xf8] sm:$0xff]
    %v6416 = vunpack.c.l.b16 %v6352
    %v6417 = vunpack.c.h.b16 %v6352
    %v6418 = vunpack.c.l.b16 %v6353
    %v6419 = vunpack.c.h.b16 %v6353
    %v6420 = vunpack.c.l.b16 %v6354
    %v6421 = vunpack.c.h.b16 %v6354
    %v6422 = vunpack.c.l.b16 %v6355
    %v6423 = vunpack.c.h.b16 %v6355
    %v6424 = vunpack.c.l.b16 %v6356
    %v6425 = vunpack.c.h.b16 %v6356
    %v6426 = vunpack.c.l.b16 %v6357
    %v6427 = vunpack.c.h.b16 %v6357
    %v6428 = vunpack.c.l.b16 %v6358
    %v6429 = vunpack.c.h.b16 %v6358
    %v6430 = vunpack.c.l.b16 %v6359
    %v6431 = vunpack.c.h.b16 %v6359
    %v6432 = vunpack.c.l.b16 %v6360
    %v6433 = vunpack.c.h.b16 %v6360
    %v6434 = vunpack.c.l.b16 %v6361
    %v6435 = vunpack.c.h.b16 %v6361
    %v6436 = vunpack.c.l.b16 %v6362
    %v6437 = vunpack.c.h.b16 %v6362
    %v6438 = vunpack.c.l.b16 %v6363
    %v6439 = vunpack.c.h.b16 %v6363
    %v6440 = vunpack.c.l.b16 %v6364
    %v6441 = vunpack.c.h.b16 %v6364
    %v6442 = vunpack.c.l.b16 %v6365
    %v6443 = vunpack.c.h.b16 %v6365
    %v6444 = vunpack.c.l.b16 %v6366
    %v6445 = vunpack.c.h.b16 %v6366
    %v6446 = vunpack.c.l.b16 %v6367
    %v6447 = vunpack.c.h.b16 %v6367
    %v6448 = vunpack.c.l.b16 %v6368
    %v6449 = vunpack.c.h.b16 %v6368
    %v6450 = vunpack.c.l.b16 %v6369
    %v6451 = vunpack.c.h.b16 %v6369
    %v6452 = vunpack.c.l.b16 %v6370
    %v6453 = vunpack.c.h.b16 %v6370
    %v6454 = vunpack.c.l.b16 %v6371
    %v6455 = vunpack.c.h.b16 %v6371
    %v6456 = vunpack.c.l.b16 %v6372
    %v6457 = vunpack.c.h.b16 %v6372
    %v6458 = vunpack.c.l.b16 %v6373
    %v6459 = vunpack.c.h.b16 %v6373
    %v6460 = vunpack.c.l.b16 %v6374
    %v6461 = vunpack.c.h.b16 %v6374
    %v6462 = vunpack.c.l.b16 %v6375
    %v6463 = vunpack.c.h.b16 %v6375
    %v6464 = vunpack.c.l.b16 %v6376
    %v6465 = vunpack.c.h.b16 %v6376
    %v6466 = vunpack.c.l.b16 %v6377
    %v6467 = vunpack.c.h.b16 %v6377
    %v6468 = vunpack.c.l.b16 %v6378
    %v6469 = vunpack.c.h.b16 %v6378
    %v6470 = vunpack.c.l.b16 %v6379
    %v6471 = vunpack.c.h.b16 %v6379
    %v6472 = vunpack.c.l.b16 %v6380
    %v6473 = vunpack.c.h.b16 %v6380
    %v6474 = vunpack.c.l.b16 %v6381
    %v6475 = vunpack.c.h.b16 %v6381
    %v6476 = vunpack.c.l.b16 %v6382
    %v6477 = vunpack.c.h.b16 %v6382
    %v6478 = vunpack.c.l.b16 %v6383
    %v6479 = vunpack.c.h.b16 %v6383
    %v6480 = vpack.c.b16 %v6418, %v6416
    %v6481 = vpack.c.b16 %v6419, %v6417
    %v6482 = vpack.c.b16 %v6422, %v6420
    %v6483 = vpack.c.b16 %v6423, %v6421
    %v6484 = vpack.c.b16 %v6426, %v6424
    %v6485 = vpack.c.b16 %v6427, %v6425
    %v6486 = vpack.c.b16 %v6430, %v6428
    %v6487 = vpack.c.b16 %v6431, %v6429
    %v6488 = vpack.c.b16 %v6434, %v6432
    %v6489 = vpack.c.b16 %v6435, %v6433
    %v6490 = vpack.c.b16 %v6438, %v6436
    %v6491 = vpack.c.b16 %v6439, %v6437
    %v6492 = vpack.c.b16 %v6442, %v6440
    %v6493 = vpack.c.b16 %v6443, %v6441
    %v6494 = vpack.c.b16 %v6446, %v6444
    %v6495 = vpack.c.b16 %v6447, %v6445
    %v6496 = vpack.c.b16 %v6450, %v6448
    %v6497 = vpack.c.b16 %v6451, %v6449
    %v6498 = vpack.c.b16 %v6454, %v6452
    %v6499 = vpack.c.b16 %v6455, %v6453
    %v6500 = vpack.c.b16 %v6458, %v6456
    %v6501 = vpack.c.b16 %v6459, %v6457
    %v6502 = vpack.c.b16 %v6462, %v6460
    %v6503 = vpack.c.b16 %v6463, %v6461
    %v6504 = vpack.c.b16 %v6466, %v6464
    %v6505 = vpack.c.b16 %v6467, %v6465
    %v6506 = vpack.c.b16 %v6470, %v6468
    %v6507 = vpack.c.b16 %v6471, %v6469
    %v6508 = vpack.c.b16 %v6474, %v6472
    %v6509 = vpack.c.b16 %v6475, %v6473
    %v6510 = vpack.c.b16 %v6478, %v6476
    %v6511 = vpack.c.b16 %v6479, %v6477
    %6544 = vmatprep.subr.bf16.mxu0 %v6481
    %6545 = vmatpush1.bf16.msra.mxu0 %v6480
    %6546 = vmatprep.subr.bf16.mxu0 %v6483
    %6547 = vmatpush1.bf16.msra.mxu0 %v6482
    %6548 = vmatprep.subr.bf16.mxu0 %v6485
    %6549 = vmatpush1.bf16.msra.mxu0 %v6484
    %6550 = vmatprep.subr.bf16.mxu0 %v6487
    %6551 = vmatpush1.bf16.msra.mxu0 %v6486
    %6552 = vmatprep.subr.bf16.mxu0 %v6489
    %6553 = vmatpush1.bf16.msra.mxu0 %v6488
    %6554 = vmatprep.subr.bf16.mxu0 %v6491
    %6555 = vmatpush1.bf16.msra.mxu0 %v6490
    %6556 = vmatprep.subr.bf16.mxu0 %v6493
    %6557 = vmatpush1.bf16.msra.mxu0 %v6492
    %6558 = vmatprep.subr.bf16.mxu0 %v6495
    %6559 = vmatpush1.bf16.msra.mxu0 %v6494
    %6560 = vmatprep.subr.bf16.mxu0 %v6497
    %6561 = vmatpush1.bf16.msra.mxu0 %v6496
    %6562 = vmatprep.subr.bf16.mxu0 %v6499
    %6563 = vmatpush1.bf16.msra.mxu0 %v6498
    %6564 = vmatprep.subr.bf16.mxu0 %v6501
    %6565 = vmatpush1.bf16.msra.mxu0 %v6500
    %6566 = vmatprep.subr.bf16.mxu0 %v6503
    %6567 = vmatpush1.bf16.msra.mxu0 %v6502
    %6568 = vmatprep.subr.bf16.mxu0 %v6505
    %6569 = vmatpush1.bf16.msra.mxu0 %v6504
    %6570 = vmatprep.subr.bf16.mxu0 %v6507
    %6571 = vmatpush1.bf16.msra.mxu0 %v6506
    %6572 = vmatprep.subr.bf16.mxu0 %v6509
    %6573 = vmatpush1.bf16.msra.mxu0 %v6508
    %6574 = vmatprep.subr.bf16.mxu0 %v6511
    %6575 = vmatpush1.bf16.msra.mxu0 %v6510
    %6576 = vmatprep.mubr.bf16.mxu0 %v5867
    %6577 = vmatmul.mubr.bf16.gmra.mrb[0].mxu0 %v5866
    %v6578 = vpop.f32.mrb[0].mxu0
    %v6579 = vadd.f32 0.0, %v6578
    %v6580 = vpop.f32.mrb[0].mxu0
    %v6581 = vadd.f32 0.0, %v6580
    %v6582 = vpop.f32.mrb[0].mxu0
    %v6583 = vpop.f32.mrb[0].mxu0
    %6584 = vdwg.mxu0
    %v6585 = vadd.f32 %v6349, %v6579
    %v6586 = vadd.f32 %v6350, %v6581
    %v6587 = vpack.c.bf16 %v6585, %v6585
    %v6588 = vpack.c.bf16 %v6586, %v6586
    %v6589 = vld [vmem:[#allocation7] sm:$0xf]
    %v6590 = vld [vmem:[#allocation7 + $0x4] sm:$0xf]
    %v6591 = vld [vmem:[#allocation7 + $0x8] sm:$0xf]
    %v6592 = vld [vmem:[#allocation7 + $0xc] sm:$0xf]
    %v6593 = vld [vmem:[#allocation7 + $0x10] sm:$0xf]
    %v6594 = vld [vmem:[#allocation7 + $0x14] sm:$0xf]
    %v6595 = vld [vmem:[#allocation7 + $0x18] sm:$0xf]
    %v6596 = vld [vmem:[#allocation7 + $0x1c] sm:$0xf]
    %v6597 = vld [vmem:[#allocation7 + $0x20] sm:$0xf]
    %v6598 = vld [vmem:[#allocation7 + $0x24] sm:$0xf]
    %v6599 = vld [vmem:[#allocation7 + $0x28] sm:$0xf]
    %v6600 = vld [vmem:[#allocation7 + $0x2c] sm:$0xf]
    %v6601 = vld [vmem:[#allocation7 + $0x30] sm:$0xf]
    %v6602 = vld [vmem:[#allocation7 + $0x34] sm:$0xf]
    %v6603 = vld [vmem:[#allocation7 + $0x38] sm:$0xf]
    %v6604 = vld [vmem:[#allocation7 + $0x3c] sm:$0xf]
    %v6605 = vld [vmem:[#allocation7 + $0x40] sm:$0xf]
    %v6606 = vld [vmem:[#allocation7 + $0x44] sm:$0xf]
    %v6607 = vld [vmem:[#allocation7 + $0x48] sm:$0xf]
    %v6608 = vld [vmem:[#allocation7 + $0x4c] sm:$0xf]
    %v6609 = vld [vmem:[#allocation7 + $0x50] sm:$0xf]
    %v6610 = vld [vmem:[#allocation7 + $0x54] sm:$0xf]
    %v6611 = vld [vmem:[#allocation7 + $0x58] sm:$0xf]
    %v6612 = vld [vmem:[#allocation7 + $0x5c] sm:$0xf]
    %v6613 = vld [vmem:[#allocation7 + $0x60] sm:$0xf]
    %v6614 = vld [vmem:[#allocation7 + $0x64] sm:$0xf]
    %v6615 = vld [vmem:[#allocation7 + $0x68] sm:$0xf]
    %v6616 = vld [vmem:[#allocation7 + $0x6c] sm:$0xf]
    %v6617 = vld [vmem:[#allocation7 + $0x70] sm:$0xf]
    %v6618 = vld [vmem:[#allocation7 + $0x74] sm:$0xf]
    %v6619 = vld [vmem:[#allocation7 + $0x78] sm:$0xf]
    %v6620 = vld [vmem:[#allocation7 + $0x7c] sm:$0xf]
    %v6621 = vld [vmem:[%s10] sm:$0x1]
    %v6623 = vlaneseq
    %v6624 = vshrl.u32 %v6623, 7
    %v6625 = vsub.s32 0, %v6624
    %v6626 = vrot.slane %v6621, %v6625
    %v6660 = vunpack.c.l.b16 %v6589
    %v6661 = vunpack.c.l.b16 %v6590
    %v6662 = vunpack.c.l.b16 %v6591
    %v6663 = vunpack.c.l.b16 %v6592
    %v6664 = vunpack.c.l.b16 %v6593
    %v6665 = vunpack.c.l.b16 %v6594
    %v6666 = vunpack.c.l.b16 %v6595
    %v6667 = vunpack.c.l.b16 %v6596
    %v6668 = vunpack.c.l.b16 %v6597
    %v6669 = vunpack.c.l.b16 %v6598
    %v6670 = vunpack.c.l.b16 %v6599
    %v6671 = vunpack.c.l.b16 %v6600
    %v6672 = vunpack.c.l.b16 %v6601
    %v6673 = vunpack.c.l.b16 %v6602
    %v6674 = vunpack.c.l.b16 %v6603
    %v6675 = vunpack.c.l.b16 %v6604
    %v6676 = vunpack.c.l.b16 %v6605
    %v6677 = vunpack.c.l.b16 %v6606
    %v6678 = vunpack.c.l.b16 %v6607
    %v6679 = vunpack.c.l.b16 %v6608
    %v6680 = vunpack.c.l.b16 %v6609
    %v6681 = vunpack.c.l.b16 %v6610
    %v6682 = vunpack.c.l.b16 %v6611
    %v6683 = vunpack.c.l.b16 %v6612
    %v6684 = vunpack.c.l.b16 %v6613
    %v6685 = vunpack.c.l.b16 %v6614
    %v6686 = vunpack.c.l.b16 %v6615
    %v6687 = vunpack.c.l.b16 %v6616
    %v6688 = vunpack.c.l.b16 %v6617
    %v6689 = vunpack.c.l.b16 %v6618
    %v6690 = vunpack.c.l.b16 %v6619
    %v6691 = vunpack.c.l.b16 %v6620
    %v6692 = vpack.c.b16 %v6661, %v6660
    %v6693 = vpack.c.b16 %v6663, %v6662
    %v6694 = vpack.c.b16 %v6665, %v6664
    %v6695 = vpack.c.b16 %v6667, %v6666
    %v6696 = vpack.c.b16 %v6669, %v6668
    %v6697 = vpack.c.b16 %v6671, %v6670
    %v6698 = vpack.c.b16 %v6673, %v6672
    %v6699 = vpack.c.b16 %v6675, %v6674
    %v6700 = vpack.c.b16 %v6677, %v6676
    %v6701 = vpack.c.b16 %v6679, %v6678
    %v6702 = vpack.c.b16 %v6681, %v6680
    %v6703 = vpack.c.b16 %v6683, %v6682
    %v6704 = vpack.c.b16 %v6685, %v6684
    %v6705 = vpack.c.b16 %v6687, %v6686
    %v6706 = vpack.c.b16 %v6689, %v6688
    %v6707 = vpack.c.b16 %v6691, %v6690
    %6724 = vmatprep.subr.bf16.mxu0 0
    %6725 = vmatpush1.bf16.msra.mxu0 %v6692
    %6726 = vmatprep.subr.bf16.mxu0 0
    %6727 = vmatpush1.bf16.msra.mxu0 %v6693
    %6728 = vmatprep.subr.bf16.mxu0 0
    %6729 = vmatpush1.bf16.msra.mxu0 %v6694
    %6730 = vmatprep.subr.bf16.mxu0 0
    %6731 = vmatpush1.bf16.msra.mxu0 %v6695
    %6732 = vmatprep.subr.bf16.mxu0 0
    %6733 = vmatpush1.bf16.msra.mxu0 %v6696
    %6734 = vmatprep.subr.bf16.mxu0 0
    %6735 = vmatpush1.bf16.msra.mxu0 %v6697
    %6736 = vmatprep.subr.bf16.mxu0 0
    %6737 = vmatpush1.bf16.msra.mxu0 %v6698
    %6738 = vmatprep.subr.bf16.mxu0 0
    %6739 = vmatpush1.bf16.msra.mxu0 %v6699
    %6740 = vmatprep.subr.bf16.mxu0 0
    %6741 = vmatpush1.bf16.msra.mxu0 %v6700
    %6742 = vmatprep.subr.bf16.mxu0 0
    %6743 = vmatpush1.bf16.msra.mxu0 %v6701
    %6744 = vmatprep.subr.bf16.mxu0 0
    %6745 = vmatpush1.bf16.msra.mxu0 %v6702
    %6746 = vmatprep.subr.bf16.mxu0 0
    %6747 = vmatpush1.bf16.msra.mxu0 %v6703
    %6748 = vmatprep.subr.bf16.mxu0 0
    %6749 = vmatpush1.bf16.msra.mxu0 %v6704
    %6750 = vmatprep.subr.bf16.mxu0 0
    %6751 = vmatpush1.bf16.msra.mxu0 %v6705
    %6752 = vmatprep.subr.bf16.mxu0 0
    %6753 = vmatpush1.bf16.msra.mxu0 %v6706
    %6754 = vmatprep.subr.bf16.mxu0 0
    %6755 = vmatpush1.bf16.msra.mxu0 %v6707
    %6756 = vmatprep.mubr.bf16.mxu0 %v6588
    %6757 = vmatmul.mubr.bf16.gmra.mrb[0].mxu0 %v6587
    %v6758 = vpop.f32.mrb[0].mxu0
    %v6759 = vadd.f32 %v6626, %v6758
    %v6760 = vpop.f32.mrb[0].mxu0
    %v6761 = vpop.f32.mrb[0].mxu0
    %v6762 = vpop.f32.mrb[0].mxu0
    %6763 = vdwg.mxu0
    %6764 = vst [vmem:[%s11] sm:$0xff] %v6759
    // Predicated region
    $region62: #{net_forward.1} parent=1 // pred_check
      _
    $region63: #{net_forward.1} parent=1 // pred_check_branch
      %6766 = sbr.rel (0) target = $region65
    $region64: #{net_forward.1} parent=1 // pred_region
      _
    $region65: #{net_forward.1} parent=1 // pred_fallthru
      _
    // Predicated region
    $region66: #{net_forward.1} parent=1 // pred_check
      _
    $region67: #{net_forward.1} parent=1 // pred_check_branch
      %6768 = sbr.rel (0) target = $region69
    $region68: #{net_forward.1} parent=1 // pred_region
      _
    $region69: #{net_forward.1} parent=1 // pred_fallthru
      _
    %6769 = vsyncpa [#allocation3], 1
    %6770 = vsyncpa [#allocation5], 1
    %6771 = vsyncpa [#allocation8], 1

</llo_original>
